<compile_context>
chip_gen: v7x
topology: tpu7x:2x2x1
jax: 0.10.0
libtpu: 0.0.40
codegen_flags: <defaults>
</compile_context>

<pallas_src>
import functools

import jax
import jax.numpy as jnp
from jax.experimental import pallas as pl
from jax.experimental.pallas import tpu as pltpu


def _round_up(x, m):
    return ((x + m - 1) // m) * m


# -----------------------------------------------------------------------------
# Fused Pallas kernel: one-hot embedding -> L x LSTM layer (wavefront) -> FC
# -----------------------------------------------------------------------------
def _shakespeare_lstm_kernel(*refs, seq_len, batch_pad, hidden_pad, num_layers):
    """Ref order:
        tok_ref                     : (T*Bp, 1)  int32, time-major, batch padded
        emb_ref                     : (Vpad, E)
        w_ih0_ref, w_hh0_ref, b0_ref: (E, 4Hp), (Hp, 4Hp), (1, 4Hp)
        [w_cat_l, b_l] for l >= 1   : (2Hp, 4Hp), (1, 4Hp)
        fc_w_ref, fc_b_ref          : (Hp, Vpad), (1, Vpad)
        out_ref                     : (T*Bp, Vpad)
    Everything is VMEM-resident (single grid step); the recurrence is fully
    unrolled with h/c carried as (8, Hp) values.
    """
    T, Bp, Hp, L = seq_len, batch_pad, hidden_pad, num_layers
    idx = 0
    tok_ref = refs[idx]; idx += 1
    emb_ref = refs[idx]; idx += 1
    w_ih0_ref = refs[idx]; idx += 1
    w_hh0_ref = refs[idx]; idx += 1
    b0_ref = refs[idx]; idx += 1
    upper = []
    for _ in range(L - 1):
        upper.append((refs[idx], refs[idx + 1]))
        idx += 2
    fc_w_ref = refs[idx]; idx += 1
    fc_b_ref = refs[idx]; idx += 1
    out_ref = refs[idx]

    v_pad = emb_ref.shape[0]

    # ---- Embedding lookup fused in-kernel as a one-hot MXU matmul ----------
    tok = tok_ref[...]                                                  # (T*Bp, 1)
    lane = jax.lax.broadcasted_iota(jnp.int32, (T * Bp, v_pad), 1)
    onehot = (lane == tok).astype(jnp.float32)                          # (T*Bp, Vpad)
    x0 = jnp.dot(onehot, emb_ref[...],
                 preferred_element_type=jnp.float32)                    # (T*Bp, E)

    # ---- Layer 0: input projection hoisted over the whole sequence ---------
    proj0 = jnp.dot(x0, w_ih0_ref[...],
                    preferred_element_type=jnp.float32) + b0_ref[...]   # (T*Bp, 4Hp)

    w_hh0 = w_hh0_ref[...]
    w_cats = [w[...] for (w, _) in upper]
    b_ups = [b[...] for (_, b) in upper]

    def lstm_cell(gates, c_prev):
        # Per-gate activations on lane-aligned, 128-wide slices (no full-slab work).
        i_g = jax.nn.sigmoid(gates[:, 0 * Hp:1 * Hp])
        f_g = jax.nn.sigmoid(gates[:, 1 * Hp:2 * Hp])
        g_g = jnp.tanh(gates[:, 2 * Hp:3 * Hp])
        o_g = jax.nn.sigmoid(gates[:, 3 * Hp:4 * Hp])
        c_new = f_g * c_prev + i_g * g_g
        h_new = o_g * jnp.tanh(c_new)
        return h_new, c_new

    h = [jnp.zeros((Bp, Hp), jnp.float32) for _ in range(L)]
    c = [jnp.zeros((Bp, Hp), jnp.float32) for _ in range(L)]
    h_top = [None] * T

    # Wavefront over anti-diagonals d = t + l: every cell on a diagonal is
    # independent, so their tiny recurrent matmuls can overlap.  Deeper layers
    # are traced first within a diagonal so layer l reads h[l-1] at time t
    # before layer l-1 advances to time t+1.
    for d in range(T + L - 1):
        for l in range(L - 1, -1, -1):
            t = d - l
            if t < 0 or t >= T:
                continue
            if l == 0:
                gates = proj0[t * Bp:(t + 1) * Bp, :] + jnp.dot(
                    h[0], w_hh0, preferred_element_type=jnp.float32)
            else:
                # Fused input+recurrent projection:
                #   [h_{l-1,t}, h_{l,t-1}] @ [W_ih_l ; W_hh_l]  (single K=2Hp dot)
                xh = jnp.concatenate([h[l - 1], h[l]], axis=1)           # (Bp, 2Hp)
                gates = jnp.dot(xh, w_cats[l - 1],
                                preferred_element_type=jnp.float32) + b_ups[l - 1]
            h[l], c[l] = lstm_cell(gates, c[l])
            if l == L - 1:
                h_top[t] = h[l]

    # Top-layer hidden states, time-major; every piece is an aligned (8,128) tile.
    h_all = jnp.concatenate(h_top, axis=0)                               # (T*Bp, Hp)

    # FC head over the whole sequence; Vpad multiple of 128 -> lane-dense store.
    out_ref[...] = jnp.dot(h_all, fc_w_ref[...],
                           preferred_element_type=jnp.float32) + fc_b_ref[...]


def shakespeare_lstm_fused(tok_2d, packed, *, seq_len, batch_pad):
    """tok_2d: (T*Bp, 1) int32 time-major tokens. Returns (T*Bp, Vpad) f32 logits."""
    hidden_pad = packed["fc_w"].shape[0]
    v_pad = packed["fc_w"].shape[1]
    num_layers = len(packed["upper"]) + 1

    inputs = [tok_2d, packed["emb"], packed["w_ih0"], packed["w_hh0"], packed["b0"]]
    for lp in packed["upper"]:
        inputs += [lp["w_cat"], lp["b"]]
    inputs += [packed["fc_w"], packed["fc_b"]]

    kernel = functools.partial(
        _shakespeare_lstm_kernel, seq_len=seq_len, batch_pad=batch_pad,
        hidden_pad=hidden_pad, num_layers=num_layers)

    in_specs = [
        pl.BlockSpec(a.shape, lambda i, _nd=a.ndim: (0,) * _nd)   # full-array blocks
        for a in inputs
    ]
    return pl.pallas_call(
        kernel,
        out_shape=jax.ShapeDtypeStruct((seq_len * batch_pad, v_pad), jnp.float32),
        grid_spec=pltpu.PrefetchScalarGridSpec(
            num_scalar_prefetch=0,
            grid=(1,),
            in_specs=in_specs,
            out_specs=pl.BlockSpec((seq_len * batch_pad, v_pad), lambda i: (0, 0)),
        ),
        compiler_params=pltpu.CompilerParams(
            dimension_semantics=("arbitrary",),
            vmem_limit_bytes=32 * 1024 * 1024),
    )(*inputs)


# -----------------------------------------------------------------------------
# Model: parameter init (raw + pre-padded kernel layout) + forward
# -----------------------------------------------------------------------------
def init_params(key, vocab_size, embed_size, hidden_size, num_layers):
    ks = jax.random.split(key, 1 + 4 * num_layers + 2)
    kidx = 0

    def nxt():
        nonlocal kidx
        k = ks[kidx]
        kidx += 1
        return k

    # Embedding: N(0,1) like nn.Embedding, padding_idx=0 row zeroed.
    emb = jax.random.normal(nxt(), (vocab_size, embed_size), jnp.float32)
    emb = emb.at[0].set(0.0)

    bound = 1.0 / jnp.sqrt(jnp.float32(hidden_size))
    layers = []
    for l in range(num_layers):
        in_size = embed_size if l == 0 else hidden_size
        w_ih = jax.random.uniform(nxt(), (in_size, 4 * hidden_size),
                                  jnp.float32, -bound, bound)
        w_hh = jax.random.uniform(nxt(), (hidden_size, 4 * hidden_size),
                                  jnp.float32, -bound, bound)
        b_ih = jax.random.uniform(nxt(), (4 * hidden_size,),
                                  jnp.float32, -bound, bound)
        b_hh = jax.random.uniform(nxt(), (4 * hidden_size,),
                                  jnp.float32, -bound, bound)
        layers.append({"w_ih": w_ih, "w_hh": w_hh,
                       "b": (b_ih + b_hh)[None, :]})

    fc_w = jax.random.uniform(nxt(), (hidden_size, vocab_size),
                              jnp.float32, -bound, bound)
    fc_b = jax.random.uniform(nxt(), (1, vocab_size),
                              jnp.float32, -bound, bound)

    # ---- Pre-padded kernel layout (built ONCE, no per-forward jnp.pad) ------
    H = hidden_size
    Hp = _round_up(H, 128)                      # gate width -> full 128-lane groups
    v_pad = _round_up(vocab_size, 128)

    def pad_gate_cols(w):
        # (K, 4H) -> (K, 4Hp) with gate g at columns [g*Hp, g*Hp+H); rest zero.
        k = w.shape[0]
        out = jnp.zeros((k, 4 * Hp), w.dtype)
        for g in range(4):
            out = out.at[:, g * Hp:g * Hp + H].set(w[:, g * H:(g + 1) * H])
        return out

    packed = {
        "emb": jnp.pad(emb, ((0, v_pad - vocab_size), (0, 0))),          # (Vpad, E)
        "w_ih0": pad_gate_cols(layers[0]["w_ih"]),                       # (E, 4Hp)
        "w_hh0": jnp.pad(pad_gate_cols(layers[0]["w_hh"]),
                         ((0, Hp - H), (0, 0))),                         # (Hp, 4Hp)
        "b0": pad_gate_cols(layers[0]["b"]),                             # (1, 4Hp)
        "upper": [],
        "fc_w": jnp.pad(fc_w, ((0, Hp - H), (0, v_pad - vocab_size))),   # (Hp, Vpad)
        "fc_b": jnp.pad(fc_b, ((0, 0), (0, v_pad - vocab_size))),        # (1, Vpad)
    }
    for l in range(1, num_layers):
        w_ih_p = jnp.pad(pad_gate_cols(layers[l]["w_ih"]), ((0, Hp - H), (0, 0)))
        w_hh_p = jnp.pad(pad_gate_cols(layers[l]["w_hh"]), ((0, Hp - H), (0, 0)))
        packed["upper"].append({
            "w_cat": jnp.concatenate([w_ih_p, w_hh_p], axis=0),          # (2Hp, 4Hp)
            "b": pad_gate_cols(layers[l]["b"]),                          # (1, 4Hp)
        })

    return {"embedding": emb, "lstm": layers, "fc_w": fc_w, "fc_b": fc_b,
            "packed": packed}


@jax.jit
def model_forward(params, tokens):
    """tokens: (B, T) int32 -> logits (B, T, vocab)."""
    packed = params["packed"]
    B, T = tokens.shape
    V = params["fc_w"].shape[1]
    v_pad = packed["fc_w"].shape[1]
    Bp = max(8, _round_up(B, 8))

    # Only per-forward XLA glue: transpose/pad/reshape of the tiny (B,T) int32
    # token matrix into time-major, 8-sublane-padded row indices (a few hundred
    # bytes); the embedding gather itself happens inside the kernel.
    tok_tm = jnp.pad(jnp.transpose(tokens).astype(jnp.int32),
                     ((0, 0), (0, Bp - B)))                 # (T, Bp)
    tok_2d = tok_tm.reshape(T * Bp, 1)

    out = shakespeare_lstm_fused(tok_2d, packed, seq_len=T, batch_pad=Bp)

    logits = out.reshape(T, Bp, v_pad)[:, :B, :V]           # (T, B, V)
    return jnp.transpose(logits, (1, 0, 2))                 # (B, T, V)


def ref_forward(params, tokens):
    """Pure-JAX reference (matches PyTorch nn.LSTM / DPLSTM semantics)."""
    emb = jnp.take(params["embedding"], tokens, axis=0)
    x = emb
    for layer in params["lstm"]:
        w_ih, w_hh, b = layer["w_ih"], layer["w_hh"], layer["b"]
        H = w_hh.shape[0]
        B = x.shape[0]

        def step(carry, x_t):
            h, c = carry
            gates = x_t @ w_ih + h @ w_hh + b
            i = jax.nn.sigmoid(gates[:, :H])
            f = jax.nn.sigmoid(gates[:, H:2 * H])
            g = jnp.tanh(gates[:, 2 * H:3 * H])
            o = jax.nn.sigmoid(gates[:, 3 * H:])
            c = f * c + i * g
            h = o * jnp.tanh(c)
            return (h, c), h

        init = (jnp.zeros((B, H), jnp.float32), jnp.zeros((B, H), jnp.float32))
        _, hs = jax.lax.scan(step, init, jnp.transpose(x, (1, 0, 2)))
        x = jnp.transpose(hs, (1, 0, 2))
    return x @ params["fc_w"] + params["fc_b"]


# -----------------------------------------------------------------------------
if __name__ == "__main__":
    vocab_size, embed_size, hidden_size, num_layers = 90, 32, 64, 2
    B, T = 2, 8

    key = jax.random.PRNGKey(0)
    pkey, tkey = jax.random.split(key)
    params = init_params(pkey, vocab_size, embed_size, hidden_size, num_layers)
    tokens = jax.random.randint(tkey, (B, T), 0, vocab_size, dtype=jnp.int32)

    logits = model_forward(params, tokens)
    logits = jax.block_until_ready(logits)
    assert logits.shape == (B, T, vocab_size), logits.shape

    ref = jax.block_until_ready(ref_forward(params, tokens))
    assert jnp.allclose(logits, ref, atol=1e-2, rtol=1e-2), (
        float(jnp.max(jnp.abs(logits - ref))))

    print("KERNEL_OK")
</pallas_src>

<mosaic_0001>
module attributes {stable_mosaic.version = 11 : i64} {
  func.func @_shakespeare_lstm_kernel(%arg0: i32, %arg1: memref<64x1xi32, #tpu.memory_space<vmem>>, %arg2: memref<128x32xf32, #tpu.memory_space<vmem>>, %arg3: memref<32x512xf32, #tpu.memory_space<vmem>>, %arg4: memref<128x512xf32, #tpu.memory_space<vmem>>, %arg5: memref<1x512xf32, #tpu.memory_space<vmem>>, %arg6: memref<256x512xf32, #tpu.memory_space<vmem>>, %arg7: memref<1x512xf32, #tpu.memory_space<vmem>>, %arg8: memref<128x128xf32, #tpu.memory_space<vmem>>, %arg9: memref<1x128xf32, #tpu.memory_space<vmem>>, %arg10: memref<64x128xf32, #tpu.memory_space<vmem>>) attributes {dimension_semantics = [#tpu.dimension_semantics<arbitrary>], iteration_bounds = array<i64: 1>, scalar_prefetch = 0 : i64, scratch_operands = 0 : i64, tpu.core_type = #tpu.core_type<tc>, window_params = [{pipeline_mode = #tpu.pipeline_mode<synchronous>, transform_indices = @transform_0, window_bounds = array<i64: 64, 1>}, {pipeline_mode = #tpu.pipeline_mode<synchronous>, transform_indices = @transform_1, window_bounds = array<i64: 128, 32>}, {pipeline_mode = #tpu.pipeline_mode<synchronous>, transform_indices = @transform_2, window_bounds = array<i64: 32, 512>}, {pipeline_mode = #tpu.pipeline_mode<synchronous>, transform_indices = @transform_3, window_bounds = array<i64: 128, 512>}, {pipeline_mode = #tpu.pipeline_mode<synchronous>, transform_indices = @transform_4, window_bounds = array<i64: 1, 512>}, {pipeline_mode = #tpu.pipeline_mode<synchronous>, transform_indices = @transform_5, window_bounds = array<i64: 256, 512>}, {pipeline_mode = #tpu.pipeline_mode<synchronous>, transform_indices = @transform_6, window_bounds = array<i64: 1, 512>}, {pipeline_mode = #tpu.pipeline_mode<synchronous>, transform_indices = @transform_7, window_bounds = array<i64: 128, 128>}, {pipeline_mode = #tpu.pipeline_mode<synchronous>, transform_indices = @transform_8, window_bounds = array<i64: 1, 128>}, {pipeline_mode = #tpu.pipeline_mode<synchronous>, transform_indices = @transform_9, window_bounds = array<i64: 64, 128>}]} {
    %c0 = arith.constant 0 : index
    %c0_0 = arith.constant 0 : index
    %0 = vector.load %arg1[%c0, %c0_0] : memref<64x1xi32, #tpu.memory_space<vmem>>, vector<64x1xi32>
    %1 = tpu.iota {dimensions = array<i32: 1>} : vector<64x128xi32>
    %2 = vector.broadcast %0 : vector<64x1xi32> to vector<64x128xi32>
    %3 = arith.cmpi eq, %1, %2 : vector<64x128xi32>
    %4 = arith.extui %3 : vector<64x128xi1> to vector<64x128xi32>
    %5 = arith.sitofp %4 : vector<64x128xi32> to vector<64x128xf32>
    %c0_1 = arith.constant 0 : index
    %c0_2 = arith.constant 0 : index
    %6 = vector.load %arg2[%c0_1, %c0_2] : memref<128x32xf32, #tpu.memory_space<vmem>>, vector<128x32xf32>
    %cst = arith.constant dense<0.000000e+00> : vector<64x32xf32>
    %7 = tpu.matmul %5, %6, %cst {dimension_numbers = #tpu.dot_dimension_numbers<[1], [0], [0], [1], [0, 0, 1, 1], [], []>} : vector<64x128xf32>, vector<128x32xf32>, vector<64x32xf32> -> vector<64x32xf32>
    %c0_3 = arith.constant 0 : index
    %c0_4 = arith.constant 0 : index
    %8 = vector.load %arg3[%c0_3, %c0_4] : memref<32x512xf32, #tpu.memory_space<vmem>>, vector<32x512xf32>
    %cst_5 = arith.constant dense<0.000000e+00> : vector<64x512xf32>
    %9 = tpu.matmul %7, %8, %cst_5 {dimension_numbers = #tpu.dot_dimension_numbers<[1], [0], [0], [1], [0, 0, 1, 1], [], []>} : vector<64x32xf32>, vector<32x512xf32>, vector<64x512xf32> -> vector<64x512xf32>
    %c0_6 = arith.constant 0 : index
    %c0_7 = arith.constant 0 : index
    %10 = vector.load %arg5[%c0_6, %c0_7] : memref<1x512xf32, #tpu.memory_space<vmem>>, vector<1x512xf32>
    %11 = vector.broadcast %10 : vector<1x512xf32> to vector<64x512xf32>
    %12 = arith.addf %9, %11 : vector<64x512xf32>
    %c0_8 = arith.constant 0 : index
    %c0_9 = arith.constant 0 : index
    %13 = vector.load %arg4[%c0_8, %c0_9] : memref<128x512xf32, #tpu.memory_space<vmem>>, vector<128x512xf32>
    %c0_10 = arith.constant 0 : index
    %c0_11 = arith.constant 0 : index
    %14 = vector.load %arg6[%c0_10, %c0_11] : memref<256x512xf32, #tpu.memory_space<vmem>>, vector<256x512xf32>
    %c0_12 = arith.constant 0 : index
    %c0_13 = arith.constant 0 : index
    %15 = vector.load %arg7[%c0_12, %c0_13] : memref<1x512xf32, #tpu.memory_space<vmem>>, vector<1x512xf32>
    %cst_14 = arith.constant 0.000000e+00 : f32
    %16 = vector.broadcast %cst_14 : f32 to vector<8x128xf32>
    %cst_15 = arith.constant 0.000000e+00 : f32
    %17 = vector.broadcast %cst_15 : f32 to vector<8x128xf32>
    %cst_16 = arith.constant 0.000000e+00 : f32
    %18 = vector.broadcast %cst_16 : f32 to vector<8x128xf32>
    %cst_17 = arith.constant 0.000000e+00 : f32
    %19 = vector.broadcast %cst_17 : f32 to vector<8x128xf32>
    %20 = vector.extract_strided_slice %12 {offsets = [0, 0], sizes = [8, 512], strides = [1, 1]} : vector<64x512xf32> to vector<8x512xf32>
    %cst_18 = arith.constant dense<0.000000e+00> : vector<8x512xf32>
    %21 = tpu.matmul %16, %13, %cst_18 {dimension_numbers = #tpu.dot_dimension_numbers<[1], [0], [0], [1], [0, 0, 1, 1], [], []>} : vector<8x128xf32>, vector<128x512xf32>, vector<8x512xf32> -> vector<8x512xf32>
    %22 = arith.addf %20, %21 : vector<8x512xf32>
    %23 = vector.extract_strided_slice %22 {offsets = [0, 0], sizes = [8, 128], strides = [1, 1]} : vector<8x512xf32> to vector<8x128xf32>
    %24 = arith.negf %23 : vector<8x128xf32>
    %25 = math.exp %24 : vector<8x128xf32>
    %cst_19 = arith.constant 1.000000e+00 : f32
    %26 = vector.broadcast %cst_19 : f32 to vector<8x128xf32>
    %27 = arith.addf %26, %25 : vector<8x128xf32>
    %28 = arith.divf %26, %27 : vector<8x128xf32>
    %29 = vector.extract_strided_slice %22 {offsets = [0, 128], sizes = [8, 128], strides = [1, 1]} : vector<8x512xf32> to vector<8x128xf32>
    %30 = arith.negf %29 : vector<8x128xf32>
    %31 = math.exp %30 : vector<8x128xf32>
    %cst_20 = arith.constant 1.000000e+00 : f32
    %32 = vector.broadcast %cst_20 : f32 to vector<8x128xf32>
    %33 = arith.addf %32, %31 : vector<8x128xf32>
    %34 = arith.divf %32, %33 : vector<8x128xf32>
    %35 = vector.extract_strided_slice %22 {offsets = [0, 256], sizes = [8, 128], strides = [1, 1]} : vector<8x512xf32> to vector<8x128xf32>
    %36 = math.tanh %35 : vector<8x128xf32>
    %37 = vector.extract_strided_slice %22 {offsets = [0, 384], sizes = [8, 128], strides = [1, 1]} : vector<8x512xf32> to vector<8x128xf32>
    %38 = arith.negf %37 : vector<8x128xf32>
    %39 = math.exp %38 : vector<8x128xf32>
    %cst_21 = arith.constant 1.000000e+00 : f32
    %40 = vector.broadcast %cst_21 : f32 to vector<8x128xf32>
    %41 = arith.addf %40, %39 : vector<8x128xf32>
    %42 = arith.divf %40, %41 : vector<8x128xf32>
    %43 = arith.mulf %34, %18 : vector<8x128xf32>
    %44 = arith.mulf %28, %36 : vector<8x128xf32>
    %45 = arith.addf %43, %44 : vector<8x128xf32>
    %46 = math.tanh %45 : vector<8x128xf32>
    %47 = arith.mulf %42, %46 : vector<8x128xf32>
    %48 = tpu.concatenate %47, %17 in 1 : vector<8x128xf32>, vector<8x128xf32> -> vector<8x256xf32>
    %cst_22 = arith.constant dense<0.000000e+00> : vector<8x512xf32>
    %49 = tpu.matmul %48, %14, %cst_22 {dimension_numbers = #tpu.dot_dimension_numbers<[1], [0], [0], [1], [0, 0, 1, 1], [], []>} : vector<8x256xf32>, vector<256x512xf32>, vector<8x512xf32> -> vector<8x512xf32>
    %50 = vector.broadcast %15 : vector<1x512xf32> to vector<8x512xf32>
    %51 = arith.addf %49, %50 : vector<8x512xf32>
    %52 = vector.extract_strided_slice %51 {offsets = [0, 0], sizes = [8, 128], strides = [1, 1]} : vector<8x512xf32> to vector<8x128xf32>
    %53 = arith.negf %52 : vector<8x128xf32>
    %54 = math.exp %53 : vector<8x128xf32>
    %cst_23 = arith.constant 1.000000e+00 : f32
    %55 = vector.broadcast %cst_23 : f32 to vector<8x128xf32>
    %56 = arith.addf %55, %54 : vector<8x128xf32>
    %57 = arith.divf %55, %56 : vector<8x128xf32>
    %58 = vector.extract_strided_slice %51 {offsets = [0, 128], sizes = [8, 128], strides = [1, 1]} : vector<8x512xf32> to vector<8x128xf32>
    %59 = arith.negf %58 : vector<8x128xf32>
    %60 = math.exp %59 : vector<8x128xf32>
    %cst_24 = arith.constant 1.000000e+00 : f32
    %61 = vector.broadcast %cst_24 : f32 to vector<8x128xf32>
    %62 = arith.addf %61, %60 : vector<8x128xf32>
    %63 = arith.divf %61, %62 : vector<8x128xf32>
    %64 = vector.extract_strided_slice %51 {offsets = [0, 256], sizes = [8, 128], strides = [1, 1]} : vector<8x512xf32> to vector<8x128xf32>
    %65 = math.tanh %64 : vector<8x128xf32>
    %66 = vector.extract_strided_slice %51 {offsets = [0, 384], sizes = [8, 128], strides = [1, 1]} : vector<8x512xf32> to vector<8x128xf32>
    %67 = arith.negf %66 : vector<8x128xf32>
    %68 = math.exp %67 : vector<8x128xf32>
    %cst_25 = arith.constant 1.000000e+00 : f32
    %69 = vector.broadcast %cst_25 : f32 to vector<8x128xf32>
    %70 = arith.addf %69, %68 : vector<8x128xf32>
    %71 = arith.divf %69, %70 : vector<8x128xf32>
    %72 = arith.mulf %63, %19 : vector<8x128xf32>
    %73 = arith.mulf %57, %65 : vector<8x128xf32>
    %74 = arith.addf %72, %73 : vector<8x128xf32>
    %75 = math.tanh %74 : vector<8x128xf32>
    %76 = arith.mulf %71, %75 : vector<8x128xf32>
    %77 = vector.extract_strided_slice %12 {offsets = [8, 0], sizes = [8, 512], strides = [1, 1]} : vector<64x512xf32> to vector<8x512xf32>
    %cst_26 = arith.constant dense<0.000000e+00> : vector<8x512xf32>
    %78 = tpu.matmul %47, %13, %cst_26 {dimension_numbers = #tpu.dot_dimension_numbers<[1], [0], [0], [1], [0, 0, 1, 1], [], []>} : vector<8x128xf32>, vector<128x512xf32>, vector<8x512xf32> -> vector<8x512xf32>
    %79 = arith.addf %77, %78 : vector<8x512xf32>
    %80 = vector.extract_strided_slice %79 {offsets = [0, 0], sizes = [8, 128], strides = [1, 1]} : vector<8x512xf32> to vector<8x128xf32>
    %81 = arith.negf %80 : vector<8x128xf32>
    %82 = math.exp %81 : vector<8x128xf32>
    %cst_27 = arith.constant 1.000000e+00 : f32
    %83 = vector.broadcast %cst_27 : f32 to vector<8x128xf32>
    %84 = arith.addf %83, %82 : vector<8x128xf32>
    %85 = arith.divf %83, %84 : vector<8x128xf32>
    %86 = vector.extract_strided_slice %79 {offsets = [0, 128], sizes = [8, 128], strides = [1, 1]} : vector<8x512xf32> to vector<8x128xf32>
    %87 = arith.negf %86 : vector<8x128xf32>
    %88 = math.exp %87 : vector<8x128xf32>
    %cst_28 = arith.constant 1.000000e+00 : f32
    %89 = vector.broadcast %cst_28 : f32 to vector<8x128xf32>
    %90 = arith.addf %89, %88 : vector<8x128xf32>
    %91 = arith.divf %89, %90 : vector<8x128xf32>
    %92 = vector.extract_strided_slice %79 {offsets = [0, 256], sizes = [8, 128], strides = [1, 1]} : vector<8x512xf32> to vector<8x128xf32>
    %93 = math.tanh %92 : vector<8x128xf32>
    %94 = vector.extract_strided_slice %79 {offsets = [0, 384], sizes = [8, 128], strides = [1, 1]} : vector<8x512xf32> to vector<8x128xf32>
    %95 = arith.negf %94 : vector<8x128xf32>
    %96 = math.exp %95 : vector<8x128xf32>
    %cst_29 = arith.constant 1.000000e+00 : f32
    %97 = vector.broadcast %cst_29 : f32 to vector<8x128xf32>
    %98 = arith.addf %97, %96 : vector<8x128xf32>
    %99 = arith.divf %97, %98 : vector<8x128xf32>
    %100 = arith.mulf %91, %45 : vector<8x128xf32>
    %101 = arith.mulf %85, %93 : vector<8x128xf32>
    %102 = arith.addf %100, %101 : vector<8x128xf32>
    %103 = math.tanh %102 : vector<8x128xf32>
    %104 = arith.mulf %99, %103 : vector<8x128xf32>
    %105 = tpu.concatenate %104, %76 in 1 : vector<8x128xf32>, vector<8x128xf32> -> vector<8x256xf32>
    %cst_30 = arith.constant dense<0.000000e+00> : vector<8x512xf32>
    %106 = tpu.matmul %105, %14, %cst_30 {dimension_numbers = #tpu.dot_dimension_numbers<[1], [0], [0], [1], [0, 0, 1, 1], [], []>} : vector<8x256xf32>, vector<256x512xf32>, vector<8x512xf32> -> vector<8x512xf32>
    %107 = vector.broadcast %15 : vector<1x512xf32> to vector<8x512xf32>
    %108 = arith.addf %106, %107 : vector<8x512xf32>
    %109 = vector.extract_strided_slice %108 {offsets = [0, 0], sizes = [8, 128], strides = [1, 1]} : vector<8x512xf32> to vector<8x128xf32>
    %110 = arith.negf %109 : vector<8x128xf32>
    %111 = math.exp %110 : vector<8x128xf32>
    %cst_31 = arith.constant 1.000000e+00 : f32
    %112 = vector.broadcast %cst_31 : f32 to vector<8x128xf32>
    %113 = arith.addf %112, %111 : vector<8x128xf32>
    %114 = arith.divf %112, %113 : vector<8x128xf32>
    %115 = vector.extract_strided_slice %108 {offsets = [0, 128], sizes = [8, 128], strides = [1, 1]} : vector<8x512xf32> to vector<8x128xf32>
    %116 = arith.negf %115 : vector<8x128xf32>
    %117 = math.exp %116 : vector<8x128xf32>
    %cst_32 = arith.constant 1.000000e+00 : f32
    %118 = vector.broadcast %cst_32 : f32 to vector<8x128xf32>
    %119 = arith.addf %118, %117 : vector<8x128xf32>
    %120 = arith.divf %118, %119 : vector<8x128xf32>
    %121 = vector.extract_strided_slice %108 {offsets = [0, 256], sizes = [8, 128], strides = [1, 1]} : vector<8x512xf32> to vector<8x128xf32>
    %122 = math.tanh %121 : vector<8x128xf32>
    %123 = vector.extract_strided_slice %108 {offsets = [0, 384], sizes = [8, 128], strides = [1, 1]} : vector<8x512xf32> to vector<8x128xf32>
    %124 = arith.negf %123 : vector<8x128xf32>
    %125 = math.exp %124 : vector<8x128xf32>
    %cst_33 = arith.constant 1.000000e+00 : f32
    %126 = vector.broadcast %cst_33 : f32 to vector<8x128xf32>
    %127 = arith.addf %126, %125 : vector<8x128xf32>
    %128 = arith.divf %126, %127 : vector<8x128xf32>
    %129 = arith.mulf %120, %74 : vector<8x128xf32>
    %130 = arith.mulf %114, %122 : vector<8x128xf32>
    %131 = arith.addf %129, %130 : vector<8x128xf32>
    %132 = math.tanh %131 : vector<8x128xf32>
    %133 = arith.mulf %128, %132 : vector<8x128xf32>
    %134 = vector.extract_strided_slice %12 {offsets = [16, 0], sizes = [8, 512], strides = [1, 1]} : vector<64x512xf32> to vector<8x512xf32>
    %cst_34 = arith.constant dense<0.000000e+00> : vector<8x512xf32>
    %135 = tpu.matmul %104, %13, %cst_34 {dimension_numbers = #tpu.dot_dimension_numbers<[1], [0], [0], [1], [0, 0, 1, 1], [], []>} : vector<8x128xf32>, vector<128x512xf32>, vector<8x512xf32> -> vector<8x512xf32>
    %136 = arith.addf %134, %135 : vector<8x512xf32>
    %137 = vector.extract_strided_slice %136 {offsets = [0, 0], sizes = [8, 128], strides = [1, 1]} : vector<8x512xf32> to vector<8x128xf32>
    %138 = arith.negf %137 : vector<8x128xf32>
    %139 = math.exp %138 : vector<8x128xf32>
    %cst_35 = arith.constant 1.000000e+00 : f32
    %140 = vector.broadcast %cst_35 : f32 to vector<8x128xf32>
    %141 = arith.addf %140, %139 : vector<8x128xf32>
    %142 = arith.divf %140, %141 : vector<8x128xf32>
    %143 = vector.extract_strided_slice %136 {offsets = [0, 128], sizes = [8, 128], strides = [1, 1]} : vector<8x512xf32> to vector<8x128xf32>
    %144 = arith.negf %143 : vector<8x128xf32>
    %145 = math.exp %144 : vector<8x128xf32>
    %cst_36 = arith.constant 1.000000e+00 : f32
    %146 = vector.broadcast %cst_36 : f32 to vector<8x128xf32>
    %147 = arith.addf %146, %145 : vector<8x128xf32>
    %148 = arith.divf %146, %147 : vector<8x128xf32>
    %149 = vector.extract_strided_slice %136 {offsets = [0, 256], sizes = [8, 128], strides = [1, 1]} : vector<8x512xf32> to vector<8x128xf32>
    %150 = math.tanh %149 : vector<8x128xf32>
    %151 = vector.extract_strided_slice %136 {offsets = [0, 384], sizes = [8, 128], strides = [1, 1]} : vector<8x512xf32> to vector<8x128xf32>
    %152 = arith.negf %151 : vector<8x128xf32>
    %153 = math.exp %152 : vector<8x128xf32>
    %cst_37 = arith.constant 1.000000e+00 : f32
    %154 = vector.broadcast %cst_37 : f32 to vector<8x128xf32>
    %155 = arith.addf %154, %153 : vector<8x128xf32>
    %156 = arith.divf %154, %155 : vector<8x128xf32>
    %157 = arith.mulf %148, %102 : vector<8x128xf32>
    %158 = arith.mulf %142, %150 : vector<8x128xf32>
    %159 = arith.addf %157, %158 : vector<8x128xf32>
    %160 = math.tanh %159 : vector<8x128xf32>
    %161 = arith.mulf %156, %160 : vector<8x128xf32>
    %162 = tpu.concatenate %161, %133 in 1 : vector<8x128xf32>, vector<8x128xf32> -> vector<8x256xf32>
    %cst_38 = arith.constant dense<0.000000e+00> : vector<8x512xf32>
    %163 = tpu.matmul %162, %14, %cst_38 {dimension_numbers = #tpu.dot_dimension_numbers<[1], [0], [0], [1], [0, 0, 1, 1], [], []>} : vector<8x256xf32>, vector<256x512xf32>, vector<8x512xf32> -> vector<8x512xf32>
    %164 = vector.broadcast %15 : vector<1x512xf32> to vector<8x512xf32>
    %165 = arith.addf %163, %164 : vector<8x512xf32>
    %166 = vector.extract_strided_slice %165 {offsets = [0, 0], sizes = [8, 128], strides = [1, 1]} : vector<8x512xf32> to vector<8x128xf32>
    %167 = arith.negf %166 : vector<8x128xf32>
    %168 = math.exp %167 : vector<8x128xf32>
    %cst_39 = arith.constant 1.000000e+00 : f32
    %169 = vector.broadcast %cst_39 : f32 to vector<8x128xf32>
    %170 = arith.addf %169, %168 : vector<8x128xf32>
    %171 = arith.divf %169, %170 : vector<8x128xf32>
    %172 = vector.extract_strided_slice %165 {offsets = [0, 128], sizes = [8, 128], strides = [1, 1]} : vector<8x512xf32> to vector<8x128xf32>
    %173 = arith.negf %172 : vector<8x128xf32>
    %174 = math.exp %173 : vector<8x128xf32>
    %cst_40 = arith.constant 1.000000e+00 : f32
    %175 = vector.broadcast %cst_40 : f32 to vector<8x128xf32>
    %176 = arith.addf %175, %174 : vector<8x128xf32>
    %177 = arith.divf %175, %176 : vector<8x128xf32>
    %178 = vector.extract_strided_slice %165 {offsets = [0, 256], sizes = [8, 128], strides = [1, 1]} : vector<8x512xf32> to vector<8x128xf32>
    %179 = math.tanh %178 : vector<8x128xf32>
    %180 = vector.extract_strided_slice %165 {offsets = [0, 384], sizes = [8, 128], strides = [1, 1]} : vector<8x512xf32> to vector<8x128xf32>
    %181 = arith.negf %180 : vector<8x128xf32>
    %182 = math.exp %181 : vector<8x128xf32>
    %cst_41 = arith.constant 1.000000e+00 : f32
    %183 = vector.broadcast %cst_41 : f32 to vector<8x128xf32>
    %184 = arith.addf %183, %182 : vector<8x128xf32>
    %185 = arith.divf %183, %184 : vector<8x128xf32>
    %186 = arith.mulf %177, %131 : vector<8x128xf32>
    %187 = arith.mulf %171, %179 : vector<8x128xf32>
    %188 = arith.addf %186, %187 : vector<8x128xf32>
    %189 = math.tanh %188 : vector<8x128xf32>
    %190 = arith.mulf %185, %189 : vector<8x128xf32>
    %191 = vector.extract_strided_slice %12 {offsets = [24, 0], sizes = [8, 512], strides = [1, 1]} : vector<64x512xf32> to vector<8x512xf32>
    %cst_42 = arith.constant dense<0.000000e+00> : vector<8x512xf32>
    %192 = tpu.matmul %161, %13, %cst_42 {dimension_numbers = #tpu.dot_dimension_numbers<[1], [0], [0], [1], [0, 0, 1, 1], [], []>} : vector<8x128xf32>, vector<128x512xf32>, vector<8x512xf32> -> vector<8x512xf32>
    %193 = arith.addf %191, %192 : vector<8x512xf32>
    %194 = vector.extract_strided_slice %193 {offsets = [0, 0], sizes = [8, 128], strides = [1, 1]} : vector<8x512xf32> to vector<8x128xf32>
    %195 = arith.negf %194 : vector<8x128xf32>
    %196 = math.exp %195 : vector<8x128xf32>
    %cst_43 = arith.constant 1.000000e+00 : f32
    %197 = vector.broadcast %cst_43 : f32 to vector<8x128xf32>
    %198 = arith.addf %197, %196 : vector<8x128xf32>
    %199 = arith.divf %197, %198 : vector<8x128xf32>
    %200 = vector.extract_strided_slice %193 {offsets = [0, 128], sizes = [8, 128], strides = [1, 1]} : vector<8x512xf32> to vector<8x128xf32>
    %201 = arith.negf %200 : vector<8x128xf32>
    %202 = math.exp %201 : vector<8x128xf32>
    %cst_44 = arith.constant 1.000000e+00 : f32
    %203 = vector.broadcast %cst_44 : f32 to vector<8x128xf32>
    %204 = arith.addf %203, %202 : vector<8x128xf32>
    %205 = arith.divf %203, %204 : vector<8x128xf32>
    %206 = vector.extract_strided_slice %193 {offsets = [0, 256], sizes = [8, 128], strides = [1, 1]} : vector<8x512xf32> to vector<8x128xf32>
    %207 = math.tanh %206 : vector<8x128xf32>
    %208 = vector.extract_strided_slice %193 {offsets = [0, 384], sizes = [8, 128], strides = [1, 1]} : vector<8x512xf32> to vector<8x128xf32>
    %209 = arith.negf %208 : vector<8x128xf32>
    %210 = math.exp %209 : vector<8x128xf32>
    %cst_45 = arith.constant 1.000000e+00 : f32
    %211 = vector.broadcast %cst_45 : f32 to vector<8x128xf32>
    %212 = arith.addf %211, %210 : vector<8x128xf32>
    %213 = arith.divf %211, %212 : vector<8x128xf32>
    %214 = arith.mulf %205, %159 : vector<8x128xf32>
    %215 = arith.mulf %199, %207 : vector<8x128xf32>
    %216 = arith.addf %214, %215 : vector<8x128xf32>
    %217 = math.tanh %216 : vector<8x128xf32>
    %218 = arith.mulf %213, %217 : vector<8x128xf32>
    %219 = tpu.concatenate %218, %190 in 1 : vector<8x128xf32>, vector<8x128xf32> -> vector<8x256xf32>
    %cst_46 = arith.constant dense<0.000000e+00> : vector<8x512xf32>
    %220 = tpu.matmul %219, %14, %cst_46 {dimension_numbers = #tpu.dot_dimension_numbers<[1], [0], [0], [1], [0, 0, 1, 1], [], []>} : vector<8x256xf32>, vector<256x512xf32>, vector<8x512xf32> -> vector<8x512xf32>
    %221 = vector.broadcast %15 : vector<1x512xf32> to vector<8x512xf32>
    %222 = arith.addf %220, %221 : vector<8x512xf32>
    %223 = vector.extract_strided_slice %222 {offsets = [0, 0], sizes = [8, 128], strides = [1, 1]} : vector<8x512xf32> to vector<8x128xf32>
    %224 = arith.negf %223 : vector<8x128xf32>
    %225 = math.exp %224 : vector<8x128xf32>
    %cst_47 = arith.constant 1.000000e+00 : f32
    %226 = vector.broadcast %cst_47 : f32 to vector<8x128xf32>
    %227 = arith.addf %226, %225 : vector<8x128xf32>
    %228 = arith.divf %226, %227 : vector<8x128xf32>
    %229 = vector.extract_strided_slice %222 {offsets = [0, 128], sizes = [8, 128], strides = [1, 1]} : vector<8x512xf32> to vector<8x128xf32>
    %230 = arith.negf %229 : vector<8x128xf32>
    %231 = math.exp %230 : vector<8x128xf32>
    %cst_48 = arith.constant 1.000000e+00 : f32
    %232 = vector.broadcast %cst_48 : f32 to vector<8x128xf32>
    %233 = arith.addf %232, %231 : vector<8x128xf32>
    %234 = arith.divf %232, %233 : vector<8x128xf32>
    %235 = vector.extract_strided_slice %222 {offsets = [0, 256], sizes = [8, 128], strides = [1, 1]} : vector<8x512xf32> to vector<8x128xf32>
    %236 = math.tanh %235 : vector<8x128xf32>
    %237 = vector.extract_strided_slice %222 {offsets = [0, 384], sizes = [8, 128], strides = [1, 1]} : vector<8x512xf32> to vector<8x128xf32>
    %238 = arith.negf %237 : vector<8x128xf32>
    %239 = math.exp %238 : vector<8x128xf32>
    %cst_49 = arith.constant 1.000000e+00 : f32
    %240 = vector.broadcast %cst_49 : f32 to vector<8x128xf32>
    %241 = arith.addf %240, %239 : vector<8x128xf32>
    %242 = arith.divf %240, %241 : vector<8x128xf32>
    %243 = arith.mulf %234, %188 : vector<8x128xf32>
    %244 = arith.mulf %228, %236 : vector<8x128xf32>
    %245 = arith.addf %243, %244 : vector<8x128xf32>
    %246 = math.tanh %245 : vector<8x128xf32>
    %247 = arith.mulf %242, %246 : vector<8x128xf32>
    %248 = vector.extract_strided_slice %12 {offsets = [32, 0], sizes = [8, 512], strides = [1, 1]} : vector<64x512xf32> to vector<8x512xf32>
    %cst_50 = arith.constant dense<0.000000e+00> : vector<8x512xf32>
    %249 = tpu.matmul %218, %13, %cst_50 {dimension_numbers = #tpu.dot_dimension_numbers<[1], [0], [0], [1], [0, 0, 1, 1], [], []>} : vector<8x128xf32>, vector<128x512xf32>, vector<8x512xf32> -> vector<8x512xf32>
    %250 = arith.addf %248, %249 : vector<8x512xf32>
    %251 = vector.extract_strided_slice %250 {offsets = [0, 0], sizes = [8, 128], strides = [1, 1]} : vector<8x512xf32> to vector<8x128xf32>
    %252 = arith.negf %251 : vector<8x128xf32>
    %253 = math.exp %252 : vector<8x128xf32>
    %cst_51 = arith.constant 1.000000e+00 : f32
    %254 = vector.broadcast %cst_51 : f32 to vector<8x128xf32>
    %255 = arith.addf %254, %253 : vector<8x128xf32>
    %256 = arith.divf %254, %255 : vector<8x128xf32>
    %257 = vector.extract_strided_slice %250 {offsets = [0, 128], sizes = [8, 128], strides = [1, 1]} : vector<8x512xf32> to vector<8x128xf32>
    %258 = arith.negf %257 : vector<8x128xf32>
    %259 = math.exp %258 : vector<8x128xf32>
    %cst_52 = arith.constant 1.000000e+00 : f32
    %260 = vector.broadcast %cst_52 : f32 to vector<8x128xf32>
    %261 = arith.addf %260, %259 : vector<8x128xf32>
    %262 = arith.divf %260, %261 : vector<8x128xf32>
    %263 = vector.extract_strided_slice %250 {offsets = [0, 256], sizes = [8, 128], strides = [1, 1]} : vector<8x512xf32> to vector<8x128xf32>
    %264 = math.tanh %263 : vector<8x128xf32>
    %265 = vector.extract_strided_slice %250 {offsets = [0, 384], sizes = [8, 128], strides = [1, 1]} : vector<8x512xf32> to vector<8x128xf32>
    %266 = arith.negf %265 : vector<8x128xf32>
    %267 = math.exp %266 : vector<8x128xf32>
    %cst_53 = arith.constant 1.000000e+00 : f32
    %268 = vector.broadcast %cst_53 : f32 to vector<8x128xf32>
    %269 = arith.addf %268, %267 : vector<8x128xf32>
    %270 = arith.divf %268, %269 : vector<8x128xf32>
    %271 = arith.mulf %262, %216 : vector<8x128xf32>
    %272 = arith.mulf %256, %264 : vector<8x128xf32>
    %273 = arith.addf %271, %272 : vector<8x128xf32>
    %274 = math.tanh %273 : vector<8x128xf32>
    %275 = arith.mulf %270, %274 : vector<8x128xf32>
    %276 = tpu.concatenate %275, %247 in 1 : vector<8x128xf32>, vector<8x128xf32> -> vector<8x256xf32>
    %cst_54 = arith.constant dense<0.000000e+00> : vector<8x512xf32>
    %277 = tpu.matmul %276, %14, %cst_54 {dimension_numbers = #tpu.dot_dimension_numbers<[1], [0], [0], [1], [0, 0, 1, 1], [], []>} : vector<8x256xf32>, vector<256x512xf32>, vector<8x512xf32> -> vector<8x512xf32>
    %278 = vector.broadcast %15 : vector<1x512xf32> to vector<8x512xf32>
    %279 = arith.addf %277, %278 : vector<8x512xf32>
    %280 = vector.extract_strided_slice %279 {offsets = [0, 0], sizes = [8, 128], strides = [1, 1]} : vector<8x512xf32> to vector<8x128xf32>
    %281 = arith.negf %280 : vector<8x128xf32>
    %282 = math.exp %281 : vector<8x128xf32>
    %cst_55 = arith.constant 1.000000e+00 : f32
    %283 = vector.broadcast %cst_55 : f32 to vector<8x128xf32>
    %284 = arith.addf %283, %282 : vector<8x128xf32>
    %285 = arith.divf %283, %284 : vector<8x128xf32>
    %286 = vector.extract_strided_slice %279 {offsets = [0, 128], sizes = [8, 128], strides = [1, 1]} : vector<8x512xf32> to vector<8x128xf32>
    %287 = arith.negf %286 : vector<8x128xf32>
    %288 = math.exp %287 : vector<8x128xf32>
    %cst_56 = arith.constant 1.000000e+00 : f32
    %289 = vector.broadcast %cst_56 : f32 to vector<8x128xf32>
    %290 = arith.addf %289, %288 : vector<8x128xf32>
    %291 = arith.divf %289, %290 : vector<8x128xf32>
    %292 = vector.extract_strided_slice %279 {offsets = [0, 256], sizes = [8, 128], strides = [1, 1]} : vector<8x512xf32> to vector<8x128xf32>
    %293 = math.tanh %292 : vector<8x128xf32>
    %294 = vector.extract_strided_slice %279 {offsets = [0, 384], sizes = [8, 128], strides = [1, 1]} : vector<8x512xf32> to vector<8x128xf32>
    %295 = arith.negf %294 : vector<8x128xf32>
    %296 = math.exp %295 : vector<8x128xf32>
    %cst_57 = arith.constant 1.000000e+00 : f32
    %297 = vector.broadcast %cst_57 : f32 to vector<8x128xf32>
    %298 = arith.addf %297, %296 : vector<8x128xf32>
    %299 = arith.divf %297, %298 : vector<8x128xf32>
    %300 = arith.mulf %291, %245 : vector<8x128xf32>
    %301 = arith.mulf %285, %293 : vector<8x128xf32>
    %302 = arith.addf %300, %301 : vector<8x128xf32>
    %303 = math.tanh %302 : vector<8x128xf32>
    %304 = arith.mulf %299, %303 : vector<8x128xf32>
    %305 = vector.extract_strided_slice %12 {offsets = [40, 0], sizes = [8, 512], strides = [1, 1]} : vector<64x512xf32> to vector<8x512xf32>
    %cst_58 = arith.constant dense<0.000000e+00> : vector<8x512xf32>
    %306 = tpu.matmul %275, %13, %cst_58 {dimension_numbers = #tpu.dot_dimension_numbers<[1], [0], [0], [1], [0, 0, 1, 1], [], []>} : vector<8x128xf32>, vector<128x512xf32>, vector<8x512xf32> -> vector<8x512xf32>
    %307 = arith.addf %305, %306 : vector<8x512xf32>
    %308 = vector.extract_strided_slice %307 {offsets = [0, 0], sizes = [8, 128], strides = [1, 1]} : vector<8x512xf32> to vector<8x128xf32>
    %309 = arith.negf %308 : vector<8x128xf32>
    %310 = math.exp %309 : vector<8x128xf32>
    %cst_59 = arith.constant 1.000000e+00 : f32
    %311 = vector.broadcast %cst_59 : f32 to vector<8x128xf32>
    %312 = arith.addf %311, %310 : vector<8x128xf32>
    %313 = arith.divf %311, %312 : vector<8x128xf32>
    %314 = vector.extract_strided_slice %307 {offsets = [0, 128], sizes = [8, 128], strides = [1, 1]} : vector<8x512xf32> to vector<8x128xf32>
    %315 = arith.negf %314 : vector<8x128xf32>
    %316 = math.exp %315 : vector<8x128xf32>
    %cst_60 = arith.constant 1.000000e+00 : f32
    %317 = vector.broadcast %cst_60 : f32 to vector<8x128xf32>
    %318 = arith.addf %317, %316 : vector<8x128xf32>
    %319 = arith.divf %317, %318 : vector<8x128xf32>
    %320 = vector.extract_strided_slice %307 {offsets = [0, 256], sizes = [8, 128], strides = [1, 1]} : vector<8x512xf32> to vector<8x128xf32>
    %321 = math.tanh %320 : vector<8x128xf32>
    %322 = vector.extract_strided_slice %307 {offsets = [0, 384], sizes = [8, 128], strides = [1, 1]} : vector<8x512xf32> to vector<8x128xf32>
    %323 = arith.negf %322 : vector<8x128xf32>
    %324 = math.exp %323 : vector<8x128xf32>
    %cst_61 = arith.constant 1.000000e+00 : f32
    %325 = vector.broadcast %cst_61 : f32 to vector<8x128xf32>
    %326 = arith.addf %325, %324 : vector<8x128xf32>
    %327 = arith.divf %325, %326 : vector<8x128xf32>
    %328 = arith.mulf %319, %273 : vector<8x128xf32>
    %329 = arith.mulf %313, %321 : vector<8x128xf32>
    %330 = arith.addf %328, %329 : vector<8x128xf32>
    %331 = math.tanh %330 : vector<8x128xf32>
    %332 = arith.mulf %327, %331 : vector<8x128xf32>
    %333 = tpu.concatenate %332, %304 in 1 : vector<8x128xf32>, vector<8x128xf32> -> vector<8x256xf32>
    %cst_62 = arith.constant dense<0.000000e+00> : vector<8x512xf32>
    %334 = tpu.matmul %333, %14, %cst_62 {dimension_numbers = #tpu.dot_dimension_numbers<[1], [0], [0], [1], [0, 0, 1, 1], [], []>} : vector<8x256xf32>, vector<256x512xf32>, vector<8x512xf32> -> vector<8x512xf32>
    %335 = vector.broadcast %15 : vector<1x512xf32> to vector<8x512xf32>
    %336 = arith.addf %334, %335 : vector<8x512xf32>
    %337 = vector.extract_strided_slice %336 {offsets = [0, 0], sizes = [8, 128], strides = [1, 1]} : vector<8x512xf32> to vector<8x128xf32>
    %338 = arith.negf %337 : vector<8x128xf32>
    %339 = math.exp %338 : vector<8x128xf32>
    %cst_63 = arith.constant 1.000000e+00 : f32
    %340 = vector.broadcast %cst_63 : f32 to vector<8x128xf32>
    %341 = arith.addf %340, %339 : vector<8x128xf32>
    %342 = arith.divf %340, %341 : vector<8x128xf32>
    %343 = vector.extract_strided_slice %336 {offsets = [0, 128], sizes = [8, 128], strides = [1, 1]} : vector<8x512xf32> to vector<8x128xf32>
    %344 = arith.negf %343 : vector<8x128xf32>
    %345 = math.exp %344 : vector<8x128xf32>
    %cst_64 = arith.constant 1.000000e+00 : f32
    %346 = vector.broadcast %cst_64 : f32 to vector<8x128xf32>
    %347 = arith.addf %346, %345 : vector<8x128xf32>
    %348 = arith.divf %346, %347 : vector<8x128xf32>
    %349 = vector.extract_strided_slice %336 {offsets = [0, 256], sizes = [8, 128], strides = [1, 1]} : vector<8x512xf32> to vector<8x128xf32>
    %350 = math.tanh %349 : vector<8x128xf32>
    %351 = vector.extract_strided_slice %336 {offsets = [0, 384], sizes = [8, 128], strides = [1, 1]} : vector<8x512xf32> to vector<8x128xf32>
    %352 = arith.negf %351 : vector<8x128xf32>
    %353 = math.exp %352 : vector<8x128xf32>
    %cst_65 = arith.constant 1.000000e+00 : f32
    %354 = vector.broadcast %cst_65 : f32 to vector<8x128xf32>
    %355 = arith.addf %354, %353 : vector<8x128xf32>
    %356 = arith.divf %354, %355 : vector<8x128xf32>
    %357 = arith.mulf %348, %302 : vector<8x128xf32>
    %358 = arith.mulf %342, %350 : vector<8x128xf32>
    %359 = arith.addf %357, %358 : vector<8x128xf32>
    %360 = math.tanh %359 : vector<8x128xf32>
    %361 = arith.mulf %356, %360 : vector<8x128xf32>
    %362 = vector.extract_strided_slice %12 {offsets = [48, 0], sizes = [8, 512], strides = [1, 1]} : vector<64x512xf32> to vector<8x512xf32>
    %cst_66 = arith.constant dense<0.000000e+00> : vector<8x512xf32>
    %363 = tpu.matmul %332, %13, %cst_66 {dimension_numbers = #tpu.dot_dimension_numbers<[1], [0], [0], [1], [0, 0, 1, 1], [], []>} : vector<8x128xf32>, vector<128x512xf32>, vector<8x512xf32> -> vector<8x512xf32>
    %364 = arith.addf %362, %363 : vector<8x512xf32>
    %365 = vector.extract_strided_slice %364 {offsets = [0, 0], sizes = [8, 128], strides = [1, 1]} : vector<8x512xf32> to vector<8x128xf32>
    %366 = arith.negf %365 : vector<8x128xf32>
    %367 = math.exp %366 : vector<8x128xf32>
    %cst_67 = arith.constant 1.000000e+00 : f32
    %368 = vector.broadcast %cst_67 : f32 to vector<8x128xf32>
    %369 = arith.addf %368, %367 : vector<8x128xf32>
    %370 = arith.divf %368, %369 : vector<8x128xf32>
    %371 = vector.extract_strided_slice %364 {offsets = [0, 128], sizes = [8, 128], strides = [1, 1]} : vector<8x512xf32> to vector<8x128xf32>
    %372 = arith.negf %371 : vector<8x128xf32>
    %373 = math.exp %372 : vector<8x128xf32>
    %cst_68 = arith.constant 1.000000e+00 : f32
    %374 = vector.broadcast %cst_68 : f32 to vector<8x128xf32>
    %375 = arith.addf %374, %373 : vector<8x128xf32>
    %376 = arith.divf %374, %375 : vector<8x128xf32>
    %377 = vector.extract_strided_slice %364 {offsets = [0, 256], sizes = [8, 128], strides = [1, 1]} : vector<8x512xf32> to vector<8x128xf32>
    %378 = math.tanh %377 : vector<8x128xf32>
    %379 = vector.extract_strided_slice %364 {offsets = [0, 384], sizes = [8, 128], strides = [1, 1]} : vector<8x512xf32> to vector<8x128xf32>
    %380 = arith.negf %379 : vector<8x128xf32>
    %381 = math.exp %380 : vector<8x128xf32>
    %cst_69 = arith.constant 1.000000e+00 : f32
    %382 = vector.broadcast %cst_69 : f32 to vector<8x128xf32>
    %383 = arith.addf %382, %381 : vector<8x128xf32>
    %384 = arith.divf %382, %383 : vector<8x128xf32>
    %385 = arith.mulf %376, %330 : vector<8x128xf32>
    %386 = arith.mulf %370, %378 : vector<8x128xf32>
    %387 = arith.addf %385, %386 : vector<8x128xf32>
    %388 = math.tanh %387 : vector<8x128xf32>
    %389 = arith.mulf %384, %388 : vector<8x128xf32>
    %390 = tpu.concatenate %389, %361 in 1 : vector<8x128xf32>, vector<8x128xf32> -> vector<8x256xf32>
    %cst_70 = arith.constant dense<0.000000e+00> : vector<8x512xf32>
    %391 = tpu.matmul %390, %14, %cst_70 {dimension_numbers = #tpu.dot_dimension_numbers<[1], [0], [0], [1], [0, 0, 1, 1], [], []>} : vector<8x256xf32>, vector<256x512xf32>, vector<8x512xf32> -> vector<8x512xf32>
    %392 = vector.broadcast %15 : vector<1x512xf32> to vector<8x512xf32>
    %393 = arith.addf %391, %392 : vector<8x512xf32>
    %394 = vector.extract_strided_slice %393 {offsets = [0, 0], sizes = [8, 128], strides = [1, 1]} : vector<8x512xf32> to vector<8x128xf32>
    %395 = arith.negf %394 : vector<8x128xf32>
    %396 = math.exp %395 : vector<8x128xf32>
    %cst_71 = arith.constant 1.000000e+00 : f32
    %397 = vector.broadcast %cst_71 : f32 to vector<8x128xf32>
    %398 = arith.addf %397, %396 : vector<8x128xf32>
    %399 = arith.divf %397, %398 : vector<8x128xf32>
    %400 = vector.extract_strided_slice %393 {offsets = [0, 128], sizes = [8, 128], strides = [1, 1]} : vector<8x512xf32> to vector<8x128xf32>
    %401 = arith.negf %400 : vector<8x128xf32>
    %402 = math.exp %401 : vector<8x128xf32>
    %cst_72 = arith.constant 1.000000e+00 : f32
    %403 = vector.broadcast %cst_72 : f32 to vector<8x128xf32>
    %404 = arith.addf %403, %402 : vector<8x128xf32>
    %405 = arith.divf %403, %404 : vector<8x128xf32>
    %406 = vector.extract_strided_slice %393 {offsets = [0, 256], sizes = [8, 128], strides = [1, 1]} : vector<8x512xf32> to vector<8x128xf32>
    %407 = math.tanh %406 : vector<8x128xf32>
    %408 = vector.extract_strided_slice %393 {offsets = [0, 384], sizes = [8, 128], strides = [1, 1]} : vector<8x512xf32> to vector<8x128xf32>
    %409 = arith.negf %408 : vector<8x128xf32>
    %410 = math.exp %409 : vector<8x128xf32>
    %cst_73 = arith.constant 1.000000e+00 : f32
    %411 = vector.broadcast %cst_73 : f32 to vector<8x128xf32>
    %412 = arith.addf %411, %410 : vector<8x128xf32>
    %413 = arith.divf %411, %412 : vector<8x128xf32>
    %414 = arith.mulf %405, %359 : vector<8x128xf32>
    %415 = arith.mulf %399, %407 : vector<8x128xf32>
    %416 = arith.addf %414, %415 : vector<8x128xf32>
    %417 = math.tanh %416 : vector<8x128xf32>
    %418 = arith.mulf %413, %417 : vector<8x128xf32>
    %419 = vector.extract_strided_slice %12 {offsets = [56, 0], sizes = [8, 512], strides = [1, 1]} : vector<64x512xf32> to vector<8x512xf32>
    %cst_74 = arith.constant dense<0.000000e+00> : vector<8x512xf32>
    %420 = tpu.matmul %389, %13, %cst_74 {dimension_numbers = #tpu.dot_dimension_numbers<[1], [0], [0], [1], [0, 0, 1, 1], [], []>} : vector<8x128xf32>, vector<128x512xf32>, vector<8x512xf32> -> vector<8x512xf32>
    %421 = arith.addf %419, %420 : vector<8x512xf32>
    %422 = vector.extract_strided_slice %421 {offsets = [0, 0], sizes = [8, 128], strides = [1, 1]} : vector<8x512xf32> to vector<8x128xf32>
    %423 = arith.negf %422 : vector<8x128xf32>
    %424 = math.exp %423 : vector<8x128xf32>
    %cst_75 = arith.constant 1.000000e+00 : f32
    %425 = vector.broadcast %cst_75 : f32 to vector<8x128xf32>
    %426 = arith.addf %425, %424 : vector<8x128xf32>
    %427 = arith.divf %425, %426 : vector<8x128xf32>
    %428 = vector.extract_strided_slice %421 {offsets = [0, 128], sizes = [8, 128], strides = [1, 1]} : vector<8x512xf32> to vector<8x128xf32>
    %429 = arith.negf %428 : vector<8x128xf32>
    %430 = math.exp %429 : vector<8x128xf32>
    %cst_76 = arith.constant 1.000000e+00 : f32
    %431 = vector.broadcast %cst_76 : f32 to vector<8x128xf32>
    %432 = arith.addf %431, %430 : vector<8x128xf32>
    %433 = arith.divf %431, %432 : vector<8x128xf32>
    %434 = vector.extract_strided_slice %421 {offsets = [0, 256], sizes = [8, 128], strides = [1, 1]} : vector<8x512xf32> to vector<8x128xf32>
    %435 = math.tanh %434 : vector<8x128xf32>
    %436 = vector.extract_strided_slice %421 {offsets = [0, 384], sizes = [8, 128], strides = [1, 1]} : vector<8x512xf32> to vector<8x128xf32>
    %437 = arith.negf %436 : vector<8x128xf32>
    %438 = math.exp %437 : vector<8x128xf32>
    %cst_77 = arith.constant 1.000000e+00 : f32
    %439 = vector.broadcast %cst_77 : f32 to vector<8x128xf32>
    %440 = arith.addf %439, %438 : vector<8x128xf32>
    %441 = arith.divf %439, %440 : vector<8x128xf32>
    %442 = arith.mulf %433, %387 : vector<8x128xf32>
    %443 = arith.mulf %427, %435 : vector<8x128xf32>
    %444 = arith.addf %442, %443 : vector<8x128xf32>
    %445 = math.tanh %444 : vector<8x128xf32>
    %446 = arith.mulf %441, %445 : vector<8x128xf32>
    %447 = tpu.concatenate %446, %418 in 1 : vector<8x128xf32>, vector<8x128xf32> -> vector<8x256xf32>
    %cst_78 = arith.constant dense<0.000000e+00> : vector<8x512xf32>
    %448 = tpu.matmul %447, %14, %cst_78 {dimension_numbers = #tpu.dot_dimension_numbers<[1], [0], [0], [1], [0, 0, 1, 1], [], []>} : vector<8x256xf32>, vector<256x512xf32>, vector<8x512xf32> -> vector<8x512xf32>
    %449 = vector.broadcast %15 : vector<1x512xf32> to vector<8x512xf32>
    %450 = arith.addf %448, %449 : vector<8x512xf32>
    %451 = vector.extract_strided_slice %450 {offsets = [0, 0], sizes = [8, 128], strides = [1, 1]} : vector<8x512xf32> to vector<8x128xf32>
    %452 = arith.negf %451 : vector<8x128xf32>
    %453 = math.exp %452 : vector<8x128xf32>
    %cst_79 = arith.constant 1.000000e+00 : f32
    %454 = vector.broadcast %cst_79 : f32 to vector<8x128xf32>
    %455 = arith.addf %454, %453 : vector<8x128xf32>
    %456 = arith.divf %454, %455 : vector<8x128xf32>
    %457 = vector.extract_strided_slice %450 {offsets = [0, 128], sizes = [8, 128], strides = [1, 1]} : vector<8x512xf32> to vector<8x128xf32>
    %458 = arith.negf %457 : vector<8x128xf32>
    %459 = math.exp %458 : vector<8x128xf32>
    %cst_80 = arith.constant 1.000000e+00 : f32
    %460 = vector.broadcast %cst_80 : f32 to vector<8x128xf32>
    %461 = arith.addf %460, %459 : vector<8x128xf32>
    %462 = arith.divf %460, %461 : vector<8x128xf32>
    %463 = vector.extract_strided_slice %450 {offsets = [0, 256], sizes = [8, 128], strides = [1, 1]} : vector<8x512xf32> to vector<8x128xf32>
    %464 = math.tanh %463 : vector<8x128xf32>
    %465 = vector.extract_strided_slice %450 {offsets = [0, 384], sizes = [8, 128], strides = [1, 1]} : vector<8x512xf32> to vector<8x128xf32>
    %466 = arith.negf %465 : vector<8x128xf32>
    %467 = math.exp %466 : vector<8x128xf32>
    %cst_81 = arith.constant 1.000000e+00 : f32
    %468 = vector.broadcast %cst_81 : f32 to vector<8x128xf32>
    %469 = arith.addf %468, %467 : vector<8x128xf32>
    %470 = arith.divf %468, %469 : vector<8x128xf32>
    %471 = arith.mulf %462, %416 : vector<8x128xf32>
    %472 = arith.mulf %456, %464 : vector<8x128xf32>
    %473 = arith.addf %471, %472 : vector<8x128xf32>
    %474 = math.tanh %473 : vector<8x128xf32>
    %475 = arith.mulf %470, %474 : vector<8x128xf32>
    %476 = tpu.concatenate %76, %133, %190, %247, %304, %361, %418, %475 in 0 : vector<8x128xf32>, vector<8x128xf32>, vector<8x128xf32>, vector<8x128xf32>, vector<8x128xf32>, vector<8x128xf32>, vector<8x128xf32>, vector<8x128xf32> -> vector<64x128xf32>
    %c0_82 = arith.constant 0 : index
    %c0_83 = arith.constant 0 : index
    %477 = vector.load %arg8[%c0_82, %c0_83] : memref<128x128xf32, #tpu.memory_space<vmem>>, vector<128x128xf32>
    %cst_84 = arith.constant dense<0.000000e+00> : vector<64x128xf32>
    %478 = tpu.matmul %476, %477, %cst_84 {dimension_numbers = #tpu.dot_dimension_numbers<[1], [0], [0], [1], [0, 0, 1, 1], [], []>} : vector<64x128xf32>, vector<128x128xf32>, vector<64x128xf32> -> vector<64x128xf32>
    %c0_85 = arith.constant 0 : index
    %c0_86 = arith.constant 0 : index
    %479 = vector.load %arg9[%c0_85, %c0_86] : memref<1x128xf32, #tpu.memory_space<vmem>>, vector<1x128xf32>
    %480 = vector.broadcast %479 : vector<1x128xf32> to vector<64x128xf32>
    %481 = arith.addf %478, %480 : vector<64x128xf32>
    %c0_87 = arith.constant 0 : index
    %c0_88 = arith.constant 0 : index
    %482 = vector.load %arg10[%c0_87, %c0_88] : memref<64x128xf32, #tpu.memory_space<vmem>>, vector<64x128xf32>
    tpu.vector_store %arg10[%c0_87, %c0_88], %481 {strides = array<i32>} : memref<64x128xf32, #tpu.memory_space<vmem>>, vector<64x128xf32>,
    return
  }
  func.func @transform_0(%arg0: i32) -> (i32, i32) {
    %c0_i32 = arith.constant 0 : i32
    %c0_i32_0 = arith.constant 0 : i32
    %c0_i32_1 = arith.constant 0 : i32
    return %c0_i32, %c0_i32_0 : i32, i32
  }
  func.func @transform_1(%arg0: i32) -> (i32, i32) {
    %c0_i32 = arith.constant 0 : i32
    %c0_i32_0 = arith.constant 0 : i32
    %c0_i32_1 = arith.constant 0 : i32
    return %c0_i32, %c0_i32_0 : i32, i32
  }
  func.func @transform_2(%arg0: i32) -> (i32, i32) {
    %c0_i32 = arith.constant 0 : i32
    %c0_i32_0 = arith.constant 0 : i32
    %c0_i32_1 = arith.constant 0 : i32
    return %c0_i32, %c0_i32_0 : i32, i32
  }
  func.func @transform_3(%arg0: i32) -> (i32, i32) {
    %c0_i32 = arith.constant 0 : i32
    %c0_i32_0 = arith.constant 0 : i32
    %c0_i32_1 = arith.constant 0 : i32
    return %c0_i32, %c0_i32_0 : i32, i32
  }
  func.func @transform_4(%arg0: i32) -> (i32, i32) {
    %c0_i32 = arith.constant 0 : i32
    %c0_i32_0 = arith.constant 0 : i32
    %c0_i32_1 = arith.constant 0 : i32
    return %c0_i32, %c0_i32_0 : i32, i32
  }
  func.func @transform_5(%arg0: i32) -> (i32, i32) {
    %c0_i32 = arith.constant 0 : i32
    %c0_i32_0 = arith.constant 0 : i32
    %c0_i32_1 = arith.constant 0 : i32
    return %c0_i32, %c0_i32_0 : i32, i32
  }
  func.func @transform_6(%arg0: i32) -> (i32, i32) {
    %c0_i32 = arith.constant 0 : i32
    %c0_i32_0 = arith.constant 0 : i32
    %c0_i32_1 = arith.constant 0 : i32
    return %c0_i32, %c0_i32_0 : i32, i32
  }
  func.func @transform_7(%arg0: i32) -> (i32, i32) {
    %c0_i32 = arith.constant 0 : i32
    %c0_i32_0 = arith.constant 0 : i32
    %c0_i32_1 = arith.constant 0 : i32
    return %c0_i32, %c0_i32_0 : i32, i32
  }
  func.func @transform_8(%arg0: i32) -> (i32, i32) {
    %c0_i32 = arith.constant 0 : i32
    %c0_i32_0 = arith.constant 0 : i32
    %c0_i32_1 = arith.constant 0 : i32
    return %c0_i32, %c0_i32_0 : i32, i32
  }
  func.func @transform_9(%arg0: i32) -> (i32, i32) {
    %c0_i32 = arith.constant 0 : i32
    %c0_i32_0 = arith.constant 0 : i32
    %c0_i32_1 = arith.constant 0 : i32
    return %c0_i32, %c0_i32_0 : i32, i32
  }
}

</mosaic_0001>

<llo_original>
// kernel: model_forward.1
$region0: #{model_forward.1}
  #allocation0 [shape = 'u32[]', space=smem, size = 0x4, offset = 0x4, fixed_abs, tag = 'smem constant byte address 0x4 - core index']
  #allocation1 [shape = 'u32[144,128]{1,0:T(1,128)}', space=vmem, size = 0x12000, scoped, tag = 'internal scratch']
  %s0 = inlined_call_operand.vmem [shape: s32[64,1], index: 0, kind: input, shape index: {}]
  %s1 = inlined_call_operand.vmem [shape: f32[128,32], index: 1, kind: input, shape index: {}]
  %s2 = inlined_call_operand.vmem [shape: f32[32,512], index: 2, kind: input, shape index: {}]
  %s3 = inlined_call_operand.hbm [shape: f32[128,512], index: 3, kind: input, shape index: {}]
  %s4 = inlined_call_operand.vmem [shape: f32[1,512], index: 4, kind: input, shape index: {}]
  %s5 = inlined_call_operand.hbm [shape: f32[256,512], index: 5, kind: input, shape index: {}]
  %s6 = inlined_call_operand.vmem [shape: f32[1,512], index: 6, kind: input, shape index: {}]
  %s7 = inlined_call_operand.vmem [shape: f32[128,128], index: 7, kind: input, shape index: {}]
  %s8 = inlined_call_operand.vmem [shape: f32[1,128], index: 8, kind: input, shape index: {}]
  %s9 = inlined_call_operand.vmem [shape: f32[64,128], index: 9, kind: output, shape index: {}]
  %s10 = sld [smem:[#allocation0]]
  $region54: #{model_forward.1} parent=0
    _
  %s12 = ssub.s32 1, %s10
  %s13 = scalar_select 0, %s12, %s10
  $region1: #{model_forward.1} parent=0
    #allocation2 [shape = 'u8[262144]{0}', space=vmem, size = 0x40000, scoped, tag = 'input window, operand 3, single buffered']
    #allocation3 [shape = 's32[1]{0}', space=sflag, size = 0x4, scoped, tag = 'scoped memory for model_forward.1']
    #allocation4 [shape = 'u8[524288]{0}', space=vmem, size = 0x80000, scoped, tag = 'input window, operand 5, single buffered']
    #allocation5 [shape = 's32[1]{0}', space=sflag, size = 0x4, scoped, tag = 'scoped memory for model_forward.1']
    %14 = vsyncpa [#allocation3], 0
    %15 = vsyncpa [#allocation5], 0
    // Predicated region
    $region2: #{model_forward.1} parent=1 // pred_check
      _
    $region3: #{model_forward.1} parent=1 // pred_check_branch
      %17 = sbr.rel (0) target = $region5
    $region4: #{model_forward.1} parent=1 // pred_region
      _
    $region5: #{model_forward.1} parent=1 // pred_fallthru
      _
    // Predicated region
    $region6: #{model_forward.1} parent=1 // pred_check
      _
    $region7: #{model_forward.1} parent=1 // pred_check_branch
      %19 = sbr.rel (0) target = $region9
    $region8: #{model_forward.1} parent=1 // pred_region
      _
    $region9: #{model_forward.1} parent=1 // pred_fallthru
      _
    // Predicated region
    $region10: #{model_forward.1} parent=1 // pred_check
      _
    $region11: #{model_forward.1} parent=1 // pred_check_branch
      %21 = sbr.rel (0) target = $region13
    $region12: #{model_forward.1} parent=1 // pred_region
      _
    $region13: #{model_forward.1} parent=1 // pred_fallthru
      _
    // Predicated region
    $region14: #{model_forward.1} parent=1 // pred_check
      _
    $region15: #{model_forward.1} parent=1 // pred_check_branch
      %23 = sbr.rel (0) target = $region17
    $region16: #{model_forward.1} parent=1 // pred_region
      %s25 = ssub.s32 8192, 8192
      %26 = vsyncadd [#allocation3], %s25
      %s27 = sshll.u32 [#allocation2], 4
      %s28 = int_to_ptr.vmem [resolvable:$true] %s27
      %33 = dma.hbm_to_vmem [thread:$0]  %s3, 8192, %s28, [#allocation3], 512, 512, 32
    $region17: #{model_forward.1} parent=1 // pred_fallthru
      _
    // Predicated region
    $region18: #{model_forward.1} parent=1 // pred_check
      _
    $region19: #{model_forward.1} parent=1 // pred_check_branch
      %35 = sbr.rel (0) target = $region21
    $region20: #{model_forward.1} parent=1 // pred_region
      _
    $region21: #{model_forward.1} parent=1 // pred_fallthru
      _
    // Predicated region
    $region22: #{model_forward.1} parent=1 // pred_check
      _
    $region23: #{model_forward.1} parent=1 // pred_check_branch
      %37 = sbr.rel (0) target = $region25
    $region24: #{model_forward.1} parent=1 // pred_region
      %s39 = ssub.s32 16384, 16384
      %40 = vsyncadd [#allocation5], %s39
      %s41 = sshll.u32 [#allocation4], 4
      %s42 = int_to_ptr.vmem [resolvable:$true] %s41
      %47 = dma.hbm_to_vmem [thread:$0]  %s5, 16384, %s42, [#allocation5], 512, 512, 32
    $region25: #{model_forward.1} parent=1 // pred_fallthru
      _
    // Predicated region
    $region26: #{model_forward.1} parent=1 // pred_check
      _
    $region27: #{model_forward.1} parent=1 // pred_check_branch
      %49 = sbr.rel (0) target = $region29
    $region28: #{model_forward.1} parent=1 // pred_region
      _
    $region29: #{model_forward.1} parent=1 // pred_fallthru
      _
    // Predicated region
    $region30: #{model_forward.1} parent=1 // pred_check
      _
    $region31: #{model_forward.1} parent=1 // pred_check_branch
      %51 = sbr.rel (0) target = $region33
    $region32: #{model_forward.1} parent=1 // pred_region
      _
    $region33: #{model_forward.1} parent=1 // pred_fallthru
      _
    // Predicated region
    $region34: #{model_forward.1} parent=1 // pred_check
      _
    $region35: #{model_forward.1} parent=1 // pred_check_branch
      %53 = sbr.rel (0) target = $region37
    $region36: #{model_forward.1} parent=1 // pred_region
      _
    $region37: #{model_forward.1} parent=1 // pred_fallthru
      _
    // Predicated region
    $region38: #{model_forward.1} parent=1 // pred_check
      _
    $region39: #{model_forward.1} parent=1 // pred_check_branch
      %55 = sbr.rel (0) target = $region41
    $region40: #{model_forward.1} parent=1 // pred_region
      %56 = dma.done [#allocation3], 8192
    $region41: #{model_forward.1} parent=1 // pred_fallthru
      _
    // Predicated region
    $region42: #{model_forward.1} parent=1 // pred_check
      _
    $region43: #{model_forward.1} parent=1 // pred_check_branch
      %58 = sbr.rel (0) target = $region45
    $region44: #{model_forward.1} parent=1 // pred_region
      %59 = dma.done [#allocation5], 16384
    $region45: #{model_forward.1} parent=1 // pred_fallthru
      _
    %v60 = vld [vmem:[%s0] sm:$0xff]
    %v61 = vld [vmem:[%s0 + $0x8] sm:$0xff]
    %v62 = vld [vmem:[%s0 + $0x10] sm:$0xff]
    %v63 = vld [vmem:[%s0 + $0x18] sm:$0xff]
    %v64 = vld [vmem:[%s0 + $0x20] sm:$0xff]
    %v65 = vld [vmem:[%s0 + $0x28] sm:$0xff]
    %v66 = vld [vmem:[%s0 + $0x30] sm:$0xff]
    %v67 = vld [vmem:[%s0 + $0x38] sm:$0xff]
    %v68 = vlaneseq
    %v69 = vand.u32 %v68, 127
    %70 = vset.pattern.permute.xlu0 0
    %71 = vperm.xlu0 %70, %v60
    %v72 = vpop.permute.xlu0 %71
    %73 = vset.pattern.permute.xlu0 0
    %74 = vperm.xlu0 %73, %v61
    %v75 = vpop.permute.xlu0 %74
    %76 = vset.pattern.permute.xlu0 0
    %77 = vperm.xlu0 %76, %v62
    %v78 = vpop.permute.xlu0 %77
    %79 = vset.pattern.permute.xlu0 0
    %80 = vperm.xlu0 %79, %v63
    %v81 = vpop.permute.xlu0 %80
    %82 = vset.pattern.permute.xlu0 0
    %83 = vperm.xlu0 %82, %v64
    %v84 = vpop.permute.xlu0 %83
    %85 = vset.pattern.permute.xlu0 0
    %86 = vperm.xlu0 %85, %v65
    %v87 = vpop.permute.xlu0 %86
    %88 = vset.pattern.permute.xlu0 0
    %89 = vperm.xlu0 %88, %v66
    %v90 = vpop.permute.xlu0 %89
    %91 = vset.pattern.permute.xlu0 0
    %92 = vperm.xlu0 %91, %v67
    %v93 = vpop.permute.xlu0 %92
    %vm94 = vcmp.eq.s32.totalorder %v69, %v72
    %vm95 = vcmp.eq.s32.totalorder %v69, %v75
    %vm96 = vcmp.eq.s32.totalorder %v69, %v78
    %vm97 = vcmp.eq.s32.totalorder %v69, %v81
    %vm98 = vcmp.eq.s32.totalorder %v69, %v84
    %vm99 = vcmp.eq.s32.totalorder %v69, %v87
    %vm100 = vcmp.eq.s32.totalorder %v69, %v90
    %vm101 = vcmp.eq.s32.totalorder %v69, %v93
    %v102 = vsel %vm94, 1, 0
    %v103 = vsel %vm95, 1, 0
    %v104 = vsel %vm96, 1, 0
    %v105 = vsel %vm97, 1, 0
    %v106 = vsel %vm98, 1, 0
    %v107 = vsel %vm99, 1, 0
    %v108 = vsel %vm100, 1, 0
    %v109 = vsel %vm101, 1, 0
    %v110 = vcvt.s32.f32 %v102
    %v111 = vcvt.s32.f32 %v103
    %v112 = vcvt.s32.f32 %v104
    %v113 = vcvt.s32.f32 %v105
    %v114 = vcvt.s32.f32 %v106
    %v115 = vcvt.s32.f32 %v107
    %v116 = vcvt.s32.f32 %v108
    %v117 = vcvt.s32.f32 %v109
    %v118 = vld [vmem:[%s1] sm:$0xff]
    %v119 = vld [vmem:[%s1 + $0x8] sm:$0xff]
    %v120 = vld [vmem:[%s1 + $0x10] sm:$0xff]
    %v121 = vld [vmem:[%s1 + $0x18] sm:$0xff]
    %v122 = vld [vmem:[%s1 + $0x20] sm:$0xff]
    %v123 = vld [vmem:[%s1 + $0x28] sm:$0xff]
    %v124 = vld [vmem:[%s1 + $0x30] sm:$0xff]
    %v125 = vld [vmem:[%s1 + $0x38] sm:$0xff]
    %v126 = vld [vmem:[%s1 + $0x40] sm:$0xff]
    %v127 = vld [vmem:[%s1 + $0x48] sm:$0xff]
    %v128 = vld [vmem:[%s1 + $0x50] sm:$0xff]
    %v129 = vld [vmem:[%s1 + $0x58] sm:$0xff]
    %v130 = vld [vmem:[%s1 + $0x60] sm:$0xff]
    %v131 = vld [vmem:[%s1 + $0x68] sm:$0xff]
    %v132 = vld [vmem:[%s1 + $0x70] sm:$0xff]
    %v133 = vld [vmem:[%s1 + $0x78] sm:$0xff]
    %134 = vmatprep.subr.mxu0 0.0
    %135 = vmatpush1.msra.mxu0 %v118
    %136 = vmatprep.subr.mxu0 0.0
    %137 = vmatpush1.msra.mxu0 %v119
    %138 = vmatprep.subr.mxu0 0.0
    %139 = vmatpush1.msra.mxu0 %v120
    %140 = vmatprep.subr.mxu0 0.0
    %141 = vmatpush1.msra.mxu0 %v121
    %142 = vmatprep.subr.mxu0 0.0
    %143 = vmatpush1.msra.mxu0 %v122
    %144 = vmatprep.subr.mxu0 0.0
    %145 = vmatpush1.msra.mxu0 %v123
    %146 = vmatprep.subr.mxu0 0.0
    %147 = vmatpush1.msra.mxu0 %v124
    %148 = vmatprep.subr.mxu0 0.0
    %149 = vmatpush1.msra.mxu0 %v125
    %150 = vmatprep.subr.mxu0 0.0
    %151 = vmatpush1.msra.mxu0 %v126
    %152 = vmatprep.subr.mxu0 0.0
    %153 = vmatpush1.msra.mxu0 %v127
    %154 = vmatprep.subr.mxu0 0.0
    %155 = vmatpush1.msra.mxu0 %v128
    %156 = vmatprep.subr.mxu0 0.0
    %157 = vmatpush1.msra.mxu0 %v129
    %158 = vmatprep.subr.mxu0 0.0
    %159 = vmatpush1.msra.mxu0 %v130
    %160 = vmatprep.subr.mxu0 0.0
    %161 = vmatpush1.msra.mxu0 %v131
    %162 = vmatprep.subr.mxu0 0.0
    %163 = vmatpush1.msra.mxu0 %v132
    %164 = vmatprep.subr.mxu0 0.0
    %165 = vmatpush1.msra.mxu0 %v133
    %166 = vmatprep.subr.mxu0 0.0
    %167 = vmatpush1.msra.mxu0 0.0
    %168 = vmatprep.subr.mxu0 0.0
    %169 = vmatpush1.msra.mxu0 0.0
    %170 = vmatprep.subr.mxu0 0.0
    %171 = vmatpush1.msra.mxu0 0.0
    %172 = vmatprep.subr.mxu0 0.0
    %173 = vmatpush1.msra.mxu0 0.0
    %174 = vmatprep.subr.mxu0 0.0
    %175 = vmatpush1.msra.mxu0 0.0
    %176 = vmatprep.subr.mxu0 0.0
    %177 = vmatpush1.msra.mxu0 0.0
    %178 = vmatprep.subr.mxu0 0.0
    %179 = vmatpush1.msra.mxu0 0.0
    %180 = vmatprep.subr.mxu0 0.0
    %181 = vmatpush1.msra.mxu0 0.0
    %182 = vmatprep.subr.mxu0 0.0
    %183 = vmatpush1.msra.mxu0 0.0
    %184 = vmatprep.subr.mxu0 0.0
    %185 = vmatpush1.msra.mxu0 0.0
    %186 = vmatprep.subr.mxu0 0.0
    %187 = vmatpush1.msra.mxu0 0.0
    %188 = vmatprep.subr.mxu0 0.0
    %189 = vmatpush1.msra.mxu0 0.0
    %190 = vmatprep.subr.mxu0 0.0
    %191 = vmatpush1.msra.mxu0 0.0
    %192 = vmatprep.subr.mxu0 0.0
    %193 = vmatpush1.msra.mxu0 0.0
    %194 = vmatprep.subr.mxu0 0.0
    %195 = vmatpush1.msra.mxu0 0.0
    %196 = vmatprep.subr.mxu0 0.0
    %197 = vmatpush1.msra.mxu0 0.0
    %198 = vmatprep.mubr.f32.mxu0 0.0
    %199 = vmatmul.mubr.f32.gmra.mrb[0].mxu0 %v110
    %v200 = vpop.f32.mrb[0].mxu0
    %v201 = vadd.f32 0.0, %v200
    %v202 = vpop.f32.mrb[0].mxu0
    %203 = vmatprep.mubr.f32.mxu0 0.0
    %204 = vmatmul.mubr.f32.gmra.mrb[0].mxu0 %v111
    %v205 = vpop.f32.mrb[0].mxu0
    %v206 = vadd.f32 0.0, %v205
    %v207 = vpop.f32.mrb[0].mxu0
    %208 = vmatprep.mubr.f32.mxu0 0.0
    %209 = vmatmul.mubr.f32.gmra.mrb[0].mxu0 %v112
    %v210 = vpop.f32.mrb[0].mxu0
    %v211 = vadd.f32 0.0, %v210
    %v212 = vpop.f32.mrb[0].mxu0
    %213 = vmatprep.mubr.f32.mxu0 0.0
    %214 = vmatmul.mubr.f32.gmra.mrb[0].mxu0 %v113
    %v215 = vpop.f32.mrb[0].mxu0
    %v216 = vadd.f32 0.0, %v215
    %v217 = vpop.f32.mrb[0].mxu0
    %218 = vmatprep.mubr.f32.mxu0 0.0
    %219 = vmatmul.mubr.f32.gmra.mrb[0].mxu0 %v114
    %v220 = vpop.f32.mrb[0].mxu0
    %v221 = vadd.f32 0.0, %v220
    %v222 = vpop.f32.mrb[0].mxu0
    %223 = vmatprep.mubr.f32.mxu0 0.0
    %224 = vmatmul.mubr.f32.gmra.mrb[0].mxu0 %v115
    %v225 = vpop.f32.mrb[0].mxu0
    %v226 = vadd.f32 0.0, %v225
    %v227 = vpop.f32.mrb[0].mxu0
    %228 = vmatprep.mubr.f32.mxu0 0.0
    %229 = vmatmul.mubr.f32.gmra.mrb[0].mxu0 %v116
    %v230 = vpop.f32.mrb[0].mxu0
    %v231 = vadd.f32 0.0, %v230
    %v232 = vpop.f32.mrb[0].mxu0
    %233 = vmatprep.mubr.f32.mxu0 0.0
    %234 = vmatmul.mubr.f32.gmra.mrb[0].mxu0 %v117
    %v235 = vpop.f32.mrb[0].mxu0
    %v236 = vadd.f32 0.0, %v235
    %v237 = vpop.f32.mrb[0].mxu0
    %238 = vdwg.mxu0
    %v239 = vld [vmem:[%s2] sm:$0xff]
    %v240 = vld [vmem:[%s2 + $0x8] sm:$0xff]
    %v241 = vld [vmem:[%s2 + $0x10] sm:$0xff]
    %v242 = vld [vmem:[%s2 + $0x18] sm:$0xff]
    %v243 = vld [vmem:[%s2 + $0x20] sm:$0xff]
    %v244 = vld [vmem:[%s2 + $0x28] sm:$0xff]
    %v245 = vld [vmem:[%s2 + $0x30] sm:$0xff]
    %v246 = vld [vmem:[%s2 + $0x38] sm:$0xff]
    %v247 = vld [vmem:[%s2 + $0x40] sm:$0xff]
    %v248 = vld [vmem:[%s2 + $0x48] sm:$0xff]
    %v249 = vld [vmem:[%s2 + $0x50] sm:$0xff]
    %v250 = vld [vmem:[%s2 + $0x58] sm:$0xff]
    %v251 = vld [vmem:[%s2 + $0x60] sm:$0xff]
    %v252 = vld [vmem:[%s2 + $0x68] sm:$0xff]
    %v253 = vld [vmem:[%s2 + $0x70] sm:$0xff]
    %v254 = vld [vmem:[%s2 + $0x78] sm:$0xff]
    %v255 = vld [vmem:[%s4] sm:$0xf]
    %v257 = vlaneseq
    %v258 = vshrl.u32 %v257, 7
    %v259 = vsub.s32 0, %v258
    %v260 = vrot.slane %v255, %v259
    %v261 = vlaneseq
    %v262 = vshrl.u32 %v261, 7
    %v263 = vsub.s32 1, %v262
    %v264 = vrot.slane %v255, %v263
    %v265 = vlaneseq
    %v266 = vshrl.u32 %v265, 7
    %v267 = vsub.s32 2, %v266
    %v268 = vrot.slane %v255, %v267
    %v269 = vlaneseq
    %v270 = vshrl.u32 %v269, 7
    %v271 = vsub.s32 3, %v270
    %v272 = vrot.slane %v255, %v271
    %vm277 = vcmask 261120
    %v279 = vsel %vm277, %v201, 0
    %v282 = vsel %vm277, %v206, 0
    %v285 = vsel %vm277, %v211, 0
    %v288 = vsel %vm277, %v216, 0
    %v291 = vsel %vm277, %v221, 0
    %v294 = vsel %vm277, %v226, 0
    %v297 = vsel %vm277, %v231, 0
    %v300 = vsel %vm277, %v236, 0
    %302 = vmatprep.subr.mxu0 %v240
    %303 = vmatpush1.msra.mxu0 %v239
    %304 = vmatprep.subr.mxu0 %v244
    %305 = vmatpush1.msra.mxu0 %v243
    %306 = vmatprep.subr.mxu0 %v248
    %307 = vmatpush1.msra.mxu0 %v247
    %308 = vmatprep.subr.mxu0 %v252
    %309 = vmatpush1.msra.mxu0 %v251
    %310 = vmatprep.subr.mxu0 0.0
    %311 = vmatpush1.msra.mxu0 0.0
    %312 = vmatprep.subr.mxu0 0.0
    %313 = vmatpush1.msra.mxu0 0.0
    %314 = vmatprep.subr.mxu0 0.0
    %315 = vmatpush1.msra.mxu0 0.0
    %316 = vmatprep.subr.mxu0 0.0
    %317 = vmatpush1.msra.mxu0 0.0
    %318 = vmatprep.subr.mxu0 0.0
    %319 = vmatpush1.msra.mxu0 0.0
    %320 = vmatprep.subr.mxu0 0.0
    %321 = vmatpush1.msra.mxu0 0.0
    %322 = vmatprep.subr.mxu0 0.0
    %323 = vmatpush1.msra.mxu0 0.0
    %324 = vmatprep.subr.mxu0 0.0
    %325 = vmatpush1.msra.mxu0 0.0
    %326 = vmatprep.subr.mxu0 0.0
    %327 = vmatpush1.msra.mxu0 0.0
    %328 = vmatprep.subr.mxu0 0.0
    %329 = vmatpush1.msra.mxu0 0.0
    %330 = vmatprep.subr.mxu0 0.0
    %331 = vmatpush1.msra.mxu0 0.0
    %332 = vmatprep.subr.mxu0 0.0
    %333 = vmatpush1.msra.mxu0 0.0
    %334 = vmatprep.subr.mxu0 0.0
    %335 = vmatpush1.msra.mxu0 0.0
    %336 = vmatprep.subr.mxu0 0.0
    %337 = vmatpush1.msra.mxu0 0.0
    %338 = vmatprep.subr.mxu0 0.0
    %339 = vmatpush1.msra.mxu0 0.0
    %340 = vmatprep.subr.mxu0 0.0
    %341 = vmatpush1.msra.mxu0 0.0
    %342 = vmatprep.subr.mxu0 0.0
    %343 = vmatpush1.msra.mxu0 0.0
    %344 = vmatprep.subr.mxu0 0.0
    %345 = vmatpush1.msra.mxu0 0.0
    %346 = vmatprep.subr.mxu0 0.0
    %347 = vmatpush1.msra.mxu0 0.0
    %348 = vmatprep.subr.mxu0 0.0
    %349 = vmatpush1.msra.mxu0 0.0
    %350 = vmatprep.subr.mxu0 0.0
    %351 = vmatpush1.msra.mxu0 0.0
    %352 = vmatprep.subr.mxu0 0.0
    %353 = vmatpush1.msra.mxu0 0.0
    %354 = vmatprep.subr.mxu0 0.0
    %355 = vmatpush1.msra.mxu0 0.0
    %356 = vmatprep.subr.mxu0 0.0
    %357 = vmatpush1.msra.mxu0 0.0
    %358 = vmatprep.subr.mxu0 0.0
    %359 = vmatpush1.msra.mxu0 0.0
    %360 = vmatprep.subr.mxu0 0.0
    %361 = vmatpush1.msra.mxu0 0.0
    %362 = vmatprep.subr.mxu0 0.0
    %363 = vmatpush1.msra.mxu0 0.0
    %364 = vmatprep.subr.mxu0 0.0
    %365 = vmatpush1.msra.mxu0 0.0
    %366 = vmatprep.mubr.f32.mxu0 0.0
    %367 = vmatmul.mubr.f32.gmra.mrb[0].mxu0 %v279
    %v368 = vpop.f32.mrb[0].mxu0
    %v369 = vadd.f32 %v260, %v368
    %v370 = vpop.f32.mrb[0].mxu0
    %v371 = vadd.f32 %v264, %v370
    %372 = vmatprep.mubr.f32.mxu0 0.0
    %373 = vmatmul.mubr.f32.gmra.mrb[0].mxu0 %v282
    %v374 = vpop.f32.mrb[0].mxu0
    %v375 = vadd.f32 %v260, %v374
    %v376 = vpop.f32.mrb[0].mxu0
    %v377 = vadd.f32 %v264, %v376
    %378 = vmatprep.mubr.f32.mxu0 0.0
    %379 = vmatmul.mubr.f32.gmra.mrb[0].mxu0 %v285
    %v380 = vpop.f32.mrb[0].mxu0
    %v381 = vadd.f32 %v260, %v380
    %v382 = vpop.f32.mrb[0].mxu0
    %v383 = vadd.f32 %v264, %v382
    %384 = vmatprep.mubr.f32.mxu0 0.0
    %385 = vmatmul.mubr.f32.gmra.mrb[0].mxu0 %v288
    %v386 = vpop.f32.mrb[0].mxu0
    %v387 = vadd.f32 %v260, %v386
    %v388 = vpop.f32.mrb[0].mxu0
    %v389 = vadd.f32 %v264, %v388
    %390 = vmatprep.mubr.f32.mxu0 0.0
    %391 = vmatmul.mubr.f32.gmra.mrb[0].mxu0 %v291
    %v392 = vpop.f32.mrb[0].mxu0
    %v393 = vadd.f32 %v260, %v392
    %v394 = vpop.f32.mrb[0].mxu0
    %v395 = vadd.f32 %v264, %v394
    %396 = vmatprep.mubr.f32.mxu0 0.0
    %397 = vmatmul.mubr.f32.gmra.mrb[0].mxu0 %v294
    %v398 = vpop.f32.mrb[0].mxu0
    %v399 = vadd.f32 %v260, %v398
    %v400 = vpop.f32.mrb[0].mxu0
    %v401 = vadd.f32 %v264, %v400
    %402 = vmatprep.mubr.f32.mxu0 0.0
    %403 = vmatmul.mubr.f32.gmra.mrb[0].mxu0 %v297
    %v404 = vpop.f32.mrb[0].mxu0
    %v405 = vadd.f32 %v260, %v404
    %v406 = vpop.f32.mrb[0].mxu0
    %v407 = vadd.f32 %v264, %v406
    %408 = vmatprep.mubr.f32.mxu0 0.0
    %409 = vmatmul.mubr.f32.gmra.mrb[0].mxu0 %v300
    %v410 = vpop.f32.mrb[0].mxu0
    %v411 = vadd.f32 %v260, %v410
    %v412 = vpop.f32.mrb[0].mxu0
    %v413 = vadd.f32 %v264, %v412
    %414 = vdwg.mxu0
    %415 = vmatprep.subr.mxu0 %v242
    %416 = vmatpush1.msra.mxu0 %v241
    %417 = vmatprep.subr.mxu0 %v246
    %418 = vmatpush1.msra.mxu0 %v245
    %419 = vmatprep.subr.mxu0 %v250
    %420 = vmatpush1.msra.mxu0 %v249
    %421 = vmatprep.subr.mxu0 %v254
    %422 = vmatpush1.msra.mxu0 %v253
    %423 = vmatprep.subr.mxu0 0.0
    %424 = vmatpush1.msra.mxu0 0.0
    %425 = vmatprep.subr.mxu0 0.0
    %426 = vmatpush1.msra.mxu0 0.0
    %427 = vmatprep.subr.mxu0 0.0
    %428 = vmatpush1.msra.mxu0 0.0
    %429 = vmatprep.subr.mxu0 0.0
    %430 = vmatpush1.msra.mxu0 0.0
    %431 = vmatprep.subr.mxu0 0.0
    %432 = vmatpush1.msra.mxu0 0.0
    %433 = vmatprep.subr.mxu0 0.0
    %434 = vmatpush1.msra.mxu0 0.0
    %435 = vmatprep.subr.mxu0 0.0
    %436 = vmatpush1.msra.mxu0 0.0
    %437 = vmatprep.subr.mxu0 0.0
    %438 = vmatpush1.msra.mxu0 0.0
    %439 = vmatprep.subr.mxu0 0.0
    %440 = vmatpush1.msra.mxu0 0.0
    %441 = vmatprep.subr.mxu0 0.0
    %442 = vmatpush1.msra.mxu0 0.0
    %443 = vmatprep.subr.mxu0 0.0
    %444 = vmatpush1.msra.mxu0 0.0
    %445 = vmatprep.subr.mxu0 0.0
    %446 = vmatpush1.msra.mxu0 0.0
    %447 = vmatprep.subr.mxu0 0.0
    %448 = vmatpush1.msra.mxu0 0.0
    %449 = vmatprep.subr.mxu0 0.0
    %450 = vmatpush1.msra.mxu0 0.0
    %451 = vmatprep.subr.mxu0 0.0
    %452 = vmatpush1.msra.mxu0 0.0
    %453 = vmatprep.subr.mxu0 0.0
    %454 = vmatpush1.msra.mxu0 0.0
    %455 = vmatprep.subr.mxu0 0.0
    %456 = vmatpush1.msra.mxu0 0.0
    %457 = vmatprep.subr.mxu0 0.0
    %458 = vmatpush1.msra.mxu0 0.0
    %459 = vmatprep.subr.mxu0 0.0
    %460 = vmatpush1.msra.mxu0 0.0
    %461 = vmatprep.subr.mxu0 0.0
    %462 = vmatpush1.msra.mxu0 0.0
    %463 = vmatprep.subr.mxu0 0.0
    %464 = vmatpush1.msra.mxu0 0.0
    %465 = vmatprep.subr.mxu0 0.0
    %466 = vmatpush1.msra.mxu0 0.0
    %467 = vmatprep.subr.mxu0 0.0
    %468 = vmatpush1.msra.mxu0 0.0
    %469 = vmatprep.subr.mxu0 0.0
    %470 = vmatpush1.msra.mxu0 0.0
    %471 = vmatprep.subr.mxu0 0.0
    %472 = vmatpush1.msra.mxu0 0.0
    %473 = vmatprep.subr.mxu0 0.0
    %474 = vmatpush1.msra.mxu0 0.0
    %475 = vmatprep.subr.mxu0 0.0
    %476 = vmatpush1.msra.mxu0 0.0
    %477 = vmatprep.subr.mxu0 0.0
    %478 = vmatpush1.msra.mxu0 0.0
    %479 = vmatprep.mubr.f32.mxu0 0.0
    %480 = vmatmul.mubr.f32.gmra.mrb[0].mxu0 %v279
    %v481 = vpop.f32.mrb[0].mxu0
    %v482 = vadd.f32 %v268, %v481
    %v483 = vpop.f32.mrb[0].mxu0
    %v484 = vadd.f32 %v272, %v483
    %485 = vmatprep.mubr.f32.mxu0 0.0
    %486 = vmatmul.mubr.f32.gmra.mrb[0].mxu0 %v282
    %v487 = vpop.f32.mrb[0].mxu0
    %v488 = vadd.f32 %v268, %v487
    %v489 = vpop.f32.mrb[0].mxu0
    %v490 = vadd.f32 %v272, %v489
    %491 = vmatprep.mubr.f32.mxu0 0.0
    %492 = vmatmul.mubr.f32.gmra.mrb[0].mxu0 %v285
    %v493 = vpop.f32.mrb[0].mxu0
    %v494 = vadd.f32 %v268, %v493
    %v495 = vpop.f32.mrb[0].mxu0
    %v496 = vadd.f32 %v272, %v495
    %497 = vmatprep.mubr.f32.mxu0 0.0
    %498 = vmatmul.mubr.f32.gmra.mrb[0].mxu0 %v288
    %v499 = vpop.f32.mrb[0].mxu0
    %v500 = vadd.f32 %v268, %v499
    %v501 = vpop.f32.mrb[0].mxu0
    %v502 = vadd.f32 %v272, %v501
    %503 = vmatprep.mubr.f32.mxu0 0.0
    %504 = vmatmul.mubr.f32.gmra.mrb[0].mxu0 %v291
    %v505 = vpop.f32.mrb[0].mxu0
    %v506 = vadd.f32 %v268, %v505
    %v507 = vpop.f32.mrb[0].mxu0
    %v508 = vadd.f32 %v272, %v507
    %509 = vmatprep.mubr.f32.mxu0 0.0
    %510 = vmatmul.mubr.f32.gmra.mrb[0].mxu0 %v294
    %v511 = vpop.f32.mrb[0].mxu0
    %v512 = vadd.f32 %v268, %v511
    %v513 = vpop.f32.mrb[0].mxu0
    %v514 = vadd.f32 %v272, %v513
    %515 = vmatprep.mubr.f32.mxu0 0.0
    %516 = vmatmul.mubr.f32.gmra.mrb[0].mxu0 %v297
    %v517 = vpop.f32.mrb[0].mxu0
    %v518 = vadd.f32 %v268, %v517
    %v519 = vpop.f32.mrb[0].mxu0
    %v520 = vadd.f32 %v272, %v519
    %521 = vmatprep.mubr.f32.mxu0 0.0
    %522 = vmatmul.mubr.f32.gmra.mrb[0].mxu0 %v300
    %v523 = vpop.f32.mrb[0].mxu0
    %v524 = vadd.f32 %v268, %v523
    %v525 = vpop.f32.mrb[0].mxu0
    %v526 = vadd.f32 %v272, %v525
    %527 = vdwg.mxu0
    %v528 = vld [vmem:[#allocation2] sm:$0xff]
    %v529 = vld [vmem:[#allocation2 + $0x8] sm:$0xff]
    %v530 = vld [vmem:[#allocation2 + $0x10] sm:$0xff]
    %v531 = vld [vmem:[#allocation2 + $0x18] sm:$0xff]
    %v532 = vld [vmem:[#allocation2 + $0x20] sm:$0xff]
    %v533 = vld [vmem:[#allocation2 + $0x28] sm:$0xff]
    %v534 = vld [vmem:[#allocation2 + $0x30] sm:$0xff]
    %v535 = vld [vmem:[#allocation2 + $0x38] sm:$0xff]
    %v536 = vld [vmem:[#allocation2 + $0x40] sm:$0xff]
    %v537 = vld [vmem:[#allocation2 + $0x48] sm:$0xff]
    %v538 = vld [vmem:[#allocation2 + $0x50] sm:$0xff]
    %v539 = vld [vmem:[#allocation2 + $0x58] sm:$0xff]
    %v540 = vld [vmem:[#allocation2 + $0x60] sm:$0xff]
    %v541 = vld [vmem:[#allocation2 + $0x68] sm:$0xff]
    %v542 = vld [vmem:[#allocation2 + $0x70] sm:$0xff]
    %v543 = vld [vmem:[#allocation2 + $0x78] sm:$0xff]
    %v544 = vld [vmem:[#allocation2 + $0x80] sm:$0xff]
    %v545 = vld [vmem:[#allocation2 + $0x88] sm:$0xff]
    %v546 = vld [vmem:[#allocation2 + $0x90] sm:$0xff]
    %v547 = vld [vmem:[#allocation2 + $0x98] sm:$0xff]
    %v548 = vld [vmem:[#allocation2 + $0xa0] sm:$0xff]
    %v549 = vld [vmem:[#allocation2 + $0xa8] sm:$0xff]
    %v550 = vld [vmem:[#allocation2 + $0xb0] sm:$0xff]
    %v551 = vld [vmem:[#allocation2 + $0xb8] sm:$0xff]
    %v552 = vld [vmem:[#allocation2 + $0xc0] sm:$0xff]
    %v553 = vld [vmem:[#allocation2 + $0xc8] sm:$0xff]
    %v554 = vld [vmem:[#allocation2 + $0xd0] sm:$0xff]
    %v555 = vld [vmem:[#allocation2 + $0xd8] sm:$0xff]
    %v556 = vld [vmem:[#allocation2 + $0xe0] sm:$0xff]
    %v557 = vld [vmem:[#allocation2 + $0xe8] sm:$0xff]
    %v558 = vld [vmem:[#allocation2 + $0xf0] sm:$0xff]
    %v559 = vld [vmem:[#allocation2 + $0xf8] sm:$0xff]
    %v560 = vld [vmem:[#allocation2 + $0x100] sm:$0xff]
    %v561 = vld [vmem:[#allocation2 + $0x108] sm:$0xff]
    %v562 = vld [vmem:[#allocation2 + $0x110] sm:$0xff]
    %v563 = vld [vmem:[#allocation2 + $0x118] sm:$0xff]
    %v564 = vld [vmem:[#allocation2 + $0x120] sm:$0xff]
    %v565 = vld [vmem:[#allocation2 + $0x128] sm:$0xff]
    %v566 = vld [vmem:[#allocation2 + $0x130] sm:$0xff]
    %v567 = vld [vmem:[#allocation2 + $0x138] sm:$0xff]
    %v568 = vld [vmem:[#allocation2 + $0x140] sm:$0xff]
    %v569 = vld [vmem:[#allocation2 + $0x148] sm:$0xff]
    %v570 = vld [vmem:[#allocation2 + $0x150] sm:$0xff]
    %v571 = vld [vmem:[#allocation2 + $0x158] sm:$0xff]
    %v572 = vld [vmem:[#allocation2 + $0x160] sm:$0xff]
    %v573 = vld [vmem:[#allocation2 + $0x168] sm:$0xff]
    %v574 = vld [vmem:[#allocation2 + $0x170] sm:$0xff]
    %v575 = vld [vmem:[#allocation2 + $0x178] sm:$0xff]
    %v576 = vld [vmem:[#allocation2 + $0x180] sm:$0xff]
    %v577 = vld [vmem:[#allocation2 + $0x188] sm:$0xff]
    %v578 = vld [vmem:[#allocation2 + $0x190] sm:$0xff]
    %v579 = vld [vmem:[#allocation2 + $0x198] sm:$0xff]
    %v580 = vld [vmem:[#allocation2 + $0x1a0] sm:$0xff]
    %v581 = vld [vmem:[#allocation2 + $0x1a8] sm:$0xff]
    %v582 = vld [vmem:[#allocation2 + $0x1b0] sm:$0xff]
    %v583 = vld [vmem:[#allocation2 + $0x1b8] sm:$0xff]
    %v584 = vld [vmem:[#allocation2 + $0x1c0] sm:$0xff]
    %v585 = vld [vmem:[#allocation2 + $0x1c8] sm:$0xff]
    %v586 = vld [vmem:[#allocation2 + $0x1d0] sm:$0xff]
    %v587 = vld [vmem:[#allocation2 + $0x1d8] sm:$0xff]
    %v588 = vld [vmem:[#allocation2 + $0x1e0] sm:$0xff]
    %v589 = vld [vmem:[#allocation2 + $0x1e8] sm:$0xff]
    %v590 = vld [vmem:[#allocation2 + $0x1f0] sm:$0xff]
    %v591 = vld [vmem:[#allocation2 + $0x1f8] sm:$0xff]
    %v592 = vld [vmem:[#allocation4] sm:$0xff]
    %v593 = vld [vmem:[#allocation4 + $0x8] sm:$0xff]
    %v594 = vld [vmem:[#allocation4 + $0x10] sm:$0xff]
    %v595 = vld [vmem:[#allocation4 + $0x18] sm:$0xff]
    %v596 = vld [vmem:[#allocation4 + $0x20] sm:$0xff]
    %v597 = vld [vmem:[#allocation4 + $0x28] sm:$0xff]
    %v598 = vld [vmem:[#allocation4 + $0x30] sm:$0xff]
    %v599 = vld [vmem:[#allocation4 + $0x38] sm:$0xff]
    %v600 = vld [vmem:[#allocation4 + $0x40] sm:$0xff]
    %v601 = vld [vmem:[#allocation4 + $0x48] sm:$0xff]
    %v602 = vld [vmem:[#allocation4 + $0x50] sm:$0xff]
    %v603 = vld [vmem:[#allocation4 + $0x58] sm:$0xff]
    %v604 = vld [vmem:[#allocation4 + $0x60] sm:$0xff]
    %v605 = vld [vmem:[#allocation4 + $0x68] sm:$0xff]
    %v606 = vld [vmem:[#allocation4 + $0x70] sm:$0xff]
    %v607 = vld [vmem:[#allocation4 + $0x78] sm:$0xff]
    %v608 = vld [vmem:[#allocation4 + $0x80] sm:$0xff]
    %v609 = vld [vmem:[#allocation4 + $0x88] sm:$0xff]
    %v610 = vld [vmem:[#allocation4 + $0x90] sm:$0xff]
    %v611 = vld [vmem:[#allocation4 + $0x98] sm:$0xff]
    %v612 = vld [vmem:[#allocation4 + $0xa0] sm:$0xff]
    %v613 = vld [vmem:[#allocation4 + $0xa8] sm:$0xff]
    %v614 = vld [vmem:[#allocation4 + $0xb0] sm:$0xff]
    %v615 = vld [vmem:[#allocation4 + $0xb8] sm:$0xff]
    %v616 = vld [vmem:[#allocation4 + $0xc0] sm:$0xff]
    %v617 = vld [vmem:[#allocation4 + $0xc8] sm:$0xff]
    %v618 = vld [vmem:[#allocation4 + $0xd0] sm:$0xff]
    %v619 = vld [vmem:[#allocation4 + $0xd8] sm:$0xff]
    %v620 = vld [vmem:[#allocation4 + $0xe0] sm:$0xff]
    %v621 = vld [vmem:[#allocation4 + $0xe8] sm:$0xff]
    %v622 = vld [vmem:[#allocation4 + $0xf0] sm:$0xff]
    %v623 = vld [vmem:[#allocation4 + $0xf8] sm:$0xff]
    %v624 = vld [vmem:[#allocation4 + $0x100] sm:$0xff]
    %v625 = vld [vmem:[#allocation4 + $0x108] sm:$0xff]
    %v626 = vld [vmem:[#allocation4 + $0x110] sm:$0xff]
    %v627 = vld [vmem:[#allocation4 + $0x118] sm:$0xff]
    %v628 = vld [vmem:[#allocation4 + $0x120] sm:$0xff]
    %v629 = vld [vmem:[#allocation4 + $0x128] sm:$0xff]
    %v630 = vld [vmem:[#allocation4 + $0x130] sm:$0xff]
    %v631 = vld [vmem:[#allocation4 + $0x138] sm:$0xff]
    %v632 = vld [vmem:[#allocation4 + $0x140] sm:$0xff]
    %v633 = vld [vmem:[#allocation4 + $0x148] sm:$0xff]
    %v634 = vld [vmem:[#allocation4 + $0x150] sm:$0xff]
    %v635 = vld [vmem:[#allocation4 + $0x158] sm:$0xff]
    %v636 = vld [vmem:[#allocation4 + $0x160] sm:$0xff]
    %v637 = vld [vmem:[#allocation4 + $0x168] sm:$0xff]
    %v638 = vld [vmem:[#allocation4 + $0x170] sm:$0xff]
    %v639 = vld [vmem:[#allocation4 + $0x178] sm:$0xff]
    %v640 = vld [vmem:[#allocation4 + $0x180] sm:$0xff]
    %v641 = vld [vmem:[#allocation4 + $0x188] sm:$0xff]
    %v642 = vld [vmem:[#allocation4 + $0x190] sm:$0xff]
    %v643 = vld [vmem:[#allocation4 + $0x198] sm:$0xff]
    %v644 = vld [vmem:[#allocation4 + $0x1a0] sm:$0xff]
    %v645 = vld [vmem:[#allocation4 + $0x1a8] sm:$0xff]
    %v646 = vld [vmem:[#allocation4 + $0x1b0] sm:$0xff]
    %v647 = vld [vmem:[#allocation4 + $0x1b8] sm:$0xff]
    %v648 = vld [vmem:[#allocation4 + $0x1c0] sm:$0xff]
    %v649 = vld [vmem:[#allocation4 + $0x1c8] sm:$0xff]
    %v650 = vld [vmem:[#allocation4 + $0x1d0] sm:$0xff]
    %v651 = vld [vmem:[#allocation4 + $0x1d8] sm:$0xff]
    %v652 = vld [vmem:[#allocation4 + $0x1e0] sm:$0xff]
    %v653 = vld [vmem:[#allocation4 + $0x1e8] sm:$0xff]
    %v654 = vld [vmem:[#allocation4 + $0x1f0] sm:$0xff]
    %v655 = vld [vmem:[#allocation4 + $0x1f8] sm:$0xff]
    %v656 = vld [vmem:[#allocation4 + $0x200] sm:$0xff]
    %v657 = vld [vmem:[#allocation4 + $0x208] sm:$0xff]
    %v658 = vld [vmem:[#allocation4 + $0x210] sm:$0xff]
    %v659 = vld [vmem:[#allocation4 + $0x218] sm:$0xff]
    %v660 = vld [vmem:[#allocation4 + $0x220] sm:$0xff]
    %v661 = vld [vmem:[#allocation4 + $0x228] sm:$0xff]
    %v662 = vld [vmem:[#allocation4 + $0x230] sm:$0xff]
    %v663 = vld [vmem:[#allocation4 + $0x238] sm:$0xff]
    %v664 = vld [vmem:[#allocation4 + $0x240] sm:$0xff]
    %v665 = vld [vmem:[#allocation4 + $0x248] sm:$0xff]
    %v666 = vld [vmem:[#allocation4 + $0x250] sm:$0xff]
    %v667 = vld [vmem:[#allocation4 + $0x258] sm:$0xff]
    %v668 = vld [vmem:[#allocation4 + $0x260] sm:$0xff]
    %v669 = vld [vmem:[#allocation4 + $0x268] sm:$0xff]
    %v670 = vld [vmem:[#allocation4 + $0x270] sm:$0xff]
    %v671 = vld [vmem:[#allocation4 + $0x278] sm:$0xff]
    %v672 = vld [vmem:[#allocation4 + $0x280] sm:$0xff]
    %v673 = vld [vmem:[#allocation4 + $0x288] sm:$0xff]
    %v674 = vld [vmem:[#allocation4 + $0x290] sm:$0xff]
    %v675 = vld [vmem:[#allocation4 + $0x298] sm:$0xff]
    %v676 = vld [vmem:[#allocation4 + $0x2a0] sm:$0xff]
    %v677 = vld [vmem:[#allocation4 + $0x2a8] sm:$0xff]
    %v678 = vld [vmem:[#allocation4 + $0x2b0] sm:$0xff]
    %v679 = vld [vmem:[#allocation4 + $0x2b8] sm:$0xff]
    %v680 = vld [vmem:[#allocation4 + $0x2c0] sm:$0xff]
    %v681 = vld [vmem:[#allocation4 + $0x2c8] sm:$0xff]
    %v682 = vld [vmem:[#allocation4 + $0x2d0] sm:$0xff]
    %v683 = vld [vmem:[#allocation4 + $0x2d8] sm:$0xff]
    %v684 = vld [vmem:[#allocation4 + $0x2e0] sm:$0xff]
    %v685 = vld [vmem:[#allocation4 + $0x2e8] sm:$0xff]
    %v686 = vld [vmem:[#allocation4 + $0x2f0] sm:$0xff]
    %v687 = vld [vmem:[#allocation4 + $0x2f8] sm:$0xff]
    %v688 = vld [vmem:[#allocation4 + $0x300] sm:$0xff]
    %v689 = vld [vmem:[#allocation4 + $0x308] sm:$0xff]
    %v690 = vld [vmem:[#allocation4 + $0x310] sm:$0xff]
    %v691 = vld [vmem:[#allocation4 + $0x318] sm:$0xff]
    %v692 = vld [vmem:[#allocation4 + $0x320] sm:$0xff]
    %v693 = vld [vmem:[#allocation4 + $0x328] sm:$0xff]
    %v694 = vld [vmem:[#allocation4 + $0x330] sm:$0xff]
    %v695 = vld [vmem:[#allocation4 + $0x338] sm:$0xff]
    %v696 = vld [vmem:[#allocation4 + $0x340] sm:$0xff]
    %v697 = vld [vmem:[#allocation4 + $0x348] sm:$0xff]
    %v698 = vld [vmem:[#allocation4 + $0x350] sm:$0xff]
    %v699 = vld [vmem:[#allocation4 + $0x358] sm:$0xff]
    %v700 = vld [vmem:[#allocation4 + $0x360] sm:$0xff]
    %v701 = vld [vmem:[#allocation4 + $0x368] sm:$0xff]
    %v702 = vld [vmem:[#allocation4 + $0x370] sm:$0xff]
    %v703 = vld [vmem:[#allocation4 + $0x378] sm:$0xff]
    %v704 = vld [vmem:[#allocation4 + $0x380] sm:$0xff]
    %v705 = vld [vmem:[#allocation4 + $0x388] sm:$0xff]
    %v706 = vld [vmem:[#allocation4 + $0x390] sm:$0xff]
    %v707 = vld [vmem:[#allocation4 + $0x398] sm:$0xff]
    %v708 = vld [vmem:[#allocation4 + $0x3a0] sm:$0xff]
    %v709 = vld [vmem:[#allocation4 + $0x3a8] sm:$0xff]
    %v710 = vld [vmem:[#allocation4 + $0x3b0] sm:$0xff]
    %v711 = vld [vmem:[#allocation4 + $0x3b8] sm:$0xff]
    %v712 = vld [vmem:[#allocation4 + $0x3c0] sm:$0xff]
    %v713 = vld [vmem:[#allocation4 + $0x3c8] sm:$0xff]
    %v714 = vld [vmem:[#allocation4 + $0x3d0] sm:$0xff]
    %v715 = vld [vmem:[#allocation4 + $0x3d8] sm:$0xff]
    %v716 = vld [vmem:[#allocation4 + $0x3e0] sm:$0xff]
    %v717 = vld [vmem:[#allocation4 + $0x3e8] sm:$0xff]
    %v718 = vld [vmem:[#allocation4 + $0x3f0] sm:$0xff]
    %v719 = vld [vmem:[#allocation4 + $0x3f8] sm:$0xff]
    %v720 = vld [vmem:[%s6] sm:$0xf]
    %721 = vmatprep.subr.mxu0 %v529
    %722 = vmatpush1.msra.mxu0 %v528
    %723 = vmatprep.subr.mxu0 %v533
    %724 = vmatpush1.msra.mxu0 %v532
    %725 = vmatprep.subr.mxu0 %v537
    %726 = vmatpush1.msra.mxu0 %v536
    %727 = vmatprep.subr.mxu0 %v541
    %728 = vmatpush1.msra.mxu0 %v540
    %729 = vmatprep.subr.mxu0 %v545
    %730 = vmatpush1.msra.mxu0 %v544
    %731 = vmatprep.subr.mxu0 %v549
    %732 = vmatpush1.msra.mxu0 %v548
    %733 = vmatprep.subr.mxu0 %v553
    %734 = vmatpush1.msra.mxu0 %v552
    %735 = vmatprep.subr.mxu0 %v557
    %736 = vmatpush1.msra.mxu0 %v556
    %737 = vmatprep.subr.mxu0 %v561
    %738 = vmatpush1.msra.mxu0 %v560
    %739 = vmatprep.subr.mxu0 %v565
    %740 = vmatpush1.msra.mxu0 %v564
    %741 = vmatprep.subr.mxu0 %v569
    %742 = vmatpush1.msra.mxu0 %v568
    %743 = vmatprep.subr.mxu0 %v573
    %744 = vmatpush1.msra.mxu0 %v572
    %745 = vmatprep.subr.mxu0 %v577
    %746 = vmatpush1.msra.mxu0 %v576
    %747 = vmatprep.subr.mxu0 %v581
    %748 = vmatpush1.msra.mxu0 %v580
    %749 = vmatprep.subr.mxu0 %v585
    %750 = vmatpush1.msra.mxu0 %v584
    %751 = vmatprep.subr.mxu0 %v589
    %752 = vmatpush1.msra.mxu0 %v588
    %753 = vmatprep.subr.mxu0 0.0
    %754 = vmatpush1.msra.mxu0 0.0
    %755 = vmatprep.subr.mxu0 0.0
    %756 = vmatpush1.msra.mxu0 0.0
    %757 = vmatprep.subr.mxu0 0.0
    %758 = vmatpush1.msra.mxu0 0.0
    %759 = vmatprep.subr.mxu0 0.0
    %760 = vmatpush1.msra.mxu0 0.0
    %761 = vmatprep.subr.mxu0 0.0
    %762 = vmatpush1.msra.mxu0 0.0
    %763 = vmatprep.subr.mxu0 0.0
    %764 = vmatpush1.msra.mxu0 0.0
    %765 = vmatprep.subr.mxu0 0.0
    %766 = vmatpush1.msra.mxu0 0.0
    %767 = vmatprep.subr.mxu0 0.0
    %768 = vmatpush1.msra.mxu0 0.0
    %769 = vmatprep.subr.mxu0 0.0
    %770 = vmatpush1.msra.mxu0 0.0
    %771 = vmatprep.subr.mxu0 0.0
    %772 = vmatpush1.msra.mxu0 0.0
    %773 = vmatprep.subr.mxu0 0.0
    %774 = vmatpush1.msra.mxu0 0.0
    %775 = vmatprep.subr.mxu0 0.0
    %776 = vmatpush1.msra.mxu0 0.0
    %777 = vmatprep.subr.mxu0 0.0
    %778 = vmatpush1.msra.mxu0 0.0
    %779 = vmatprep.subr.mxu0 0.0
    %780 = vmatpush1.msra.mxu0 0.0
    %781 = vmatprep.subr.mxu0 0.0
    %782 = vmatpush1.msra.mxu0 0.0
    %783 = vmatprep.subr.mxu0 0.0
    %784 = vmatpush1.msra.mxu0 0.0
    %785 = vmatprep.mubr.f32.mxu0 0.0
    %786 = vmatmul.mubr.f32.gmra.mrb[0].mxu0 0.0
    %v787 = vpop.f32.mrb[0].mxu0
    %v788 = vadd.f32 0.0, %v787
    %v789 = vpop.f32.mrb[0].mxu0
    %v790 = vadd.f32 0.0, %v789
    %791 = vdwg.mxu0
    %792 = vmatprep.subr.mxu0 %v531
    %793 = vmatpush1.msra.mxu0 %v530
    %794 = vmatprep.subr.mxu0 %v535
    %795 = vmatpush1.msra.mxu0 %v534
    %796 = vmatprep.subr.mxu0 %v539
    %797 = vmatpush1.msra.mxu0 %v538
    %798 = vmatprep.subr.mxu0 %v543
    %799 = vmatpush1.msra.mxu0 %v542
    %800 = vmatprep.subr.mxu0 %v547
    %801 = vmatpush1.msra.mxu0 %v546
    %802 = vmatprep.subr.mxu0 %v551
    %803 = vmatpush1.msra.mxu0 %v550
    %804 = vmatprep.subr.mxu0 %v555
    %805 = vmatpush1.msra.mxu0 %v554
    %806 = vmatprep.subr.mxu0 %v559
    %807 = vmatpush1.msra.mxu0 %v558
    %808 = vmatprep.subr.mxu0 %v563
    %809 = vmatpush1.msra.mxu0 %v562
    %810 = vmatprep.subr.mxu0 %v567
    %811 = vmatpush1.msra.mxu0 %v566
    %812 = vmatprep.subr.mxu0 %v571
    %813 = vmatpush1.msra.mxu0 %v570
    %814 = vmatprep.subr.mxu0 %v575
    %815 = vmatpush1.msra.mxu0 %v574
    %816 = vmatprep.subr.mxu0 %v579
    %817 = vmatpush1.msra.mxu0 %v578
    %818 = vmatprep.subr.mxu0 %v583
    %819 = vmatpush1.msra.mxu0 %v582
    %820 = vmatprep.subr.mxu0 %v587
    %821 = vmatpush1.msra.mxu0 %v586
    %822 = vmatprep.subr.mxu0 %v591
    %823 = vmatpush1.msra.mxu0 %v590
    %824 = vmatprep.subr.mxu0 0.0
    %825 = vmatpush1.msra.mxu0 0.0
    %826 = vmatprep.subr.mxu0 0.0
    %827 = vmatpush1.msra.mxu0 0.0
    %828 = vmatprep.subr.mxu0 0.0
    %829 = vmatpush1.msra.mxu0 0.0
    %830 = vmatprep.subr.mxu0 0.0
    %831 = vmatpush1.msra.mxu0 0.0
    %832 = vmatprep.subr.mxu0 0.0
    %833 = vmatpush1.msra.mxu0 0.0
    %834 = vmatprep.subr.mxu0 0.0
    %835 = vmatpush1.msra.mxu0 0.0
    %836 = vmatprep.subr.mxu0 0.0
    %837 = vmatpush1.msra.mxu0 0.0
    %838 = vmatprep.subr.mxu0 0.0
    %839 = vmatpush1.msra.mxu0 0.0
    %840 = vmatprep.subr.mxu0 0.0
    %841 = vmatpush1.msra.mxu0 0.0
    %842 = vmatprep.subr.mxu0 0.0
    %843 = vmatpush1.msra.mxu0 0.0
    %844 = vmatprep.subr.mxu0 0.0
    %845 = vmatpush1.msra.mxu0 0.0
    %846 = vmatprep.subr.mxu0 0.0
    %847 = vmatpush1.msra.mxu0 0.0
    %848 = vmatprep.subr.mxu0 0.0
    %849 = vmatpush1.msra.mxu0 0.0
    %850 = vmatprep.subr.mxu0 0.0
    %851 = vmatpush1.msra.mxu0 0.0
    %852 = vmatprep.subr.mxu0 0.0
    %853 = vmatpush1.msra.mxu0 0.0
    %854 = vmatprep.subr.mxu0 0.0
    %855 = vmatpush1.msra.mxu0 0.0
    %856 = vmatprep.mubr.f32.mxu0 0.0
    %857 = vmatmul.mubr.f32.gmra.mrb[0].mxu0 0.0
    %v858 = vpop.f32.mrb[0].mxu0
    %v859 = vadd.f32 0.0, %v858
    %v860 = vpop.f32.mrb[0].mxu0
    %v861 = vadd.f32 0.0, %v860
    %862 = vdwg.mxu0
    %v863 = vadd.f32 %v369, %v788
    %v864 = vadd.f32 %v371, %v790
    %v865 = vadd.f32 %v482, %v859
    %v866 = vadd.f32 %v484, %v861
    %v867 = vxor.u32 %v863, 2147483648
    %v868 = vmul.f32 %v867, 1.442695
    %v869 = vpow.pop %v868
    %v870 = vadd.f32 %v869, 1.0
    %v871 = vrcp.pop %v870
    %v872 = vmul.f32 1.0, %v871
    %v873 = vxor.u32 %v864, 2147483648
    %v874 = vmul.f32 %v873, 1.442695
    %v875 = vpow.pop %v874
    %v876 = vadd.f32 %v875, 1.0
    %v877 = vrcp.pop %v876
    %v878 = vmul.f32 1.0, %v877
    %v879 = vtanh.pop %v865
    %v880 = vxor.u32 %v866, 2147483648
    %v881 = vmul.f32 %v880, 1.442695
    %v882 = vpow.pop %v881
    %v883 = vadd.f32 %v882, 1.0
    %v884 = vrcp.pop %v883
    %v885 = vmul.f32 1.0, %v884
    %v886 = vmul.f32 %v878, 0.0
    %v887 = vmul.f32 %v872, %v879
    %v888 = vadd.f32 %v886, %v887
    %v889 = vtanh.pop %v888
    %v890 = vmul.f32 %v885, %v889
    %v892 = vlaneseq
    %v893 = vshrl.u32 %v892, 7
    %v894 = vsub.s32 0, %v893
    %v895 = vrot.slane %v720, %v894
    %v896 = vlaneseq
    %v897 = vshrl.u32 %v896, 7
    %v898 = vsub.s32 1, %v897
    %v899 = vrot.slane %v720, %v898
    %v900 = vlaneseq
    %v901 = vshrl.u32 %v900, 7
    %v902 = vsub.s32 2, %v901
    %v903 = vrot.slane %v720, %v902
    %v904 = vlaneseq
    %v905 = vshrl.u32 %v904, 7
    %v906 = vsub.s32 3, %v905
    %v907 = vrot.slane %v720, %v906
    %912 = vmatprep.subr.mxu0 %v593
    %913 = vmatpush1.msra.mxu0 %v592
    %914 = vmatprep.subr.mxu0 %v597
    %915 = vmatpush1.msra.mxu0 %v596
    %916 = vmatprep.subr.mxu0 %v601
    %917 = vmatpush1.msra.mxu0 %v600
    %918 = vmatprep.subr.mxu0 %v605
    %919 = vmatpush1.msra.mxu0 %v604
    %920 = vmatprep.subr.mxu0 %v609
    %921 = vmatpush1.msra.mxu0 %v608
    %922 = vmatprep.subr.mxu0 %v613
    %923 = vmatpush1.msra.mxu0 %v612
    %924 = vmatprep.subr.mxu0 %v617
    %925 = vmatpush1.msra.mxu0 %v616
    %926 = vmatprep.subr.mxu0 %v621
    %927 = vmatpush1.msra.mxu0 %v620
    %928 = vmatprep.subr.mxu0 %v625
    %929 = vmatpush1.msra.mxu0 %v624
    %930 = vmatprep.subr.mxu0 %v629
    %931 = vmatpush1.msra.mxu0 %v628
    %932 = vmatprep.subr.mxu0 %v633
    %933 = vmatpush1.msra.mxu0 %v632
    %934 = vmatprep.subr.mxu0 %v637
    %935 = vmatpush1.msra.mxu0 %v636
    %936 = vmatprep.subr.mxu0 %v641
    %937 = vmatpush1.msra.mxu0 %v640
    %938 = vmatprep.subr.mxu0 %v645
    %939 = vmatpush1.msra.mxu0 %v644
    %940 = vmatprep.subr.mxu0 %v649
    %941 = vmatpush1.msra.mxu0 %v648
    %942 = vmatprep.subr.mxu0 %v653
    %943 = vmatpush1.msra.mxu0 %v652
    %944 = vmatprep.subr.mxu0 %v657
    %945 = vmatpush1.msra.mxu0 %v656
    %946 = vmatprep.subr.mxu0 %v661
    %947 = vmatpush1.msra.mxu0 %v660
    %948 = vmatprep.subr.mxu0 %v665
    %949 = vmatpush1.msra.mxu0 %v664
    %950 = vmatprep.subr.mxu0 %v669
    %951 = vmatpush1.msra.mxu0 %v668
    %952 = vmatprep.subr.mxu0 %v673
    %953 = vmatpush1.msra.mxu0 %v672
    %954 = vmatprep.subr.mxu0 %v677
    %955 = vmatpush1.msra.mxu0 %v676
    %956 = vmatprep.subr.mxu0 %v681
    %957 = vmatpush1.msra.mxu0 %v680
    %958 = vmatprep.subr.mxu0 %v685
    %959 = vmatpush1.msra.mxu0 %v684
    %960 = vmatprep.subr.mxu0 %v689
    %961 = vmatpush1.msra.mxu0 %v688
    %962 = vmatprep.subr.mxu0 %v693
    %963 = vmatpush1.msra.mxu0 %v692
    %964 = vmatprep.subr.mxu0 %v697
    %965 = vmatpush1.msra.mxu0 %v696
    %966 = vmatprep.subr.mxu0 %v701
    %967 = vmatpush1.msra.mxu0 %v700
    %968 = vmatprep.subr.mxu0 %v705
    %969 = vmatpush1.msra.mxu0 %v704
    %970 = vmatprep.subr.mxu0 %v709
    %971 = vmatpush1.msra.mxu0 %v708
    %972 = vmatprep.subr.mxu0 %v713
    %973 = vmatpush1.msra.mxu0 %v712
    %974 = vmatprep.subr.mxu0 %v717
    %975 = vmatpush1.msra.mxu0 %v716
    %976 = vmatprep.mubr.f32.mxu0 0.0
    %977 = vmatmul.mubr.f32.gmra.mrb[0].mxu0 %v890
    %v978 = vpop.f32.mrb[0].mxu0
    %v979 = vadd.f32 %v895, %v978
    %v980 = vpop.f32.mrb[0].mxu0
    %v981 = vadd.f32 %v899, %v980
    %982 = vdwg.mxu0
    %983 = vmatprep.subr.mxu0 %v595
    %984 = vmatpush1.msra.mxu0 %v594
    %985 = vmatprep.subr.mxu0 %v599
    %986 = vmatpush1.msra.mxu0 %v598
    %987 = vmatprep.subr.mxu0 %v603
    %988 = vmatpush1.msra.mxu0 %v602
    %989 = vmatprep.subr.mxu0 %v607
    %990 = vmatpush1.msra.mxu0 %v606
    %991 = vmatprep.subr.mxu0 %v611
    %992 = vmatpush1.msra.mxu0 %v610
    %993 = vmatprep.subr.mxu0 %v615
    %994 = vmatpush1.msra.mxu0 %v614
    %995 = vmatprep.subr.mxu0 %v619
    %996 = vmatpush1.msra.mxu0 %v618
    %997 = vmatprep.subr.mxu0 %v623
    %998 = vmatpush1.msra.mxu0 %v622
    %999 = vmatprep.subr.mxu0 %v627
    %1000 = vmatpush1.msra.mxu0 %v626
    %1001 = vmatprep.subr.mxu0 %v631
    %1002 = vmatpush1.msra.mxu0 %v630
    %1003 = vmatprep.subr.mxu0 %v635
    %1004 = vmatpush1.msra.mxu0 %v634
    %1005 = vmatprep.subr.mxu0 %v639
    %1006 = vmatpush1.msra.mxu0 %v638
    %1007 = vmatprep.subr.mxu0 %v643
    %1008 = vmatpush1.msra.mxu0 %v642
    %1009 = vmatprep.subr.mxu0 %v647
    %1010 = vmatpush1.msra.mxu0 %v646
    %1011 = vmatprep.subr.mxu0 %v651
    %1012 = vmatpush1.msra.mxu0 %v650
    %1013 = vmatprep.subr.mxu0 %v655
    %1014 = vmatpush1.msra.mxu0 %v654
    %1015 = vmatprep.subr.mxu0 %v659
    %1016 = vmatpush1.msra.mxu0 %v658
    %1017 = vmatprep.subr.mxu0 %v663
    %1018 = vmatpush1.msra.mxu0 %v662
    %1019 = vmatprep.subr.mxu0 %v667
    %1020 = vmatpush1.msra.mxu0 %v666
    %1021 = vmatprep.subr.mxu0 %v671
    %1022 = vmatpush1.msra.mxu0 %v670
    %1023 = vmatprep.subr.mxu0 %v675
    %1024 = vmatpush1.msra.mxu0 %v674
    %1025 = vmatprep.subr.mxu0 %v679
    %1026 = vmatpush1.msra.mxu0 %v678
    %1027 = vmatprep.subr.mxu0 %v683
    %1028 = vmatpush1.msra.mxu0 %v682
    %1029 = vmatprep.subr.mxu0 %v687
    %1030 = vmatpush1.msra.mxu0 %v686
    %1031 = vmatprep.subr.mxu0 %v691
    %1032 = vmatpush1.msra.mxu0 %v690
    %1033 = vmatprep.subr.mxu0 %v695
    %1034 = vmatpush1.msra.mxu0 %v694
    %1035 = vmatprep.subr.mxu0 %v699
    %1036 = vmatpush1.msra.mxu0 %v698
    %1037 = vmatprep.subr.mxu0 %v703
    %1038 = vmatpush1.msra.mxu0 %v702
    %1039 = vmatprep.subr.mxu0 %v707
    %1040 = vmatpush1.msra.mxu0 %v706
    %1041 = vmatprep.subr.mxu0 %v711
    %1042 = vmatpush1.msra.mxu0 %v710
    %1043 = vmatprep.subr.mxu0 %v715
    %1044 = vmatpush1.msra.mxu0 %v714
    %1045 = vmatprep.subr.mxu0 %v719
    %1046 = vmatpush1.msra.mxu0 %v718
    %1047 = vmatprep.mubr.f32.mxu0 0.0
    %1048 = vmatmul.mubr.f32.gmra.mrb[0].mxu0 %v890
    %v1049 = vpop.f32.mrb[0].mxu0
    %v1050 = vadd.f32 %v903, %v1049
    %v1051 = vpop.f32.mrb[0].mxu0
    %v1052 = vadd.f32 %v907, %v1051
    %1053 = vdwg.mxu0
    %v1054 = vxor.u32 %v979, 2147483648
    %v1055 = vmul.f32 %v1054, 1.442695
    %v1056 = vpow.pop %v1055
    %v1057 = vadd.f32 %v1056, 1.0
    %v1058 = vrcp.pop %v1057
    %v1059 = vmul.f32 1.0, %v1058
    %v1060 = vxor.u32 %v981, 2147483648
    %v1061 = vmul.f32 %v1060, 1.442695
    %v1062 = vpow.pop %v1061
    %v1063 = vadd.f32 %v1062, 1.0
    %v1064 = vrcp.pop %v1063
    %v1065 = vmul.f32 1.0, %v1064
    %v1066 = vtanh.pop %v1050
    %v1067 = vxor.u32 %v1052, 2147483648
    %v1068 = vmul.f32 %v1067, 1.442695
    %v1069 = vpow.pop %v1068
    %v1070 = vadd.f32 %v1069, 1.0
    %v1071 = vrcp.pop %v1070
    %v1072 = vmul.f32 1.0, %v1071
    %v1073 = vmul.f32 %v1065, 0.0
    %v1074 = vmul.f32 %v1059, %v1066
    %v1075 = vadd.f32 %v1073, %v1074
    %v1076 = vtanh.pop %v1075
    %v1077 = vmul.f32 %v1072, %v1076
    %1078 = vmatprep.subr.mxu0 %v529
    %1079 = vmatpush1.msra.mxu0 %v528
    %1080 = vmatprep.subr.mxu0 %v533
    %1081 = vmatpush1.msra.mxu0 %v532
    %1082 = vmatprep.subr.mxu0 %v537
    %1083 = vmatpush1.msra.mxu0 %v536
    %1084 = vmatprep.subr.mxu0 %v541
    %1085 = vmatpush1.msra.mxu0 %v540
    %1086 = vmatprep.subr.mxu0 %v545
    %1087 = vmatpush1.msra.mxu0 %v544
    %1088 = vmatprep.subr.mxu0 %v549
    %1089 = vmatpush1.msra.mxu0 %v548
    %1090 = vmatprep.subr.mxu0 %v553
    %1091 = vmatpush1.msra.mxu0 %v552
    %1092 = vmatprep.subr.mxu0 %v557
    %1093 = vmatpush1.msra.mxu0 %v556
    %1094 = vmatprep.subr.mxu0 %v561
    %1095 = vmatpush1.msra.mxu0 %v560
    %1096 = vmatprep.subr.mxu0 %v565
    %1097 = vmatpush1.msra.mxu0 %v564
    %1098 = vmatprep.subr.mxu0 %v569
    %1099 = vmatpush1.msra.mxu0 %v568
    %1100 = vmatprep.subr.mxu0 %v573
    %1101 = vmatpush1.msra.mxu0 %v572
    %1102 = vmatprep.subr.mxu0 %v577
    %1103 = vmatpush1.msra.mxu0 %v576
    %1104 = vmatprep.subr.mxu0 %v581
    %1105 = vmatpush1.msra.mxu0 %v580
    %1106 = vmatprep.subr.mxu0 %v585
    %1107 = vmatpush1.msra.mxu0 %v584
    %1108 = vmatprep.subr.mxu0 %v589
    %1109 = vmatpush1.msra.mxu0 %v588
    %1110 = vmatprep.subr.mxu0 0.0
    %1111 = vmatpush1.msra.mxu0 0.0
    %1112 = vmatprep.subr.mxu0 0.0
    %1113 = vmatpush1.msra.mxu0 0.0
    %1114 = vmatprep.subr.mxu0 0.0
    %1115 = vmatpush1.msra.mxu0 0.0
    %1116 = vmatprep.subr.mxu0 0.0
    %1117 = vmatpush1.msra.mxu0 0.0
    %1118 = vmatprep.subr.mxu0 0.0
    %1119 = vmatpush1.msra.mxu0 0.0
    %1120 = vmatprep.subr.mxu0 0.0
    %1121 = vmatpush1.msra.mxu0 0.0
    %1122 = vmatprep.subr.mxu0 0.0
    %1123 = vmatpush1.msra.mxu0 0.0
    %1124 = vmatprep.subr.mxu0 0.0
    %1125 = vmatpush1.msra.mxu0 0.0
    %1126 = vmatprep.subr.mxu0 0.0
    %1127 = vmatpush1.msra.mxu0 0.0
    %1128 = vmatprep.subr.mxu0 0.0
    %1129 = vmatpush1.msra.mxu0 0.0
    %1130 = vmatprep.subr.mxu0 0.0
    %1131 = vmatpush1.msra.mxu0 0.0
    %1132 = vmatprep.subr.mxu0 0.0
    %1133 = vmatpush1.msra.mxu0 0.0
    %1134 = vmatprep.subr.mxu0 0.0
    %1135 = vmatpush1.msra.mxu0 0.0
    %1136 = vmatprep.subr.mxu0 0.0
    %1137 = vmatpush1.msra.mxu0 0.0
    %1138 = vmatprep.subr.mxu0 0.0
    %1139 = vmatpush1.msra.mxu0 0.0
    %1140 = vmatprep.subr.mxu0 0.0
    %1141 = vmatpush1.msra.mxu0 0.0
    %1142 = vmatprep.mubr.f32.mxu0 0.0
    %1143 = vmatmul.mubr.f32.gmra.mrb[0].mxu0 %v890
    %v1144 = vpop.f32.mrb[0].mxu0
    %v1145 = vadd.f32 0.0, %v1144
    %v1146 = vpop.f32.mrb[0].mxu0
    %v1147 = vadd.f32 0.0, %v1146
    %1148 = vdwg.mxu0
    %1149 = vmatprep.subr.mxu0 %v531
    %1150 = vmatpush1.msra.mxu0 %v530
    %1151 = vmatprep.subr.mxu0 %v535
    %1152 = vmatpush1.msra.mxu0 %v534
    %1153 = vmatprep.subr.mxu0 %v539
    %1154 = vmatpush1.msra.mxu0 %v538
    %1155 = vmatprep.subr.mxu0 %v543
    %1156 = vmatpush1.msra.mxu0 %v542
    %1157 = vmatprep.subr.mxu0 %v547
    %1158 = vmatpush1.msra.mxu0 %v546
    %1159 = vmatprep.subr.mxu0 %v551
    %1160 = vmatpush1.msra.mxu0 %v550
    %1161 = vmatprep.subr.mxu0 %v555
    %1162 = vmatpush1.msra.mxu0 %v554
    %1163 = vmatprep.subr.mxu0 %v559
    %1164 = vmatpush1.msra.mxu0 %v558
    %1165 = vmatprep.subr.mxu0 %v563
    %1166 = vmatpush1.msra.mxu0 %v562
    %1167 = vmatprep.subr.mxu0 %v567
    %1168 = vmatpush1.msra.mxu0 %v566
    %1169 = vmatprep.subr.mxu0 %v571
    %1170 = vmatpush1.msra.mxu0 %v570
    %1171 = vmatprep.subr.mxu0 %v575
    %1172 = vmatpush1.msra.mxu0 %v574
    %1173 = vmatprep.subr.mxu0 %v579
    %1174 = vmatpush1.msra.mxu0 %v578
    %1175 = vmatprep.subr.mxu0 %v583
    %1176 = vmatpush1.msra.mxu0 %v582
    %1177 = vmatprep.subr.mxu0 %v587
    %1178 = vmatpush1.msra.mxu0 %v586
    %1179 = vmatprep.subr.mxu0 %v591
    %1180 = vmatpush1.msra.mxu0 %v590
    %1181 = vmatprep.subr.mxu0 0.0
    %1182 = vmatpush1.msra.mxu0 0.0
    %1183 = vmatprep.subr.mxu0 0.0
    %1184 = vmatpush1.msra.mxu0 0.0
    %1185 = vmatprep.subr.mxu0 0.0
    %1186 = vmatpush1.msra.mxu0 0.0
    %1187 = vmatprep.subr.mxu0 0.0
    %1188 = vmatpush1.msra.mxu0 0.0
    %1189 = vmatprep.subr.mxu0 0.0
    %1190 = vmatpush1.msra.mxu0 0.0
    %1191 = vmatprep.subr.mxu0 0.0
    %1192 = vmatpush1.msra.mxu0 0.0
    %1193 = vmatprep.subr.mxu0 0.0
    %1194 = vmatpush1.msra.mxu0 0.0
    %1195 = vmatprep.subr.mxu0 0.0
    %1196 = vmatpush1.msra.mxu0 0.0
    %1197 = vmatprep.subr.mxu0 0.0
    %1198 = vmatpush1.msra.mxu0 0.0
    %1199 = vmatprep.subr.mxu0 0.0
    %1200 = vmatpush1.msra.mxu0 0.0
    %1201 = vmatprep.subr.mxu0 0.0
    %1202 = vmatpush1.msra.mxu0 0.0
    %1203 = vmatprep.subr.mxu0 0.0
    %1204 = vmatpush1.msra.mxu0 0.0
    %1205 = vmatprep.subr.mxu0 0.0
    %1206 = vmatpush1.msra.mxu0 0.0
    %1207 = vmatprep.subr.mxu0 0.0
    %1208 = vmatpush1.msra.mxu0 0.0
    %1209 = vmatprep.subr.mxu0 0.0
    %1210 = vmatpush1.msra.mxu0 0.0
    %1211 = vmatprep.subr.mxu0 0.0
    %1212 = vmatpush1.msra.mxu0 0.0
    %1213 = vmatprep.mubr.f32.mxu0 0.0
    %1214 = vmatmul.mubr.f32.gmra.mrb[0].mxu0 %v890
    %v1215 = vpop.f32.mrb[0].mxu0
    %v1216 = vadd.f32 0.0, %v1215
    %v1217 = vpop.f32.mrb[0].mxu0
    %v1218 = vadd.f32 0.0, %v1217
    %1219 = vdwg.mxu0
    %v1220 = vadd.f32 %v375, %v1145
    %v1221 = vadd.f32 %v377, %v1147
    %v1222 = vadd.f32 %v488, %v1216
    %v1223 = vadd.f32 %v490, %v1218
    %v1224 = vxor.u32 %v1220, 2147483648
    %v1225 = vmul.f32 %v1224, 1.442695
    %v1226 = vpow.pop %v1225
    %v1227 = vadd.f32 %v1226, 1.0
    %v1228 = vrcp.pop %v1227
    %v1229 = vmul.f32 1.0, %v1228
    %v1230 = vxor.u32 %v1221, 2147483648
    %v1231 = vmul.f32 %v1230, 1.442695
    %v1232 = vpow.pop %v1231
    %v1233 = vadd.f32 %v1232, 1.0
    %v1234 = vrcp.pop %v1233
    %v1235 = vmul.f32 1.0, %v1234
    %v1236 = vtanh.pop %v1222
    %v1237 = vxor.u32 %v1223, 2147483648
    %v1238 = vmul.f32 %v1237, 1.442695
    %v1239 = vpow.pop %v1238
    %v1240 = vadd.f32 %v1239, 1.0
    %v1241 = vrcp.pop %v1240
    %v1242 = vmul.f32 1.0, %v1241
    %v1243 = vmul.f32 %v1235, %v888
    %v1244 = vmul.f32 %v1229, %v1236
    %v1245 = vadd.f32 %v1243, %v1244
    %v1246 = vtanh.pop %v1245
    %v1247 = vmul.f32 %v1242, %v1246
    %1248 = vmatprep.subr.mxu0 %v593
    %1249 = vmatpush1.msra.mxu0 %v592
    %1250 = vmatprep.subr.mxu0 %v597
    %1251 = vmatpush1.msra.mxu0 %v596
    %1252 = vmatprep.subr.mxu0 %v601
    %1253 = vmatpush1.msra.mxu0 %v600
    %1254 = vmatprep.subr.mxu0 %v605
    %1255 = vmatpush1.msra.mxu0 %v604
    %1256 = vmatprep.subr.mxu0 %v609
    %1257 = vmatpush1.msra.mxu0 %v608
    %1258 = vmatprep.subr.mxu0 %v613
    %1259 = vmatpush1.msra.mxu0 %v612
    %1260 = vmatprep.subr.mxu0 %v617
    %1261 = vmatpush1.msra.mxu0 %v616
    %1262 = vmatprep.subr.mxu0 %v621
    %1263 = vmatpush1.msra.mxu0 %v620
    %1264 = vmatprep.subr.mxu0 %v625
    %1265 = vmatpush1.msra.mxu0 %v624
    %1266 = vmatprep.subr.mxu0 %v629
    %1267 = vmatpush1.msra.mxu0 %v628
    %1268 = vmatprep.subr.mxu0 %v633
    %1269 = vmatpush1.msra.mxu0 %v632
    %1270 = vmatprep.subr.mxu0 %v637
    %1271 = vmatpush1.msra.mxu0 %v636
    %1272 = vmatprep.subr.mxu0 %v641
    %1273 = vmatpush1.msra.mxu0 %v640
    %1274 = vmatprep.subr.mxu0 %v645
    %1275 = vmatpush1.msra.mxu0 %v644
    %1276 = vmatprep.subr.mxu0 %v649
    %1277 = vmatpush1.msra.mxu0 %v648
    %1278 = vmatprep.subr.mxu0 %v653
    %1279 = vmatpush1.msra.mxu0 %v652
    %1280 = vmatprep.subr.mxu0 %v657
    %1281 = vmatpush1.msra.mxu0 %v656
    %1282 = vmatprep.subr.mxu0 %v661
    %1283 = vmatpush1.msra.mxu0 %v660
    %1284 = vmatprep.subr.mxu0 %v665
    %1285 = vmatpush1.msra.mxu0 %v664
    %1286 = vmatprep.subr.mxu0 %v669
    %1287 = vmatpush1.msra.mxu0 %v668
    %1288 = vmatprep.subr.mxu0 %v673
    %1289 = vmatpush1.msra.mxu0 %v672
    %1290 = vmatprep.subr.mxu0 %v677
    %1291 = vmatpush1.msra.mxu0 %v676
    %1292 = vmatprep.subr.mxu0 %v681
    %1293 = vmatpush1.msra.mxu0 %v680
    %1294 = vmatprep.subr.mxu0 %v685
    %1295 = vmatpush1.msra.mxu0 %v684
    %1296 = vmatprep.subr.mxu0 %v689
    %1297 = vmatpush1.msra.mxu0 %v688
    %1298 = vmatprep.subr.mxu0 %v693
    %1299 = vmatpush1.msra.mxu0 %v692
    %1300 = vmatprep.subr.mxu0 %v697
    %1301 = vmatpush1.msra.mxu0 %v696
    %1302 = vmatprep.subr.mxu0 %v701
    %1303 = vmatpush1.msra.mxu0 %v700
    %1304 = vmatprep.subr.mxu0 %v705
    %1305 = vmatpush1.msra.mxu0 %v704
    %1306 = vmatprep.subr.mxu0 %v709
    %1307 = vmatpush1.msra.mxu0 %v708
    %1308 = vmatprep.subr.mxu0 %v713
    %1309 = vmatpush1.msra.mxu0 %v712
    %1310 = vmatprep.subr.mxu0 %v717
    %1311 = vmatpush1.msra.mxu0 %v716
    %1312 = vmatprep.mubr.f32.mxu0 %v1077
    %1313 = vmatmul.mubr.f32.gmra.mrb[0].mxu0 %v1247
    %v1314 = vpop.f32.mrb[0].mxu0
    %v1315 = vadd.f32 %v895, %v1314
    %v1316 = vpop.f32.mrb[0].mxu0
    %v1317 = vadd.f32 %v899, %v1316
    %1318 = vdwg.mxu0
    %1319 = vmatprep.subr.mxu0 %v595
    %1320 = vmatpush1.msra.mxu0 %v594
    %1321 = vmatprep.subr.mxu0 %v599
    %1322 = vmatpush1.msra.mxu0 %v598
    %1323 = vmatprep.subr.mxu0 %v603
    %1324 = vmatpush1.msra.mxu0 %v602
    %1325 = vmatprep.subr.mxu0 %v607
    %1326 = vmatpush1.msra.mxu0 %v606
    %1327 = vmatprep.subr.mxu0 %v611
    %1328 = vmatpush1.msra.mxu0 %v610
    %1329 = vmatprep.subr.mxu0 %v615
    %1330 = vmatpush1.msra.mxu0 %v614
    %1331 = vmatprep.subr.mxu0 %v619
    %1332 = vmatpush1.msra.mxu0 %v618
    %1333 = vmatprep.subr.mxu0 %v623
    %1334 = vmatpush1.msra.mxu0 %v622
    %1335 = vmatprep.subr.mxu0 %v627
    %1336 = vmatpush1.msra.mxu0 %v626
    %1337 = vmatprep.subr.mxu0 %v631
    %1338 = vmatpush1.msra.mxu0 %v630
    %1339 = vmatprep.subr.mxu0 %v635
    %1340 = vmatpush1.msra.mxu0 %v634
    %1341 = vmatprep.subr.mxu0 %v639
    %1342 = vmatpush1.msra.mxu0 %v638
    %1343 = vmatprep.subr.mxu0 %v643
    %1344 = vmatpush1.msra.mxu0 %v642
    %1345 = vmatprep.subr.mxu0 %v647
    %1346 = vmatpush1.msra.mxu0 %v646
    %1347 = vmatprep.subr.mxu0 %v651
    %1348 = vmatpush1.msra.mxu0 %v650
    %1349 = vmatprep.subr.mxu0 %v655
    %1350 = vmatpush1.msra.mxu0 %v654
    %1351 = vmatprep.subr.mxu0 %v659
    %1352 = vmatpush1.msra.mxu0 %v658
    %1353 = vmatprep.subr.mxu0 %v663
    %1354 = vmatpush1.msra.mxu0 %v662
    %1355 = vmatprep.subr.mxu0 %v667
    %1356 = vmatpush1.msra.mxu0 %v666
    %1357 = vmatprep.subr.mxu0 %v671
    %1358 = vmatpush1.msra.mxu0 %v670
    %1359 = vmatprep.subr.mxu0 %v675
    %1360 = vmatpush1.msra.mxu0 %v674
    %1361 = vmatprep.subr.mxu0 %v679
    %1362 = vmatpush1.msra.mxu0 %v678
    %1363 = vmatprep.subr.mxu0 %v683
    %1364 = vmatpush1.msra.mxu0 %v682
    %1365 = vmatprep.subr.mxu0 %v687
    %1366 = vmatpush1.msra.mxu0 %v686
    %1367 = vmatprep.subr.mxu0 %v691
    %1368 = vmatpush1.msra.mxu0 %v690
    %1369 = vmatprep.subr.mxu0 %v695
    %1370 = vmatpush1.msra.mxu0 %v694
    %1371 = vmatprep.subr.mxu0 %v699
    %1372 = vmatpush1.msra.mxu0 %v698
    %1373 = vmatprep.subr.mxu0 %v703
    %1374 = vmatpush1.msra.mxu0 %v702
    %1375 = vmatprep.subr.mxu0 %v707
    %1376 = vmatpush1.msra.mxu0 %v706
    %1377 = vmatprep.subr.mxu0 %v711
    %1378 = vmatpush1.msra.mxu0 %v710
    %1379 = vmatprep.subr.mxu0 %v715
    %1380 = vmatpush1.msra.mxu0 %v714
    %1381 = vmatprep.subr.mxu0 %v719
    %1382 = vmatpush1.msra.mxu0 %v718
    %1383 = vmatprep.mubr.f32.mxu0 %v1077
    %1384 = vmatmul.mubr.f32.gmra.mrb[0].mxu0 %v1247
    %v1385 = vpop.f32.mrb[0].mxu0
    %v1386 = vadd.f32 %v903, %v1385
    %v1387 = vpop.f32.mrb[0].mxu0
    %v1388 = vadd.f32 %v907, %v1387
    %1389 = vdwg.mxu0
    %v1390 = vxor.u32 %v1315, 2147483648
    %v1391 = vmul.f32 %v1390, 1.442695
    %v1392 = vpow.pop %v1391
    %v1393 = vadd.f32 %v1392, 1.0
    %v1394 = vrcp.pop %v1393
    %v1395 = vmul.f32 1.0, %v1394
    %v1396 = vxor.u32 %v1317, 2147483648
    %v1397 = vmul.f32 %v1396, 1.442695
    %v1398 = vpow.pop %v1397
    %v1399 = vadd.f32 %v1398, 1.0
    %v1400 = vrcp.pop %v1399
    %v1401 = vmul.f32 1.0, %v1400
    %v1402 = vtanh.pop %v1386
    %v1403 = vxor.u32 %v1388, 2147483648
    %v1404 = vmul.f32 %v1403, 1.442695
    %v1405 = vpow.pop %v1404
    %v1406 = vadd.f32 %v1405, 1.0
    %v1407 = vrcp.pop %v1406
    %v1408 = vmul.f32 1.0, %v1407
    %v1409 = vmul.f32 %v1401, %v1075
    %v1410 = vmul.f32 %v1395, %v1402
    %v1411 = vadd.f32 %v1409, %v1410
    %v1412 = vtanh.pop %v1411
    %v1413 = vmul.f32 %v1408, %v1412
    %1414 = vmatprep.subr.mxu0 %v529
    %1415 = vmatpush1.msra.mxu0 %v528
    %1416 = vmatprep.subr.mxu0 %v533
    %1417 = vmatpush1.msra.mxu0 %v532
    %1418 = vmatprep.subr.mxu0 %v537
    %1419 = vmatpush1.msra.mxu0 %v536
    %1420 = vmatprep.subr.mxu0 %v541
    %1421 = vmatpush1.msra.mxu0 %v540
    %1422 = vmatprep.subr.mxu0 %v545
    %1423 = vmatpush1.msra.mxu0 %v544
    %1424 = vmatprep.subr.mxu0 %v549
    %1425 = vmatpush1.msra.mxu0 %v548
    %1426 = vmatprep.subr.mxu0 %v553
    %1427 = vmatpush1.msra.mxu0 %v552
    %1428 = vmatprep.subr.mxu0 %v557
    %1429 = vmatpush1.msra.mxu0 %v556
    %1430 = vmatprep.subr.mxu0 %v561
    %1431 = vmatpush1.msra.mxu0 %v560
    %1432 = vmatprep.subr.mxu0 %v565
    %1433 = vmatpush1.msra.mxu0 %v564
    %1434 = vmatprep.subr.mxu0 %v569
    %1435 = vmatpush1.msra.mxu0 %v568
    %1436 = vmatprep.subr.mxu0 %v573
    %1437 = vmatpush1.msra.mxu0 %v572
    %1438 = vmatprep.subr.mxu0 %v577
    %1439 = vmatpush1.msra.mxu0 %v576
    %1440 = vmatprep.subr.mxu0 %v581
    %1441 = vmatpush1.msra.mxu0 %v580
    %1442 = vmatprep.subr.mxu0 %v585
    %1443 = vmatpush1.msra.mxu0 %v584
    %1444 = vmatprep.subr.mxu0 %v589
    %1445 = vmatpush1.msra.mxu0 %v588
    %1446 = vmatprep.subr.mxu0 0.0
    %1447 = vmatpush1.msra.mxu0 0.0
    %1448 = vmatprep.subr.mxu0 0.0
    %1449 = vmatpush1.msra.mxu0 0.0
    %1450 = vmatprep.subr.mxu0 0.0
    %1451 = vmatpush1.msra.mxu0 0.0
    %1452 = vmatprep.subr.mxu0 0.0
    %1453 = vmatpush1.msra.mxu0 0.0
    %1454 = vmatprep.subr.mxu0 0.0
    %1455 = vmatpush1.msra.mxu0 0.0
    %1456 = vmatprep.subr.mxu0 0.0
    %1457 = vmatpush1.msra.mxu0 0.0
    %1458 = vmatprep.subr.mxu0 0.0
    %1459 = vmatpush1.msra.mxu0 0.0
    %1460 = vmatprep.subr.mxu0 0.0
    %1461 = vmatpush1.msra.mxu0 0.0
    %1462 = vmatprep.subr.mxu0 0.0
    %1463 = vmatpush1.msra.mxu0 0.0
    %1464 = vmatprep.subr.mxu0 0.0
    %1465 = vmatpush1.msra.mxu0 0.0
    %1466 = vmatprep.subr.mxu0 0.0
    %1467 = vmatpush1.msra.mxu0 0.0
    %1468 = vmatprep.subr.mxu0 0.0
    %1469 = vmatpush1.msra.mxu0 0.0
    %1470 = vmatprep.subr.mxu0 0.0
    %1471 = vmatpush1.msra.mxu0 0.0
    %1472 = vmatprep.subr.mxu0 0.0
    %1473 = vmatpush1.msra.mxu0 0.0
    %1474 = vmatprep.subr.mxu0 0.0
    %1475 = vmatpush1.msra.mxu0 0.0
    %1476 = vmatprep.subr.mxu0 0.0
    %1477 = vmatpush1.msra.mxu0 0.0
    %1478 = vmatprep.mubr.f32.mxu0 0.0
    %1479 = vmatmul.mubr.f32.gmra.mrb[0].mxu0 %v1247
    %v1480 = vpop.f32.mrb[0].mxu0
    %v1481 = vadd.f32 0.0, %v1480
    %v1482 = vpop.f32.mrb[0].mxu0
    %v1483 = vadd.f32 0.0, %v1482
    %1484 = vdwg.mxu0
    %1485 = vmatprep.subr.mxu0 %v531
    %1486 = vmatpush1.msra.mxu0 %v530
    %1487 = vmatprep.subr.mxu0 %v535
    %1488 = vmatpush1.msra.mxu0 %v534
    %1489 = vmatprep.subr.mxu0 %v539
    %1490 = vmatpush1.msra.mxu0 %v538
    %1491 = vmatprep.subr.mxu0 %v543
    %1492 = vmatpush1.msra.mxu0 %v542
    %1493 = vmatprep.subr.mxu0 %v547
    %1494 = vmatpush1.msra.mxu0 %v546
    %1495 = vmatprep.subr.mxu0 %v551
    %1496 = vmatpush1.msra.mxu0 %v550
    %1497 = vmatprep.subr.mxu0 %v555
    %1498 = vmatpush1.msra.mxu0 %v554
    %1499 = vmatprep.subr.mxu0 %v559
    %1500 = vmatpush1.msra.mxu0 %v558
    %1501 = vmatprep.subr.mxu0 %v563
    %1502 = vmatpush1.msra.mxu0 %v562
    %1503 = vmatprep.subr.mxu0 %v567
    %1504 = vmatpush1.msra.mxu0 %v566
    %1505 = vmatprep.subr.mxu0 %v571
    %1506 = vmatpush1.msra.mxu0 %v570
    %1507 = vmatprep.subr.mxu0 %v575
    %1508 = vmatpush1.msra.mxu0 %v574
    %1509 = vmatprep.subr.mxu0 %v579
    %1510 = vmatpush1.msra.mxu0 %v578
    %1511 = vmatprep.subr.mxu0 %v583
    %1512 = vmatpush1.msra.mxu0 %v582
    %1513 = vmatprep.subr.mxu0 %v587
    %1514 = vmatpush1.msra.mxu0 %v586
    %1515 = vmatprep.subr.mxu0 %v591
    %1516 = vmatpush1.msra.mxu0 %v590
    %1517 = vmatprep.subr.mxu0 0.0
    %1518 = vmatpush1.msra.mxu0 0.0
    %1519 = vmatprep.subr.mxu0 0.0
    %1520 = vmatpush1.msra.mxu0 0.0
    %1521 = vmatprep.subr.mxu0 0.0
    %1522 = vmatpush1.msra.mxu0 0.0
    %1523 = vmatprep.subr.mxu0 0.0
    %1524 = vmatpush1.msra.mxu0 0.0
    %1525 = vmatprep.subr.mxu0 0.0
    %1526 = vmatpush1.msra.mxu0 0.0
    %1527 = vmatprep.subr.mxu0 0.0
    %1528 = vmatpush1.msra.mxu0 0.0
    %1529 = vmatprep.subr.mxu0 0.0
    %1530 = vmatpush1.msra.mxu0 0.0
    %1531 = vmatprep.subr.mxu0 0.0
    %1532 = vmatpush1.msra.mxu0 0.0
    %1533 = vmatprep.subr.mxu0 0.0
    %1534 = vmatpush1.msra.mxu0 0.0
    %1535 = vmatprep.subr.mxu0 0.0
    %1536 = vmatpush1.msra.mxu0 0.0
    %1537 = vmatprep.subr.mxu0 0.0
    %1538 = vmatpush1.msra.mxu0 0.0
    %1539 = vmatprep.subr.mxu0 0.0
    %1540 = vmatpush1.msra.mxu0 0.0
    %1541 = vmatprep.subr.mxu0 0.0
    %1542 = vmatpush1.msra.mxu0 0.0
    %1543 = vmatprep.subr.mxu0 0.0
    %1544 = vmatpush1.msra.mxu0 0.0
    %1545 = vmatprep.subr.mxu0 0.0
    %1546 = vmatpush1.msra.mxu0 0.0
    %1547 = vmatprep.subr.mxu0 0.0
    %1548 = vmatpush1.msra.mxu0 0.0
    %1549 = vmatprep.mubr.f32.mxu0 0.0
    %1550 = vmatmul.mubr.f32.gmra.mrb[0].mxu0 %v1247
    %v1551 = vpop.f32.mrb[0].mxu0
    %v1552 = vadd.f32 0.0, %v1551
    %v1553 = vpop.f32.mrb[0].mxu0
    %v1554 = vadd.f32 0.0, %v1553
    %1555 = vdwg.mxu0
    %v1556 = vadd.f32 %v381, %v1481
    %v1557 = vadd.f32 %v383, %v1483
    %v1558 = vadd.f32 %v494, %v1552
    %v1559 = vadd.f32 %v496, %v1554
    %v1560 = vxor.u32 %v1556, 2147483648
    %v1561 = vmul.f32 %v1560, 1.442695
    %v1562 = vpow.pop %v1561
    %v1563 = vadd.f32 %v1562, 1.0
    %v1564 = vrcp.pop %v1563
    %v1565 = vmul.f32 1.0, %v1564
    %v1566 = vxor.u32 %v1557, 2147483648
    %v1567 = vmul.f32 %v1566, 1.442695
    %v1568 = vpow.pop %v1567
    %v1569 = vadd.f32 %v1568, 1.0
    %v1570 = vrcp.pop %v1569
    %v1571 = vmul.f32 1.0, %v1570
    %v1572 = vtanh.pop %v1558
    %v1573 = vxor.u32 %v1559, 2147483648
    %v1574 = vmul.f32 %v1573, 1.442695
    %v1575 = vpow.pop %v1574
    %v1576 = vadd.f32 %v1575, 1.0
    %v1577 = vrcp.pop %v1576
    %v1578 = vmul.f32 1.0, %v1577
    %v1579 = vmul.f32 %v1571, %v1245
    %v1580 = vmul.f32 %v1565, %v1572
    %v1581 = vadd.f32 %v1579, %v1580
    %v1582 = vtanh.pop %v1581
    %v1583 = vmul.f32 %v1578, %v1582
    %1584 = vmatprep.subr.mxu0 %v593
    %1585 = vmatpush1.msra.mxu0 %v592
    %1586 = vmatprep.subr.mxu0 %v597
    %1587 = vmatpush1.msra.mxu0 %v596
    %1588 = vmatprep.subr.mxu0 %v601
    %1589 = vmatpush1.msra.mxu0 %v600
    %1590 = vmatprep.subr.mxu0 %v605
    %1591 = vmatpush1.msra.mxu0 %v604
    %1592 = vmatprep.subr.mxu0 %v609
    %1593 = vmatpush1.msra.mxu0 %v608
    %1594 = vmatprep.subr.mxu0 %v613
    %1595 = vmatpush1.msra.mxu0 %v612
    %1596 = vmatprep.subr.mxu0 %v617
    %1597 = vmatpush1.msra.mxu0 %v616
    %1598 = vmatprep.subr.mxu0 %v621
    %1599 = vmatpush1.msra.mxu0 %v620
    %1600 = vmatprep.subr.mxu0 %v625
    %1601 = vmatpush1.msra.mxu0 %v624
    %1602 = vmatprep.subr.mxu0 %v629
    %1603 = vmatpush1.msra.mxu0 %v628
    %1604 = vmatprep.subr.mxu0 %v633
    %1605 = vmatpush1.msra.mxu0 %v632
    %1606 = vmatprep.subr.mxu0 %v637
    %1607 = vmatpush1.msra.mxu0 %v636
    %1608 = vmatprep.subr.mxu0 %v641
    %1609 = vmatpush1.msra.mxu0 %v640
    %1610 = vmatprep.subr.mxu0 %v645
    %1611 = vmatpush1.msra.mxu0 %v644
    %1612 = vmatprep.subr.mxu0 %v649
    %1613 = vmatpush1.msra.mxu0 %v648
    %1614 = vmatprep.subr.mxu0 %v653
    %1615 = vmatpush1.msra.mxu0 %v652
    %1616 = vmatprep.subr.mxu0 %v657
    %1617 = vmatpush1.msra.mxu0 %v656
    %1618 = vmatprep.subr.mxu0 %v661
    %1619 = vmatpush1.msra.mxu0 %v660
    %1620 = vmatprep.subr.mxu0 %v665
    %1621 = vmatpush1.msra.mxu0 %v664
    %1622 = vmatprep.subr.mxu0 %v669
    %1623 = vmatpush1.msra.mxu0 %v668
    %1624 = vmatprep.subr.mxu0 %v673
    %1625 = vmatpush1.msra.mxu0 %v672
    %1626 = vmatprep.subr.mxu0 %v677
    %1627 = vmatpush1.msra.mxu0 %v676
    %1628 = vmatprep.subr.mxu0 %v681
    %1629 = vmatpush1.msra.mxu0 %v680
    %1630 = vmatprep.subr.mxu0 %v685
    %1631 = vmatpush1.msra.mxu0 %v684
    %1632 = vmatprep.subr.mxu0 %v689
    %1633 = vmatpush1.msra.mxu0 %v688
    %1634 = vmatprep.subr.mxu0 %v693
    %1635 = vmatpush1.msra.mxu0 %v692
    %1636 = vmatprep.subr.mxu0 %v697
    %1637 = vmatpush1.msra.mxu0 %v696
    %1638 = vmatprep.subr.mxu0 %v701
    %1639 = vmatpush1.msra.mxu0 %v700
    %1640 = vmatprep.subr.mxu0 %v705
    %1641 = vmatpush1.msra.mxu0 %v704
    %1642 = vmatprep.subr.mxu0 %v709
    %1643 = vmatpush1.msra.mxu0 %v708
    %1644 = vmatprep.subr.mxu0 %v713
    %1645 = vmatpush1.msra.mxu0 %v712
    %1646 = vmatprep.subr.mxu0 %v717
    %1647 = vmatpush1.msra.mxu0 %v716
    %1648 = vmatprep.mubr.f32.mxu0 %v1413
    %1649 = vmatmul.mubr.f32.gmra.mrb[0].mxu0 %v1583
    %v1650 = vpop.f32.mrb[0].mxu0
    %v1651 = vadd.f32 %v895, %v1650
    %v1652 = vpop.f32.mrb[0].mxu0
    %v1653 = vadd.f32 %v899, %v1652
    %1654 = vdwg.mxu0
    %1655 = vmatprep.subr.mxu0 %v595
    %1656 = vmatpush1.msra.mxu0 %v594
    %1657 = vmatprep.subr.mxu0 %v599
    %1658 = vmatpush1.msra.mxu0 %v598
    %1659 = vmatprep.subr.mxu0 %v603
    %1660 = vmatpush1.msra.mxu0 %v602
    %1661 = vmatprep.subr.mxu0 %v607
    %1662 = vmatpush1.msra.mxu0 %v606
    %1663 = vmatprep.subr.mxu0 %v611
    %1664 = vmatpush1.msra.mxu0 %v610
    %1665 = vmatprep.subr.mxu0 %v615
    %1666 = vmatpush1.msra.mxu0 %v614
    %1667 = vmatprep.subr.mxu0 %v619
    %1668 = vmatpush1.msra.mxu0 %v618
    %1669 = vmatprep.subr.mxu0 %v623
    %1670 = vmatpush1.msra.mxu0 %v622
    %1671 = vmatprep.subr.mxu0 %v627
    %1672 = vmatpush1.msra.mxu0 %v626
    %1673 = vmatprep.subr.mxu0 %v631
    %1674 = vmatpush1.msra.mxu0 %v630
    %1675 = vmatprep.subr.mxu0 %v635
    %1676 = vmatpush1.msra.mxu0 %v634
    %1677 = vmatprep.subr.mxu0 %v639
    %1678 = vmatpush1.msra.mxu0 %v638
    %1679 = vmatprep.subr.mxu0 %v643
    %1680 = vmatpush1.msra.mxu0 %v642
    %1681 = vmatprep.subr.mxu0 %v647
    %1682 = vmatpush1.msra.mxu0 %v646
    %1683 = vmatprep.subr.mxu0 %v651
    %1684 = vmatpush1.msra.mxu0 %v650
    %1685 = vmatprep.subr.mxu0 %v655
    %1686 = vmatpush1.msra.mxu0 %v654
    %1687 = vmatprep.subr.mxu0 %v659
    %1688 = vmatpush1.msra.mxu0 %v658
    %1689 = vmatprep.subr.mxu0 %v663
    %1690 = vmatpush1.msra.mxu0 %v662
    %1691 = vmatprep.subr.mxu0 %v667
    %1692 = vmatpush1.msra.mxu0 %v666
    %1693 = vmatprep.subr.mxu0 %v671
    %1694 = vmatpush1.msra.mxu0 %v670
    %1695 = vmatprep.subr.mxu0 %v675
    %1696 = vmatpush1.msra.mxu0 %v674
    %1697 = vmatprep.subr.mxu0 %v679
    %1698 = vmatpush1.msra.mxu0 %v678
    %1699 = vmatprep.subr.mxu0 %v683
    %1700 = vmatpush1.msra.mxu0 %v682
    %1701 = vmatprep.subr.mxu0 %v687
    %1702 = vmatpush1.msra.mxu0 %v686
    %1703 = vmatprep.subr.mxu0 %v691
    %1704 = vmatpush1.msra.mxu0 %v690
    %1705 = vmatprep.subr.mxu0 %v695
    %1706 = vmatpush1.msra.mxu0 %v694
    %1707 = vmatprep.subr.mxu0 %v699
    %1708 = vmatpush1.msra.mxu0 %v698
    %1709 = vmatprep.subr.mxu0 %v703
    %1710 = vmatpush1.msra.mxu0 %v702
    %1711 = vmatprep.subr.mxu0 %v707
    %1712 = vmatpush1.msra.mxu0 %v706
    %1713 = vmatprep.subr.mxu0 %v711
    %1714 = vmatpush1.msra.mxu0 %v710
    %1715 = vmatprep.subr.mxu0 %v715
    %1716 = vmatpush1.msra.mxu0 %v714
    %1717 = vmatprep.subr.mxu0 %v719
    %1718 = vmatpush1.msra.mxu0 %v718
    %1719 = vmatprep.mubr.f32.mxu0 %v1413
    %1720 = vmatmul.mubr.f32.gmra.mrb[0].mxu0 %v1583
    %v1721 = vpop.f32.mrb[0].mxu0
    %v1722 = vadd.f32 %v903, %v1721
    %v1723 = vpop.f32.mrb[0].mxu0
    %v1724 = vadd.f32 %v907, %v1723
    %1725 = vdwg.mxu0
    %v1726 = vxor.u32 %v1651, 2147483648
    %v1727 = vmul.f32 %v1726, 1.442695
    %v1728 = vpow.pop %v1727
    %v1729 = vadd.f32 %v1728, 1.0
    %v1730 = vrcp.pop %v1729
    %v1731 = vmul.f32 1.0, %v1730
    %v1732 = vxor.u32 %v1653, 2147483648
    %v1733 = vmul.f32 %v1732, 1.442695
    %v1734 = vpow.pop %v1733
    %v1735 = vadd.f32 %v1734, 1.0
    %v1736 = vrcp.pop %v1735
    %v1737 = vmul.f32 1.0, %v1736
    %v1738 = vtanh.pop %v1722
    %v1739 = vxor.u32 %v1724, 2147483648
    %v1740 = vmul.f32 %v1739, 1.442695
    %v1741 = vpow.pop %v1740
    %v1742 = vadd.f32 %v1741, 1.0
    %v1743 = vrcp.pop %v1742
    %v1744 = vmul.f32 1.0, %v1743
    %v1745 = vmul.f32 %v1737, %v1411
    %v1746 = vmul.f32 %v1731, %v1738
    %v1747 = vadd.f32 %v1745, %v1746
    %v1748 = vtanh.pop %v1747
    %v1749 = vmul.f32 %v1744, %v1748
    %1750 = vmatprep.subr.mxu0 %v529
    %1751 = vmatpush1.msra.mxu0 %v528
    %1752 = vmatprep.subr.mxu0 %v533
    %1753 = vmatpush1.msra.mxu0 %v532
    %1754 = vmatprep.subr.mxu0 %v537
    %1755 = vmatpush1.msra.mxu0 %v536
    %1756 = vmatprep.subr.mxu0 %v541
    %1757 = vmatpush1.msra.mxu0 %v540
    %1758 = vmatprep.subr.mxu0 %v545
    %1759 = vmatpush1.msra.mxu0 %v544
    %1760 = vmatprep.subr.mxu0 %v549
    %1761 = vmatpush1.msra.mxu0 %v548
    %1762 = vmatprep.subr.mxu0 %v553
    %1763 = vmatpush1.msra.mxu0 %v552
    %1764 = vmatprep.subr.mxu0 %v557
    %1765 = vmatpush1.msra.mxu0 %v556
    %1766 = vmatprep.subr.mxu0 %v561
    %1767 = vmatpush1.msra.mxu0 %v560
    %1768 = vmatprep.subr.mxu0 %v565
    %1769 = vmatpush1.msra.mxu0 %v564
    %1770 = vmatprep.subr.mxu0 %v569
    %1771 = vmatpush1.msra.mxu0 %v568
    %1772 = vmatprep.subr.mxu0 %v573
    %1773 = vmatpush1.msra.mxu0 %v572
    %1774 = vmatprep.subr.mxu0 %v577
    %1775 = vmatpush1.msra.mxu0 %v576
    %1776 = vmatprep.subr.mxu0 %v581
    %1777 = vmatpush1.msra.mxu0 %v580
    %1778 = vmatprep.subr.mxu0 %v585
    %1779 = vmatpush1.msra.mxu0 %v584
    %1780 = vmatprep.subr.mxu0 %v589
    %1781 = vmatpush1.msra.mxu0 %v588
    %1782 = vmatprep.subr.mxu0 0.0
    %1783 = vmatpush1.msra.mxu0 0.0
    %1784 = vmatprep.subr.mxu0 0.0
    %1785 = vmatpush1.msra.mxu0 0.0
    %1786 = vmatprep.subr.mxu0 0.0
    %1787 = vmatpush1.msra.mxu0 0.0
    %1788 = vmatprep.subr.mxu0 0.0
    %1789 = vmatpush1.msra.mxu0 0.0
    %1790 = vmatprep.subr.mxu0 0.0
    %1791 = vmatpush1.msra.mxu0 0.0
    %1792 = vmatprep.subr.mxu0 0.0
    %1793 = vmatpush1.msra.mxu0 0.0
    %1794 = vmatprep.subr.mxu0 0.0
    %1795 = vmatpush1.msra.mxu0 0.0
    %1796 = vmatprep.subr.mxu0 0.0
    %1797 = vmatpush1.msra.mxu0 0.0
    %1798 = vmatprep.subr.mxu0 0.0
    %1799 = vmatpush1.msra.mxu0 0.0
    %1800 = vmatprep.subr.mxu0 0.0
    %1801 = vmatpush1.msra.mxu0 0.0
    %1802 = vmatprep.subr.mxu0 0.0
    %1803 = vmatpush1.msra.mxu0 0.0
    %1804 = vmatprep.subr.mxu0 0.0
    %1805 = vmatpush1.msra.mxu0 0.0
    %1806 = vmatprep.subr.mxu0 0.0
    %1807 = vmatpush1.msra.mxu0 0.0
    %1808 = vmatprep.subr.mxu0 0.0
    %1809 = vmatpush1.msra.mxu0 0.0
    %1810 = vmatprep.subr.mxu0 0.0
    %1811 = vmatpush1.msra.mxu0 0.0
    %1812 = vmatprep.subr.mxu0 0.0
    %1813 = vmatpush1.msra.mxu0 0.0
    %1814 = vmatprep.mubr.f32.mxu0 0.0
    %1815 = vmatmul.mubr.f32.gmra.mrb[0].mxu0 %v1583
    %v1816 = vpop.f32.mrb[0].mxu0
    %v1817 = vadd.f32 0.0, %v1816
    %v1818 = vpop.f32.mrb[0].mxu0
    %v1819 = vadd.f32 0.0, %v1818
    %1820 = vdwg.mxu0
    %1821 = vmatprep.subr.mxu0 %v531
    %1822 = vmatpush1.msra.mxu0 %v530
    %1823 = vmatprep.subr.mxu0 %v535
    %1824 = vmatpush1.msra.mxu0 %v534
    %1825 = vmatprep.subr.mxu0 %v539
    %1826 = vmatpush1.msra.mxu0 %v538
    %1827 = vmatprep.subr.mxu0 %v543
    %1828 = vmatpush1.msra.mxu0 %v542
    %1829 = vmatprep.subr.mxu0 %v547
    %1830 = vmatpush1.msra.mxu0 %v546
    %1831 = vmatprep.subr.mxu0 %v551
    %1832 = vmatpush1.msra.mxu0 %v550
    %1833 = vmatprep.subr.mxu0 %v555
    %1834 = vmatpush1.msra.mxu0 %v554
    %1835 = vmatprep.subr.mxu0 %v559
    %1836 = vmatpush1.msra.mxu0 %v558
    %1837 = vmatprep.subr.mxu0 %v563
    %1838 = vmatpush1.msra.mxu0 %v562
    %1839 = vmatprep.subr.mxu0 %v567
    %1840 = vmatpush1.msra.mxu0 %v566
    %1841 = vmatprep.subr.mxu0 %v571
    %1842 = vmatpush1.msra.mxu0 %v570
    %1843 = vmatprep.subr.mxu0 %v575
    %1844 = vmatpush1.msra.mxu0 %v574
    %1845 = vmatprep.subr.mxu0 %v579
    %1846 = vmatpush1.msra.mxu0 %v578
    %1847 = vmatprep.subr.mxu0 %v583
    %1848 = vmatpush1.msra.mxu0 %v582
    %1849 = vmatprep.subr.mxu0 %v587
    %1850 = vmatpush1.msra.mxu0 %v586
    %1851 = vmatprep.subr.mxu0 %v591
    %1852 = vmatpush1.msra.mxu0 %v590
    %1853 = vmatprep.subr.mxu0 0.0
    %1854 = vmatpush1.msra.mxu0 0.0
    %1855 = vmatprep.subr.mxu0 0.0
    %1856 = vmatpush1.msra.mxu0 0.0
    %1857 = vmatprep.subr.mxu0 0.0
    %1858 = vmatpush1.msra.mxu0 0.0
    %1859 = vmatprep.subr.mxu0 0.0
    %1860 = vmatpush1.msra.mxu0 0.0
    %1861 = vmatprep.subr.mxu0 0.0
    %1862 = vmatpush1.msra.mxu0 0.0
    %1863 = vmatprep.subr.mxu0 0.0
    %1864 = vmatpush1.msra.mxu0 0.0
    %1865 = vmatprep.subr.mxu0 0.0
    %1866 = vmatpush1.msra.mxu0 0.0
    %1867 = vmatprep.subr.mxu0 0.0
    %1868 = vmatpush1.msra.mxu0 0.0
    %1869 = vmatprep.subr.mxu0 0.0
    %1870 = vmatpush1.msra.mxu0 0.0
    %1871 = vmatprep.subr.mxu0 0.0
    %1872 = vmatpush1.msra.mxu0 0.0
    %1873 = vmatprep.subr.mxu0 0.0
    %1874 = vmatpush1.msra.mxu0 0.0
    %1875 = vmatprep.subr.mxu0 0.0
    %1876 = vmatpush1.msra.mxu0 0.0
    %1877 = vmatprep.subr.mxu0 0.0
    %1878 = vmatpush1.msra.mxu0 0.0
    %1879 = vmatprep.subr.mxu0 0.0
    %1880 = vmatpush1.msra.mxu0 0.0
    %1881 = vmatprep.subr.mxu0 0.0
    %1882 = vmatpush1.msra.mxu0 0.0
    %1883 = vmatprep.subr.mxu0 0.0
    %1884 = vmatpush1.msra.mxu0 0.0
    %1885 = vmatprep.mubr.f32.mxu0 0.0
    %1886 = vmatmul.mubr.f32.gmra.mrb[0].mxu0 %v1583
    %v1887 = vpop.f32.mrb[0].mxu0
    %v1888 = vadd.f32 0.0, %v1887
    %v1889 = vpop.f32.mrb[0].mxu0
    %v1890 = vadd.f32 0.0, %v1889
    %1891 = vdwg.mxu0
    %v1892 = vadd.f32 %v387, %v1817
    %v1893 = vadd.f32 %v389, %v1819
    %v1894 = vadd.f32 %v500, %v1888
    %v1895 = vadd.f32 %v502, %v1890
    %v1896 = vxor.u32 %v1892, 2147483648
    %v1897 = vmul.f32 %v1896, 1.442695
    %v1898 = vpow.pop %v1897
    %v1899 = vadd.f32 %v1898, 1.0
    %v1900 = vrcp.pop %v1899
    %v1901 = vmul.f32 1.0, %v1900
    %v1902 = vxor.u32 %v1893, 2147483648
    %v1903 = vmul.f32 %v1902, 1.442695
    %v1904 = vpow.pop %v1903
    %v1905 = vadd.f32 %v1904, 1.0
    %v1906 = vrcp.pop %v1905
    %v1907 = vmul.f32 1.0, %v1906
    %v1908 = vtanh.pop %v1894
    %v1909 = vxor.u32 %v1895, 2147483648
    %v1910 = vmul.f32 %v1909, 1.442695
    %v1911 = vpow.pop %v1910
    %v1912 = vadd.f32 %v1911, 1.0
    %v1913 = vrcp.pop %v1912
    %v1914 = vmul.f32 1.0, %v1913
    %v1915 = vmul.f32 %v1907, %v1581
    %v1916 = vmul.f32 %v1901, %v1908
    %v1917 = vadd.f32 %v1915, %v1916
    %v1918 = vtanh.pop %v1917
    %v1919 = vmul.f32 %v1914, %v1918
    %1920 = vmatprep.subr.mxu0 %v593
    %1921 = vmatpush1.msra.mxu0 %v592
    %1922 = vmatprep.subr.mxu0 %v597
    %1923 = vmatpush1.msra.mxu0 %v596
    %1924 = vmatprep.subr.mxu0 %v601
    %1925 = vmatpush1.msra.mxu0 %v600
    %1926 = vmatprep.subr.mxu0 %v605
    %1927 = vmatpush1.msra.mxu0 %v604
    %1928 = vmatprep.subr.mxu0 %v609
    %1929 = vmatpush1.msra.mxu0 %v608
    %1930 = vmatprep.subr.mxu0 %v613
    %1931 = vmatpush1.msra.mxu0 %v612
    %1932 = vmatprep.subr.mxu0 %v617
    %1933 = vmatpush1.msra.mxu0 %v616
    %1934 = vmatprep.subr.mxu0 %v621
    %1935 = vmatpush1.msra.mxu0 %v620
    %1936 = vmatprep.subr.mxu0 %v625
    %1937 = vmatpush1.msra.mxu0 %v624
    %1938 = vmatprep.subr.mxu0 %v629
    %1939 = vmatpush1.msra.mxu0 %v628
    %1940 = vmatprep.subr.mxu0 %v633
    %1941 = vmatpush1.msra.mxu0 %v632
    %1942 = vmatprep.subr.mxu0 %v637
    %1943 = vmatpush1.msra.mxu0 %v636
    %1944 = vmatprep.subr.mxu0 %v641
    %1945 = vmatpush1.msra.mxu0 %v640
    %1946 = vmatprep.subr.mxu0 %v645
    %1947 = vmatpush1.msra.mxu0 %v644
    %1948 = vmatprep.subr.mxu0 %v649
    %1949 = vmatpush1.msra.mxu0 %v648
    %1950 = vmatprep.subr.mxu0 %v653
    %1951 = vmatpush1.msra.mxu0 %v652
    %1952 = vmatprep.subr.mxu0 %v657
    %1953 = vmatpush1.msra.mxu0 %v656
    %1954 = vmatprep.subr.mxu0 %v661
    %1955 = vmatpush1.msra.mxu0 %v660
    %1956 = vmatprep.subr.mxu0 %v665
    %1957 = vmatpush1.msra.mxu0 %v664
    %1958 = vmatprep.subr.mxu0 %v669
    %1959 = vmatpush1.msra.mxu0 %v668
    %1960 = vmatprep.subr.mxu0 %v673
    %1961 = vmatpush1.msra.mxu0 %v672
    %1962 = vmatprep.subr.mxu0 %v677
    %1963 = vmatpush1.msra.mxu0 %v676
    %1964 = vmatprep.subr.mxu0 %v681
    %1965 = vmatpush1.msra.mxu0 %v680
    %1966 = vmatprep.subr.mxu0 %v685
    %1967 = vmatpush1.msra.mxu0 %v684
    %1968 = vmatprep.subr.mxu0 %v689
    %1969 = vmatpush1.msra.mxu0 %v688
    %1970 = vmatprep.subr.mxu0 %v693
    %1971 = vmatpush1.msra.mxu0 %v692
    %1972 = vmatprep.subr.mxu0 %v697
    %1973 = vmatpush1.msra.mxu0 %v696
    %1974 = vmatprep.subr.mxu0 %v701
    %1975 = vmatpush1.msra.mxu0 %v700
    %1976 = vmatprep.subr.mxu0 %v705
    %1977 = vmatpush1.msra.mxu0 %v704
    %1978 = vmatprep.subr.mxu0 %v709
    %1979 = vmatpush1.msra.mxu0 %v708
    %1980 = vmatprep.subr.mxu0 %v713
    %1981 = vmatpush1.msra.mxu0 %v712
    %1982 = vmatprep.subr.mxu0 %v717
    %1983 = vmatpush1.msra.mxu0 %v716
    %1984 = vmatprep.mubr.f32.mxu0 %v1749
    %1985 = vmatmul.mubr.f32.gmra.mrb[0].mxu0 %v1919
    %v1986 = vpop.f32.mrb[0].mxu0
    %v1987 = vadd.f32 %v895, %v1986
    %v1988 = vpop.f32.mrb[0].mxu0
    %v1989 = vadd.f32 %v899, %v1988
    %1990 = vdwg.mxu0
    %1991 = vmatprep.subr.mxu0 %v595
    %1992 = vmatpush1.msra.mxu0 %v594
    %1993 = vmatprep.subr.mxu0 %v599
    %1994 = vmatpush1.msra.mxu0 %v598
    %1995 = vmatprep.subr.mxu0 %v603
    %1996 = vmatpush1.msra.mxu0 %v602
    %1997 = vmatprep.subr.mxu0 %v607
    %1998 = vmatpush1.msra.mxu0 %v606
    %1999 = vmatprep.subr.mxu0 %v611
    %2000 = vmatpush1.msra.mxu0 %v610
    %2001 = vmatprep.subr.mxu0 %v615
    %2002 = vmatpush1.msra.mxu0 %v614
    %2003 = vmatprep.subr.mxu0 %v619
    %2004 = vmatpush1.msra.mxu0 %v618
    %2005 = vmatprep.subr.mxu0 %v623
    %2006 = vmatpush1.msra.mxu0 %v622
    %2007 = vmatprep.subr.mxu0 %v627
    %2008 = vmatpush1.msra.mxu0 %v626
    %2009 = vmatprep.subr.mxu0 %v631
    %2010 = vmatpush1.msra.mxu0 %v630
    %2011 = vmatprep.subr.mxu0 %v635
    %2012 = vmatpush1.msra.mxu0 %v634
    %2013 = vmatprep.subr.mxu0 %v639
    %2014 = vmatpush1.msra.mxu0 %v638
    %2015 = vmatprep.subr.mxu0 %v643
    %2016 = vmatpush1.msra.mxu0 %v642
    %2017 = vmatprep.subr.mxu0 %v647
    %2018 = vmatpush1.msra.mxu0 %v646
    %2019 = vmatprep.subr.mxu0 %v651
    %2020 = vmatpush1.msra.mxu0 %v650
    %2021 = vmatprep.subr.mxu0 %v655
    %2022 = vmatpush1.msra.mxu0 %v654
    %2023 = vmatprep.subr.mxu0 %v659
    %2024 = vmatpush1.msra.mxu0 %v658
    %2025 = vmatprep.subr.mxu0 %v663
    %2026 = vmatpush1.msra.mxu0 %v662
    %2027 = vmatprep.subr.mxu0 %v667
    %2028 = vmatpush1.msra.mxu0 %v666
    %2029 = vmatprep.subr.mxu0 %v671
    %2030 = vmatpush1.msra.mxu0 %v670
    %2031 = vmatprep.subr.mxu0 %v675
    %2032 = vmatpush1.msra.mxu0 %v674
    %2033 = vmatprep.subr.mxu0 %v679
    %2034 = vmatpush1.msra.mxu0 %v678
    %2035 = vmatprep.subr.mxu0 %v683
    %2036 = vmatpush1.msra.mxu0 %v682
    %2037 = vmatprep.subr.mxu0 %v687
    %2038 = vmatpush1.msra.mxu0 %v686
    %2039 = vmatprep.subr.mxu0 %v691
    %2040 = vmatpush1.msra.mxu0 %v690
    %2041 = vmatprep.subr.mxu0 %v695
    %2042 = vmatpush1.msra.mxu0 %v694
    %2043 = vmatprep.subr.mxu0 %v699
    %2044 = vmatpush1.msra.mxu0 %v698
    %2045 = vmatprep.subr.mxu0 %v703
    %2046 = vmatpush1.msra.mxu0 %v702
    %2047 = vmatprep.subr.mxu0 %v707
    %2048 = vmatpush1.msra.mxu0 %v706
    %2049 = vmatprep.subr.mxu0 %v711
    %2050 = vmatpush1.msra.mxu0 %v710
    %2051 = vmatprep.subr.mxu0 %v715
    %2052 = vmatpush1.msra.mxu0 %v714
    %2053 = vmatprep.subr.mxu0 %v719
    %2054 = vmatpush1.msra.mxu0 %v718
    %2055 = vmatprep.mubr.f32.mxu0 %v1749
    %2056 = vmatmul.mubr.f32.gmra.mrb[0].mxu0 %v1919
    %v2057 = vpop.f32.mrb[0].mxu0
    %v2058 = vadd.f32 %v903, %v2057
    %v2059 = vpop.f32.mrb[0].mxu0
    %v2060 = vadd.f32 %v907, %v2059
    %2061 = vdwg.mxu0
    %v2062 = vxor.u32 %v1987, 2147483648
    %v2063 = vmul.f32 %v2062, 1.442695
    %v2064 = vpow.pop %v2063
    %v2065 = vadd.f32 %v2064, 1.0
    %v2066 = vrcp.pop %v2065
    %v2067 = vmul.f32 1.0, %v2066
    %v2068 = vxor.u32 %v1989, 2147483648
    %v2069 = vmul.f32 %v2068, 1.442695
    %v2070 = vpow.pop %v2069
    %v2071 = vadd.f32 %v2070, 1.0
    %v2072 = vrcp.pop %v2071
    %v2073 = vmul.f32 1.0, %v2072
    %v2074 = vtanh.pop %v2058
    %v2075 = vxor.u32 %v2060, 2147483648
    %v2076 = vmul.f32 %v2075, 1.442695
    %v2077 = vpow.pop %v2076
    %v2078 = vadd.f32 %v2077, 1.0
    %v2079 = vrcp.pop %v2078
    %v2080 = vmul.f32 1.0, %v2079
    %v2081 = vmul.f32 %v2073, %v1747
    %v2082 = vmul.f32 %v2067, %v2074
    %v2083 = vadd.f32 %v2081, %v2082
    %v2084 = vtanh.pop %v2083
    %v2085 = vmul.f32 %v2080, %v2084
    %2086 = vmatprep.subr.mxu0 %v529
    %2087 = vmatpush1.msra.mxu0 %v528
    %2088 = vmatprep.subr.mxu0 %v533
    %2089 = vmatpush1.msra.mxu0 %v532
    %2090 = vmatprep.subr.mxu0 %v537
    %2091 = vmatpush1.msra.mxu0 %v536
    %2092 = vmatprep.subr.mxu0 %v541
    %2093 = vmatpush1.msra.mxu0 %v540
    %2094 = vmatprep.subr.mxu0 %v545
    %2095 = vmatpush1.msra.mxu0 %v544
    %2096 = vmatprep.subr.mxu0 %v549
    %2097 = vmatpush1.msra.mxu0 %v548
    %2098 = vmatprep.subr.mxu0 %v553
    %2099 = vmatpush1.msra.mxu0 %v552
    %2100 = vmatprep.subr.mxu0 %v557
    %2101 = vmatpush1.msra.mxu0 %v556
    %2102 = vmatprep.subr.mxu0 %v561
    %2103 = vmatpush1.msra.mxu0 %v560
    %2104 = vmatprep.subr.mxu0 %v565
    %2105 = vmatpush1.msra.mxu0 %v564
    %2106 = vmatprep.subr.mxu0 %v569
    %2107 = vmatpush1.msra.mxu0 %v568
    %2108 = vmatprep.subr.mxu0 %v573
    %2109 = vmatpush1.msra.mxu0 %v572
    %2110 = vmatprep.subr.mxu0 %v577
    %2111 = vmatpush1.msra.mxu0 %v576
    %2112 = vmatprep.subr.mxu0 %v581
    %2113 = vmatpush1.msra.mxu0 %v580
    %2114 = vmatprep.subr.mxu0 %v585
    %2115 = vmatpush1.msra.mxu0 %v584
    %2116 = vmatprep.subr.mxu0 %v589
    %2117 = vmatpush1.msra.mxu0 %v588
    %2118 = vmatprep.subr.mxu0 0.0
    %2119 = vmatpush1.msra.mxu0 0.0
    %2120 = vmatprep.subr.mxu0 0.0
    %2121 = vmatpush1.msra.mxu0 0.0
    %2122 = vmatprep.subr.mxu0 0.0
    %2123 = vmatpush1.msra.mxu0 0.0
    %2124 = vmatprep.subr.mxu0 0.0
    %2125 = vmatpush1.msra.mxu0 0.0
    %2126 = vmatprep.subr.mxu0 0.0
    %2127 = vmatpush1.msra.mxu0 0.0
    %2128 = vmatprep.subr.mxu0 0.0
    %2129 = vmatpush1.msra.mxu0 0.0
    %2130 = vmatprep.subr.mxu0 0.0
    %2131 = vmatpush1.msra.mxu0 0.0
    %2132 = vmatprep.subr.mxu0 0.0
    %2133 = vmatpush1.msra.mxu0 0.0
    %2134 = vmatprep.subr.mxu0 0.0
    %2135 = vmatpush1.msra.mxu0 0.0
    %2136 = vmatprep.subr.mxu0 0.0
    %2137 = vmatpush1.msra.mxu0 0.0
    %2138 = vmatprep.subr.mxu0 0.0
    %2139 = vmatpush1.msra.mxu0 0.0
    %2140 = vmatprep.subr.mxu0 0.0
    %2141 = vmatpush1.msra.mxu0 0.0
    %2142 = vmatprep.subr.mxu0 0.0
    %2143 = vmatpush1.msra.mxu0 0.0
    %2144 = vmatprep.subr.mxu0 0.0
    %2145 = vmatpush1.msra.mxu0 0.0
    %2146 = vmatprep.subr.mxu0 0.0
    %2147 = vmatpush1.msra.mxu0 0.0
    %2148 = vmatprep.subr.mxu0 0.0
    %2149 = vmatpush1.msra.mxu0 0.0
    %2150 = vmatprep.mubr.f32.mxu0 0.0
    %2151 = vmatmul.mubr.f32.gmra.mrb[0].mxu0 %v1919
    %v2152 = vpop.f32.mrb[0].mxu0
    %v2153 = vadd.f32 0.0, %v2152
    %v2154 = vpop.f32.mrb[0].mxu0
    %v2155 = vadd.f32 0.0, %v2154
    %2156 = vdwg.mxu0
    %2157 = vmatprep.subr.mxu0 %v531
    %2158 = vmatpush1.msra.mxu0 %v530
    %2159 = vmatprep.subr.mxu0 %v535
    %2160 = vmatpush1.msra.mxu0 %v534
    %2161 = vmatprep.subr.mxu0 %v539
    %2162 = vmatpush1.msra.mxu0 %v538
    %2163 = vmatprep.subr.mxu0 %v543
    %2164 = vmatpush1.msra.mxu0 %v542
    %2165 = vmatprep.subr.mxu0 %v547
    %2166 = vmatpush1.msra.mxu0 %v546
    %2167 = vmatprep.subr.mxu0 %v551
    %2168 = vmatpush1.msra.mxu0 %v550
    %2169 = vmatprep.subr.mxu0 %v555
    %2170 = vmatpush1.msra.mxu0 %v554
    %2171 = vmatprep.subr.mxu0 %v559
    %2172 = vmatpush1.msra.mxu0 %v558
    %2173 = vmatprep.subr.mxu0 %v563
    %2174 = vmatpush1.msra.mxu0 %v562
    %2175 = vmatprep.subr.mxu0 %v567
    %2176 = vmatpush1.msra.mxu0 %v566
    %2177 = vmatprep.subr.mxu0 %v571
    %2178 = vmatpush1.msra.mxu0 %v570
    %2179 = vmatprep.subr.mxu0 %v575
    %2180 = vmatpush1.msra.mxu0 %v574
    %2181 = vmatprep.subr.mxu0 %v579
    %2182 = vmatpush1.msra.mxu0 %v578
    %2183 = vmatprep.subr.mxu0 %v583
    %2184 = vmatpush1.msra.mxu0 %v582
    %2185 = vmatprep.subr.mxu0 %v587
    %2186 = vmatpush1.msra.mxu0 %v586
    %2187 = vmatprep.subr.mxu0 %v591
    %2188 = vmatpush1.msra.mxu0 %v590
    %2189 = vmatprep.subr.mxu0 0.0
    %2190 = vmatpush1.msra.mxu0 0.0
    %2191 = vmatprep.subr.mxu0 0.0
    %2192 = vmatpush1.msra.mxu0 0.0
    %2193 = vmatprep.subr.mxu0 0.0
    %2194 = vmatpush1.msra.mxu0 0.0
    %2195 = vmatprep.subr.mxu0 0.0
    %2196 = vmatpush1.msra.mxu0 0.0
    %2197 = vmatprep.subr.mxu0 0.0
    %2198 = vmatpush1.msra.mxu0 0.0
    %2199 = vmatprep.subr.mxu0 0.0
    %2200 = vmatpush1.msra.mxu0 0.0
    %2201 = vmatprep.subr.mxu0 0.0
    %2202 = vmatpush1.msra.mxu0 0.0
    %2203 = vmatprep.subr.mxu0 0.0
    %2204 = vmatpush1.msra.mxu0 0.0
    %2205 = vmatprep.subr.mxu0 0.0
    %2206 = vmatpush1.msra.mxu0 0.0
    %2207 = vmatprep.subr.mxu0 0.0
    %2208 = vmatpush1.msra.mxu0 0.0
    %2209 = vmatprep.subr.mxu0 0.0
    %2210 = vmatpush1.msra.mxu0 0.0
    %2211 = vmatprep.subr.mxu0 0.0
    %2212 = vmatpush1.msra.mxu0 0.0
    %2213 = vmatprep.subr.mxu0 0.0
    %2214 = vmatpush1.msra.mxu0 0.0
    %2215 = vmatprep.subr.mxu0 0.0
    %2216 = vmatpush1.msra.mxu0 0.0
    %2217 = vmatprep.subr.mxu0 0.0
    %2218 = vmatpush1.msra.mxu0 0.0
    %2219 = vmatprep.subr.mxu0 0.0
    %2220 = vmatpush1.msra.mxu0 0.0
    %2221 = vmatprep.mubr.f32.mxu0 0.0
    %2222 = vmatmul.mubr.f32.gmra.mrb[0].mxu0 %v1919
    %v2223 = vpop.f32.mrb[0].mxu0
    %v2224 = vadd.f32 0.0, %v2223
    %v2225 = vpop.f32.mrb[0].mxu0
    %v2226 = vadd.f32 0.0, %v2225
    %2227 = vdwg.mxu0
    %v2228 = vadd.f32 %v393, %v2153
    %v2229 = vadd.f32 %v395, %v2155
    %v2230 = vadd.f32 %v506, %v2224
    %v2231 = vadd.f32 %v508, %v2226
    %v2232 = vxor.u32 %v2228, 2147483648
    %v2233 = vmul.f32 %v2232, 1.442695
    %v2234 = vpow.pop %v2233
    %v2235 = vadd.f32 %v2234, 1.0
    %v2236 = vrcp.pop %v2235
    %v2237 = vmul.f32 1.0, %v2236
    %v2238 = vxor.u32 %v2229, 2147483648
    %v2239 = vmul.f32 %v2238, 1.442695
    %v2240 = vpow.pop %v2239
    %v2241 = vadd.f32 %v2240, 1.0
    %v2242 = vrcp.pop %v2241
    %v2243 = vmul.f32 1.0, %v2242
    %v2244 = vtanh.pop %v2230
    %v2245 = vxor.u32 %v2231, 2147483648
    %v2246 = vmul.f32 %v2245, 1.442695
    %v2247 = vpow.pop %v2246
    %v2248 = vadd.f32 %v2247, 1.0
    %v2249 = vrcp.pop %v2248
    %v2250 = vmul.f32 1.0, %v2249
    %v2251 = vmul.f32 %v2243, %v1917
    %v2252 = vmul.f32 %v2237, %v2244
    %v2253 = vadd.f32 %v2251, %v2252
    %v2254 = vtanh.pop %v2253
    %v2255 = vmul.f32 %v2250, %v2254
    %2256 = vmatprep.subr.mxu0 %v593
    %2257 = vmatpush1.msra.mxu0 %v592
    %2258 = vmatprep.subr.mxu0 %v597
    %2259 = vmatpush1.msra.mxu0 %v596
    %2260 = vmatprep.subr.mxu0 %v601
    %2261 = vmatpush1.msra.mxu0 %v600
    %2262 = vmatprep.subr.mxu0 %v605
    %2263 = vmatpush1.msra.mxu0 %v604
    %2264 = vmatprep.subr.mxu0 %v609
    %2265 = vmatpush1.msra.mxu0 %v608
    %2266 = vmatprep.subr.mxu0 %v613
    %2267 = vmatpush1.msra.mxu0 %v612
    %2268 = vmatprep.subr.mxu0 %v617
    %2269 = vmatpush1.msra.mxu0 %v616
    %2270 = vmatprep.subr.mxu0 %v621
    %2271 = vmatpush1.msra.mxu0 %v620
    %2272 = vmatprep.subr.mxu0 %v625
    %2273 = vmatpush1.msra.mxu0 %v624
    %2274 = vmatprep.subr.mxu0 %v629
    %2275 = vmatpush1.msra.mxu0 %v628
    %2276 = vmatprep.subr.mxu0 %v633
    %2277 = vmatpush1.msra.mxu0 %v632
    %2278 = vmatprep.subr.mxu0 %v637
    %2279 = vmatpush1.msra.mxu0 %v636
    %2280 = vmatprep.subr.mxu0 %v641
    %2281 = vmatpush1.msra.mxu0 %v640
    %2282 = vmatprep.subr.mxu0 %v645
    %2283 = vmatpush1.msra.mxu0 %v644
    %2284 = vmatprep.subr.mxu0 %v649
    %2285 = vmatpush1.msra.mxu0 %v648
    %2286 = vmatprep.subr.mxu0 %v653
    %2287 = vmatpush1.msra.mxu0 %v652
    %2288 = vmatprep.subr.mxu0 %v657
    %2289 = vmatpush1.msra.mxu0 %v656
    %2290 = vmatprep.subr.mxu0 %v661
    %2291 = vmatpush1.msra.mxu0 %v660
    %2292 = vmatprep.subr.mxu0 %v665
    %2293 = vmatpush1.msra.mxu0 %v664
    %2294 = vmatprep.subr.mxu0 %v669
    %2295 = vmatpush1.msra.mxu0 %v668
    %2296 = vmatprep.subr.mxu0 %v673
    %2297 = vmatpush1.msra.mxu0 %v672
    %2298 = vmatprep.subr.mxu0 %v677
    %2299 = vmatpush1.msra.mxu0 %v676
    %2300 = vmatprep.subr.mxu0 %v681
    %2301 = vmatpush1.msra.mxu0 %v680
    %2302 = vmatprep.subr.mxu0 %v685
    %2303 = vmatpush1.msra.mxu0 %v684
    %2304 = vmatprep.subr.mxu0 %v689
    %2305 = vmatpush1.msra.mxu0 %v688
    %2306 = vmatprep.subr.mxu0 %v693
    %2307 = vmatpush1.msra.mxu0 %v692
    %2308 = vmatprep.subr.mxu0 %v697
    %2309 = vmatpush1.msra.mxu0 %v696
    %2310 = vmatprep.subr.mxu0 %v701
    %2311 = vmatpush1.msra.mxu0 %v700
    %2312 = vmatprep.subr.mxu0 %v705
    %2313 = vmatpush1.msra.mxu0 %v704
    %2314 = vmatprep.subr.mxu0 %v709
    %2315 = vmatpush1.msra.mxu0 %v708
    %2316 = vmatprep.subr.mxu0 %v713
    %2317 = vmatpush1.msra.mxu0 %v712
    %2318 = vmatprep.subr.mxu0 %v717
    %2319 = vmatpush1.msra.mxu0 %v716
    %2320 = vmatprep.mubr.f32.mxu0 %v2085
    %2321 = vmatmul.mubr.f32.gmra.mrb[0].mxu0 %v2255
    %v2322 = vpop.f32.mrb[0].mxu0
    %v2323 = vadd.f32 %v895, %v2322
    %v2324 = vpop.f32.mrb[0].mxu0
    %v2325 = vadd.f32 %v899, %v2324
    %2326 = vdwg.mxu0
    %2327 = vmatprep.subr.mxu0 %v595
    %2328 = vmatpush1.msra.mxu0 %v594
    %2329 = vmatprep.subr.mxu0 %v599
    %2330 = vmatpush1.msra.mxu0 %v598
    %2331 = vmatprep.subr.mxu0 %v603
    %2332 = vmatpush1.msra.mxu0 %v602
    %2333 = vmatprep.subr.mxu0 %v607
    %2334 = vmatpush1.msra.mxu0 %v606
    %2335 = vmatprep.subr.mxu0 %v611
    %2336 = vmatpush1.msra.mxu0 %v610
    %2337 = vmatprep.subr.mxu0 %v615
    %2338 = vmatpush1.msra.mxu0 %v614
    %2339 = vmatprep.subr.mxu0 %v619
    %2340 = vmatpush1.msra.mxu0 %v618
    %2341 = vmatprep.subr.mxu0 %v623
    %2342 = vmatpush1.msra.mxu0 %v622
    %2343 = vmatprep.subr.mxu0 %v627
    %2344 = vmatpush1.msra.mxu0 %v626
    %2345 = vmatprep.subr.mxu0 %v631
    %2346 = vmatpush1.msra.mxu0 %v630
    %2347 = vmatprep.subr.mxu0 %v635
    %2348 = vmatpush1.msra.mxu0 %v634
    %2349 = vmatprep.subr.mxu0 %v639
    %2350 = vmatpush1.msra.mxu0 %v638
    %2351 = vmatprep.subr.mxu0 %v643
    %2352 = vmatpush1.msra.mxu0 %v642
    %2353 = vmatprep.subr.mxu0 %v647
    %2354 = vmatpush1.msra.mxu0 %v646
    %2355 = vmatprep.subr.mxu0 %v651
    %2356 = vmatpush1.msra.mxu0 %v650
    %2357 = vmatprep.subr.mxu0 %v655
    %2358 = vmatpush1.msra.mxu0 %v654
    %2359 = vmatprep.subr.mxu0 %v659
    %2360 = vmatpush1.msra.mxu0 %v658
    %2361 = vmatprep.subr.mxu0 %v663
    %2362 = vmatpush1.msra.mxu0 %v662
    %2363 = vmatprep.subr.mxu0 %v667
    %2364 = vmatpush1.msra.mxu0 %v666
    %2365 = vmatprep.subr.mxu0 %v671
    %2366 = vmatpush1.msra.mxu0 %v670
    %2367 = vmatprep.subr.mxu0 %v675
    %2368 = vmatpush1.msra.mxu0 %v674
    %2369 = vmatprep.subr.mxu0 %v679
    %2370 = vmatpush1.msra.mxu0 %v678
    %2371 = vmatprep.subr.mxu0 %v683
    %2372 = vmatpush1.msra.mxu0 %v682
    %2373 = vmatprep.subr.mxu0 %v687
    %2374 = vmatpush1.msra.mxu0 %v686
    %2375 = vmatprep.subr.mxu0 %v691
    %2376 = vmatpush1.msra.mxu0 %v690
    %2377 = vmatprep.subr.mxu0 %v695
    %2378 = vmatpush1.msra.mxu0 %v694
    %2379 = vmatprep.subr.mxu0 %v699
    %2380 = vmatpush1.msra.mxu0 %v698
    %2381 = vmatprep.subr.mxu0 %v703
    %2382 = vmatpush1.msra.mxu0 %v702
    %2383 = vmatprep.subr.mxu0 %v707
    %2384 = vmatpush1.msra.mxu0 %v706
    %2385 = vmatprep.subr.mxu0 %v711
    %2386 = vmatpush1.msra.mxu0 %v710
    %2387 = vmatprep.subr.mxu0 %v715
    %2388 = vmatpush1.msra.mxu0 %v714
    %2389 = vmatprep.subr.mxu0 %v719
    %2390 = vmatpush1.msra.mxu0 %v718
    %2391 = vmatprep.mubr.f32.mxu0 %v2085
    %2392 = vmatmul.mubr.f32.gmra.mrb[0].mxu0 %v2255
    %v2393 = vpop.f32.mrb[0].mxu0
    %v2394 = vadd.f32 %v903, %v2393
    %v2395 = vpop.f32.mrb[0].mxu0
    %v2396 = vadd.f32 %v907, %v2395
    %2397 = vdwg.mxu0
    %v2398 = vxor.u32 %v2323, 2147483648
    %v2399 = vmul.f32 %v2398, 1.442695
    %v2400 = vpow.pop %v2399
    %v2401 = vadd.f32 %v2400, 1.0
    %v2402 = vrcp.pop %v2401
    %v2403 = vmul.f32 1.0, %v2402
    %v2404 = vxor.u32 %v2325, 2147483648
    %v2405 = vmul.f32 %v2404, 1.442695
    %v2406 = vpow.pop %v2405
    %v2407 = vadd.f32 %v2406, 1.0
    %v2408 = vrcp.pop %v2407
    %v2409 = vmul.f32 1.0, %v2408
    %v2410 = vtanh.pop %v2394
    %v2411 = vxor.u32 %v2396, 2147483648
    %v2412 = vmul.f32 %v2411, 1.442695
    %v2413 = vpow.pop %v2412
    %v2414 = vadd.f32 %v2413, 1.0
    %v2415 = vrcp.pop %v2414
    %v2416 = vmul.f32 1.0, %v2415
    %v2417 = vmul.f32 %v2409, %v2083
    %v2418 = vmul.f32 %v2403, %v2410
    %v2419 = vadd.f32 %v2417, %v2418
    %v2420 = vtanh.pop %v2419
    %v2421 = vmul.f32 %v2416, %v2420
    %2422 = vmatprep.subr.mxu0 %v529
    %2423 = vmatpush1.msra.mxu0 %v528
    %2424 = vmatprep.subr.mxu0 %v533
    %2425 = vmatpush1.msra.mxu0 %v532
    %2426 = vmatprep.subr.mxu0 %v537
    %2427 = vmatpush1.msra.mxu0 %v536
    %2428 = vmatprep.subr.mxu0 %v541
    %2429 = vmatpush1.msra.mxu0 %v540
    %2430 = vmatprep.subr.mxu0 %v545
    %2431 = vmatpush1.msra.mxu0 %v544
    %2432 = vmatprep.subr.mxu0 %v549
    %2433 = vmatpush1.msra.mxu0 %v548
    %2434 = vmatprep.subr.mxu0 %v553
    %2435 = vmatpush1.msra.mxu0 %v552
    %2436 = vmatprep.subr.mxu0 %v557
    %2437 = vmatpush1.msra.mxu0 %v556
    %2438 = vmatprep.subr.mxu0 %v561
    %2439 = vmatpush1.msra.mxu0 %v560
    %2440 = vmatprep.subr.mxu0 %v565
    %2441 = vmatpush1.msra.mxu0 %v564
    %2442 = vmatprep.subr.mxu0 %v569
    %2443 = vmatpush1.msra.mxu0 %v568
    %2444 = vmatprep.subr.mxu0 %v573
    %2445 = vmatpush1.msra.mxu0 %v572
    %2446 = vmatprep.subr.mxu0 %v577
    %2447 = vmatpush1.msra.mxu0 %v576
    %2448 = vmatprep.subr.mxu0 %v581
    %2449 = vmatpush1.msra.mxu0 %v580
    %2450 = vmatprep.subr.mxu0 %v585
    %2451 = vmatpush1.msra.mxu0 %v584
    %2452 = vmatprep.subr.mxu0 %v589
    %2453 = vmatpush1.msra.mxu0 %v588
    %2454 = vmatprep.subr.mxu0 0.0
    %2455 = vmatpush1.msra.mxu0 0.0
    %2456 = vmatprep.subr.mxu0 0.0
    %2457 = vmatpush1.msra.mxu0 0.0
    %2458 = vmatprep.subr.mxu0 0.0
    %2459 = vmatpush1.msra.mxu0 0.0
    %2460 = vmatprep.subr.mxu0 0.0
    %2461 = vmatpush1.msra.mxu0 0.0
    %2462 = vmatprep.subr.mxu0 0.0
    %2463 = vmatpush1.msra.mxu0 0.0
    %2464 = vmatprep.subr.mxu0 0.0
    %2465 = vmatpush1.msra.mxu0 0.0
    %2466 = vmatprep.subr.mxu0 0.0
    %2467 = vmatpush1.msra.mxu0 0.0
    %2468 = vmatprep.subr.mxu0 0.0
    %2469 = vmatpush1.msra.mxu0 0.0
    %2470 = vmatprep.subr.mxu0 0.0
    %2471 = vmatpush1.msra.mxu0 0.0
    %2472 = vmatprep.subr.mxu0 0.0
    %2473 = vmatpush1.msra.mxu0 0.0
    %2474 = vmatprep.subr.mxu0 0.0
    %2475 = vmatpush1.msra.mxu0 0.0
    %2476 = vmatprep.subr.mxu0 0.0
    %2477 = vmatpush1.msra.mxu0 0.0
    %2478 = vmatprep.subr.mxu0 0.0
    %2479 = vmatpush1.msra.mxu0 0.0
    %2480 = vmatprep.subr.mxu0 0.0
    %2481 = vmatpush1.msra.mxu0 0.0
    %2482 = vmatprep.subr.mxu0 0.0
    %2483 = vmatpush1.msra.mxu0 0.0
    %2484 = vmatprep.subr.mxu0 0.0
    %2485 = vmatpush1.msra.mxu0 0.0
    %2486 = vmatprep.mubr.f32.mxu0 0.0
    %2487 = vmatmul.mubr.f32.gmra.mrb[0].mxu0 %v2255
    %v2488 = vpop.f32.mrb[0].mxu0
    %v2489 = vadd.f32 0.0, %v2488
    %v2490 = vpop.f32.mrb[0].mxu0
    %v2491 = vadd.f32 0.0, %v2490
    %2492 = vdwg.mxu0
    %2493 = vmatprep.subr.mxu0 %v531
    %2494 = vmatpush1.msra.mxu0 %v530
    %2495 = vmatprep.subr.mxu0 %v535
    %2496 = vmatpush1.msra.mxu0 %v534
    %2497 = vmatprep.subr.mxu0 %v539
    %2498 = vmatpush1.msra.mxu0 %v538
    %2499 = vmatprep.subr.mxu0 %v543
    %2500 = vmatpush1.msra.mxu0 %v542
    %2501 = vmatprep.subr.mxu0 %v547
    %2502 = vmatpush1.msra.mxu0 %v546
    %2503 = vmatprep.subr.mxu0 %v551
    %2504 = vmatpush1.msra.mxu0 %v550
    %2505 = vmatprep.subr.mxu0 %v555
    %2506 = vmatpush1.msra.mxu0 %v554
    %2507 = vmatprep.subr.mxu0 %v559
    %2508 = vmatpush1.msra.mxu0 %v558
    %2509 = vmatprep.subr.mxu0 %v563
    %2510 = vmatpush1.msra.mxu0 %v562
    %2511 = vmatprep.subr.mxu0 %v567
    %2512 = vmatpush1.msra.mxu0 %v566
    %2513 = vmatprep.subr.mxu0 %v571
    %2514 = vmatpush1.msra.mxu0 %v570
    %2515 = vmatprep.subr.mxu0 %v575
    %2516 = vmatpush1.msra.mxu0 %v574
    %2517 = vmatprep.subr.mxu0 %v579
    %2518 = vmatpush1.msra.mxu0 %v578
    %2519 = vmatprep.subr.mxu0 %v583
    %2520 = vmatpush1.msra.mxu0 %v582
    %2521 = vmatprep.subr.mxu0 %v587
    %2522 = vmatpush1.msra.mxu0 %v586
    %2523 = vmatprep.subr.mxu0 %v591
    %2524 = vmatpush1.msra.mxu0 %v590
    %2525 = vmatprep.subr.mxu0 0.0
    %2526 = vmatpush1.msra.mxu0 0.0
    %2527 = vmatprep.subr.mxu0 0.0
    %2528 = vmatpush1.msra.mxu0 0.0
    %2529 = vmatprep.subr.mxu0 0.0
    %2530 = vmatpush1.msra.mxu0 0.0
    %2531 = vmatprep.subr.mxu0 0.0
    %2532 = vmatpush1.msra.mxu0 0.0
    %2533 = vmatprep.subr.mxu0 0.0
    %2534 = vmatpush1.msra.mxu0 0.0
    %2535 = vmatprep.subr.mxu0 0.0
    %2536 = vmatpush1.msra.mxu0 0.0
    %2537 = vmatprep.subr.mxu0 0.0
    %2538 = vmatpush1.msra.mxu0 0.0
    %2539 = vmatprep.subr.mxu0 0.0
    %2540 = vmatpush1.msra.mxu0 0.0
    %2541 = vmatprep.subr.mxu0 0.0
    %2542 = vmatpush1.msra.mxu0 0.0
    %2543 = vmatprep.subr.mxu0 0.0
    %2544 = vmatpush1.msra.mxu0 0.0
    %2545 = vmatprep.subr.mxu0 0.0
    %2546 = vmatpush1.msra.mxu0 0.0
    %2547 = vmatprep.subr.mxu0 0.0
    %2548 = vmatpush1.msra.mxu0 0.0
    %2549 = vmatprep.subr.mxu0 0.0
    %2550 = vmatpush1.msra.mxu0 0.0
    %2551 = vmatprep.subr.mxu0 0.0
    %2552 = vmatpush1.msra.mxu0 0.0
    %2553 = vmatprep.subr.mxu0 0.0
    %2554 = vmatpush1.msra.mxu0 0.0
    %2555 = vmatprep.subr.mxu0 0.0
    %2556 = vmatpush1.msra.mxu0 0.0
    %2557 = vmatprep.mubr.f32.mxu0 0.0
    %2558 = vmatmul.mubr.f32.gmra.mrb[0].mxu0 %v2255
    %v2559 = vpop.f32.mrb[0].mxu0
    %v2560 = vadd.f32 0.0, %v2559
    %v2561 = vpop.f32.mrb[0].mxu0
    %v2562 = vadd.f32 0.0, %v2561
    %2563 = vdwg.mxu0
    %v2564 = vadd.f32 %v399, %v2489
    %v2565 = vadd.f32 %v401, %v2491
    %v2566 = vadd.f32 %v512, %v2560
    %v2567 = vadd.f32 %v514, %v2562
    %v2568 = vxor.u32 %v2564, 2147483648
    %v2569 = vmul.f32 %v2568, 1.442695
    %v2570 = vpow.pop %v2569
    %v2571 = vadd.f32 %v2570, 1.0
    %v2572 = vrcp.pop %v2571
    %v2573 = vmul.f32 1.0, %v2572
    %v2574 = vxor.u32 %v2565, 2147483648
    %v2575 = vmul.f32 %v2574, 1.442695
    %v2576 = vpow.pop %v2575
    %v2577 = vadd.f32 %v2576, 1.0
    %v2578 = vrcp.pop %v2577
    %v2579 = vmul.f32 1.0, %v2578
    %v2580 = vtanh.pop %v2566
    %v2581 = vxor.u32 %v2567, 2147483648
    %v2582 = vmul.f32 %v2581, 1.442695
    %v2583 = vpow.pop %v2582
    %v2584 = vadd.f32 %v2583, 1.0
    %v2585 = vrcp.pop %v2584
    %v2586 = vmul.f32 1.0, %v2585
    %v2587 = vmul.f32 %v2579, %v2253
    %v2588 = vmul.f32 %v2573, %v2580
    %v2589 = vadd.f32 %v2587, %v2588
    %v2590 = vtanh.pop %v2589
    %v2591 = vmul.f32 %v2586, %v2590
    %2592 = vmatprep.subr.mxu0 %v593
    %2593 = vmatpush1.msra.mxu0 %v592
    %2594 = vmatprep.subr.mxu0 %v597
    %2595 = vmatpush1.msra.mxu0 %v596
    %2596 = vmatprep.subr.mxu0 %v601
    %2597 = vmatpush1.msra.mxu0 %v600
    %2598 = vmatprep.subr.mxu0 %v605
    %2599 = vmatpush1.msra.mxu0 %v604
    %2600 = vmatprep.subr.mxu0 %v609
    %2601 = vmatpush1.msra.mxu0 %v608
    %2602 = vmatprep.subr.mxu0 %v613
    %2603 = vmatpush1.msra.mxu0 %v612
    %2604 = vmatprep.subr.mxu0 %v617
    %2605 = vmatpush1.msra.mxu0 %v616
    %2606 = vmatprep.subr.mxu0 %v621
    %2607 = vmatpush1.msra.mxu0 %v620
    %2608 = vmatprep.subr.mxu0 %v625
    %2609 = vmatpush1.msra.mxu0 %v624
    %2610 = vmatprep.subr.mxu0 %v629
    %2611 = vmatpush1.msra.mxu0 %v628
    %2612 = vmatprep.subr.mxu0 %v633
    %2613 = vmatpush1.msra.mxu0 %v632
    %2614 = vmatprep.subr.mxu0 %v637
    %2615 = vmatpush1.msra.mxu0 %v636
    %2616 = vmatprep.subr.mxu0 %v641
    %2617 = vmatpush1.msra.mxu0 %v640
    %2618 = vmatprep.subr.mxu0 %v645
    %2619 = vmatpush1.msra.mxu0 %v644
    %2620 = vmatprep.subr.mxu0 %v649
    %2621 = vmatpush1.msra.mxu0 %v648
    %2622 = vmatprep.subr.mxu0 %v653
    %2623 = vmatpush1.msra.mxu0 %v652
    %2624 = vmatprep.subr.mxu0 %v657
    %2625 = vmatpush1.msra.mxu0 %v656
    %2626 = vmatprep.subr.mxu0 %v661
    %2627 = vmatpush1.msra.mxu0 %v660
    %2628 = vmatprep.subr.mxu0 %v665
    %2629 = vmatpush1.msra.mxu0 %v664
    %2630 = vmatprep.subr.mxu0 %v669
    %2631 = vmatpush1.msra.mxu0 %v668
    %2632 = vmatprep.subr.mxu0 %v673
    %2633 = vmatpush1.msra.mxu0 %v672
    %2634 = vmatprep.subr.mxu0 %v677
    %2635 = vmatpush1.msra.mxu0 %v676
    %2636 = vmatprep.subr.mxu0 %v681
    %2637 = vmatpush1.msra.mxu0 %v680
    %2638 = vmatprep.subr.mxu0 %v685
    %2639 = vmatpush1.msra.mxu0 %v684
    %2640 = vmatprep.subr.mxu0 %v689
    %2641 = vmatpush1.msra.mxu0 %v688
    %2642 = vmatprep.subr.mxu0 %v693
    %2643 = vmatpush1.msra.mxu0 %v692
    %2644 = vmatprep.subr.mxu0 %v697
    %2645 = vmatpush1.msra.mxu0 %v696
    %2646 = vmatprep.subr.mxu0 %v701
    %2647 = vmatpush1.msra.mxu0 %v700
    %2648 = vmatprep.subr.mxu0 %v705
    %2649 = vmatpush1.msra.mxu0 %v704
    %2650 = vmatprep.subr.mxu0 %v709
    %2651 = vmatpush1.msra.mxu0 %v708
    %2652 = vmatprep.subr.mxu0 %v713
    %2653 = vmatpush1.msra.mxu0 %v712
    %2654 = vmatprep.subr.mxu0 %v717
    %2655 = vmatpush1.msra.mxu0 %v716
    %2656 = vmatprep.mubr.f32.mxu0 %v2421
    %2657 = vmatmul.mubr.f32.gmra.mrb[0].mxu0 %v2591
    %v2658 = vpop.f32.mrb[0].mxu0
    %v2659 = vadd.f32 %v895, %v2658
    %v2660 = vpop.f32.mrb[0].mxu0
    %v2661 = vadd.f32 %v899, %v2660
    %2662 = vdwg.mxu0
    %2663 = vmatprep.subr.mxu0 %v595
    %2664 = vmatpush1.msra.mxu0 %v594
    %2665 = vmatprep.subr.mxu0 %v599
    %2666 = vmatpush1.msra.mxu0 %v598
    %2667 = vmatprep.subr.mxu0 %v603
    %2668 = vmatpush1.msra.mxu0 %v602
    %2669 = vmatprep.subr.mxu0 %v607
    %2670 = vmatpush1.msra.mxu0 %v606
    %2671 = vmatprep.subr.mxu0 %v611
    %2672 = vmatpush1.msra.mxu0 %v610
    %2673 = vmatprep.subr.mxu0 %v615
    %2674 = vmatpush1.msra.mxu0 %v614
    %2675 = vmatprep.subr.mxu0 %v619
    %2676 = vmatpush1.msra.mxu0 %v618
    %2677 = vmatprep.subr.mxu0 %v623
    %2678 = vmatpush1.msra.mxu0 %v622
    %2679 = vmatprep.subr.mxu0 %v627
    %2680 = vmatpush1.msra.mxu0 %v626
    %2681 = vmatprep.subr.mxu0 %v631
    %2682 = vmatpush1.msra.mxu0 %v630
    %2683 = vmatprep.subr.mxu0 %v635
    %2684 = vmatpush1.msra.mxu0 %v634
    %2685 = vmatprep.subr.mxu0 %v639
    %2686 = vmatpush1.msra.mxu0 %v638
    %2687 = vmatprep.subr.mxu0 %v643
    %2688 = vmatpush1.msra.mxu0 %v642
    %2689 = vmatprep.subr.mxu0 %v647
    %2690 = vmatpush1.msra.mxu0 %v646
    %2691 = vmatprep.subr.mxu0 %v651
    %2692 = vmatpush1.msra.mxu0 %v650
    %2693 = vmatprep.subr.mxu0 %v655
    %2694 = vmatpush1.msra.mxu0 %v654
    %2695 = vmatprep.subr.mxu0 %v659
    %2696 = vmatpush1.msra.mxu0 %v658
    %2697 = vmatprep.subr.mxu0 %v663
    %2698 = vmatpush1.msra.mxu0 %v662
    %2699 = vmatprep.subr.mxu0 %v667
    %2700 = vmatpush1.msra.mxu0 %v666
    %2701 = vmatprep.subr.mxu0 %v671
    %2702 = vmatpush1.msra.mxu0 %v670
    %2703 = vmatprep.subr.mxu0 %v675
    %2704 = vmatpush1.msra.mxu0 %v674
    %2705 = vmatprep.subr.mxu0 %v679
    %2706 = vmatpush1.msra.mxu0 %v678
    %2707 = vmatprep.subr.mxu0 %v683
    %2708 = vmatpush1.msra.mxu0 %v682
    %2709 = vmatprep.subr.mxu0 %v687
    %2710 = vmatpush1.msra.mxu0 %v686
    %2711 = vmatprep.subr.mxu0 %v691
    %2712 = vmatpush1.msra.mxu0 %v690
    %2713 = vmatprep.subr.mxu0 %v695
    %2714 = vmatpush1.msra.mxu0 %v694
    %2715 = vmatprep.subr.mxu0 %v699
    %2716 = vmatpush1.msra.mxu0 %v698
    %2717 = vmatprep.subr.mxu0 %v703
    %2718 = vmatpush1.msra.mxu0 %v702
    %2719 = vmatprep.subr.mxu0 %v707
    %2720 = vmatpush1.msra.mxu0 %v706
    %2721 = vmatprep.subr.mxu0 %v711
    %2722 = vmatpush1.msra.mxu0 %v710
    %2723 = vmatprep.subr.mxu0 %v715
    %2724 = vmatpush1.msra.mxu0 %v714
    %2725 = vmatprep.subr.mxu0 %v719
    %2726 = vmatpush1.msra.mxu0 %v718
    %2727 = vmatprep.mubr.f32.mxu0 %v2421
    %2728 = vmatmul.mubr.f32.gmra.mrb[0].mxu0 %v2591
    %v2729 = vpop.f32.mrb[0].mxu0
    %v2730 = vadd.f32 %v903, %v2729
    %v2731 = vpop.f32.mrb[0].mxu0
    %v2732 = vadd.f32 %v907, %v2731
    %2733 = vdwg.mxu0
    %v2734 = vxor.u32 %v2659, 2147483648
    %v2735 = vmul.f32 %v2734, 1.442695
    %v2736 = vpow.pop %v2735
    %v2737 = vadd.f32 %v2736, 1.0
    %v2738 = vrcp.pop %v2737
    %v2739 = vmul.f32 1.0, %v2738
    %v2740 = vxor.u32 %v2661, 2147483648
    %v2741 = vmul.f32 %v2740, 1.442695
    %v2742 = vpow.pop %v2741
    %v2743 = vadd.f32 %v2742, 1.0
    %v2744 = vrcp.pop %v2743
    %v2745 = vmul.f32 1.0, %v2744
    %v2746 = vtanh.pop %v2730
    %v2747 = vxor.u32 %v2732, 2147483648
    %v2748 = vmul.f32 %v2747, 1.442695
    %v2749 = vpow.pop %v2748
    %v2750 = vadd.f32 %v2749, 1.0
    %v2751 = vrcp.pop %v2750
    %v2752 = vmul.f32 1.0, %v2751
    %v2753 = vmul.f32 %v2745, %v2419
    %v2754 = vmul.f32 %v2739, %v2746
    %v2755 = vadd.f32 %v2753, %v2754
    %v2756 = vtanh.pop %v2755
    %v2757 = vmul.f32 %v2752, %v2756
    %2758 = vmatprep.subr.mxu0 %v529
    %2759 = vmatpush1.msra.mxu0 %v528
    %2760 = vmatprep.subr.mxu0 %v533
    %2761 = vmatpush1.msra.mxu0 %v532
    %2762 = vmatprep.subr.mxu0 %v537
    %2763 = vmatpush1.msra.mxu0 %v536
    %2764 = vmatprep.subr.mxu0 %v541
    %2765 = vmatpush1.msra.mxu0 %v540
    %2766 = vmatprep.subr.mxu0 %v545
    %2767 = vmatpush1.msra.mxu0 %v544
    %2768 = vmatprep.subr.mxu0 %v549
    %2769 = vmatpush1.msra.mxu0 %v548
    %2770 = vmatprep.subr.mxu0 %v553
    %2771 = vmatpush1.msra.mxu0 %v552
    %2772 = vmatprep.subr.mxu0 %v557
    %2773 = vmatpush1.msra.mxu0 %v556
    %2774 = vmatprep.subr.mxu0 %v561
    %2775 = vmatpush1.msra.mxu0 %v560
    %2776 = vmatprep.subr.mxu0 %v565
    %2777 = vmatpush1.msra.mxu0 %v564
    %2778 = vmatprep.subr.mxu0 %v569
    %2779 = vmatpush1.msra.mxu0 %v568
    %2780 = vmatprep.subr.mxu0 %v573
    %2781 = vmatpush1.msra.mxu0 %v572
    %2782 = vmatprep.subr.mxu0 %v577
    %2783 = vmatpush1.msra.mxu0 %v576
    %2784 = vmatprep.subr.mxu0 %v581
    %2785 = vmatpush1.msra.mxu0 %v580
    %2786 = vmatprep.subr.mxu0 %v585
    %2787 = vmatpush1.msra.mxu0 %v584
    %2788 = vmatprep.subr.mxu0 %v589
    %2789 = vmatpush1.msra.mxu0 %v588
    %2790 = vmatprep.subr.mxu0 0.0
    %2791 = vmatpush1.msra.mxu0 0.0
    %2792 = vmatprep.subr.mxu0 0.0
    %2793 = vmatpush1.msra.mxu0 0.0
    %2794 = vmatprep.subr.mxu0 0.0
    %2795 = vmatpush1.msra.mxu0 0.0
    %2796 = vmatprep.subr.mxu0 0.0
    %2797 = vmatpush1.msra.mxu0 0.0
    %2798 = vmatprep.subr.mxu0 0.0
    %2799 = vmatpush1.msra.mxu0 0.0
    %2800 = vmatprep.subr.mxu0 0.0
    %2801 = vmatpush1.msra.mxu0 0.0
    %2802 = vmatprep.subr.mxu0 0.0
    %2803 = vmatpush1.msra.mxu0 0.0
    %2804 = vmatprep.subr.mxu0 0.0
    %2805 = vmatpush1.msra.mxu0 0.0
    %2806 = vmatprep.subr.mxu0 0.0
    %2807 = vmatpush1.msra.mxu0 0.0
    %2808 = vmatprep.subr.mxu0 0.0
    %2809 = vmatpush1.msra.mxu0 0.0
    %2810 = vmatprep.subr.mxu0 0.0
    %2811 = vmatpush1.msra.mxu0 0.0
    %2812 = vmatprep.subr.mxu0 0.0
    %2813 = vmatpush1.msra.mxu0 0.0
    %2814 = vmatprep.subr.mxu0 0.0
    %2815 = vmatpush1.msra.mxu0 0.0
    %2816 = vmatprep.subr.mxu0 0.0
    %2817 = vmatpush1.msra.mxu0 0.0
    %2818 = vmatprep.subr.mxu0 0.0
    %2819 = vmatpush1.msra.mxu0 0.0
    %2820 = vmatprep.subr.mxu0 0.0
    %2821 = vmatpush1.msra.mxu0 0.0
    %2822 = vmatprep.mubr.f32.mxu0 0.0
    %2823 = vmatmul.mubr.f32.gmra.mrb[0].mxu0 %v2591
    %v2824 = vpop.f32.mrb[0].mxu0
    %v2825 = vadd.f32 0.0, %v2824
    %v2826 = vpop.f32.mrb[0].mxu0
    %v2827 = vadd.f32 0.0, %v2826
    %2828 = vdwg.mxu0
    %2829 = vmatprep.subr.mxu0 %v531
    %2830 = vmatpush1.msra.mxu0 %v530
    %2831 = vmatprep.subr.mxu0 %v535
    %2832 = vmatpush1.msra.mxu0 %v534
    %2833 = vmatprep.subr.mxu0 %v539
    %2834 = vmatpush1.msra.mxu0 %v538
    %2835 = vmatprep.subr.mxu0 %v543
    %2836 = vmatpush1.msra.mxu0 %v542
    %2837 = vmatprep.subr.mxu0 %v547
    %2838 = vmatpush1.msra.mxu0 %v546
    %2839 = vmatprep.subr.mxu0 %v551
    %2840 = vmatpush1.msra.mxu0 %v550
    %2841 = vmatprep.subr.mxu0 %v555
    %2842 = vmatpush1.msra.mxu0 %v554
    %2843 = vmatprep.subr.mxu0 %v559
    %2844 = vmatpush1.msra.mxu0 %v558
    %2845 = vmatprep.subr.mxu0 %v563
    %2846 = vmatpush1.msra.mxu0 %v562
    %2847 = vmatprep.subr.mxu0 %v567
    %2848 = vmatpush1.msra.mxu0 %v566
    %2849 = vmatprep.subr.mxu0 %v571
    %2850 = vmatpush1.msra.mxu0 %v570
    %2851 = vmatprep.subr.mxu0 %v575
    %2852 = vmatpush1.msra.mxu0 %v574
    %2853 = vmatprep.subr.mxu0 %v579
    %2854 = vmatpush1.msra.mxu0 %v578
    %2855 = vmatprep.subr.mxu0 %v583
    %2856 = vmatpush1.msra.mxu0 %v582
    %2857 = vmatprep.subr.mxu0 %v587
    %2858 = vmatpush1.msra.mxu0 %v586
    %2859 = vmatprep.subr.mxu0 %v591
    %2860 = vmatpush1.msra.mxu0 %v590
    %2861 = vmatprep.subr.mxu0 0.0
    %2862 = vmatpush1.msra.mxu0 0.0
    %2863 = vmatprep.subr.mxu0 0.0
    %2864 = vmatpush1.msra.mxu0 0.0
    %2865 = vmatprep.subr.mxu0 0.0
    %2866 = vmatpush1.msra.mxu0 0.0
    %2867 = vmatprep.subr.mxu0 0.0
    %2868 = vmatpush1.msra.mxu0 0.0
    %2869 = vmatprep.subr.mxu0 0.0
    %2870 = vmatpush1.msra.mxu0 0.0
    %2871 = vmatprep.subr.mxu0 0.0
    %2872 = vmatpush1.msra.mxu0 0.0
    %2873 = vmatprep.subr.mxu0 0.0
    %2874 = vmatpush1.msra.mxu0 0.0
    %2875 = vmatprep.subr.mxu0 0.0
    %2876 = vmatpush1.msra.mxu0 0.0
    %2877 = vmatprep.subr.mxu0 0.0
    %2878 = vmatpush1.msra.mxu0 0.0
    %2879 = vmatprep.subr.mxu0 0.0
    %2880 = vmatpush1.msra.mxu0 0.0
    %2881 = vmatprep.subr.mxu0 0.0
    %2882 = vmatpush1.msra.mxu0 0.0
    %2883 = vmatprep.subr.mxu0 0.0
    %2884 = vmatpush1.msra.mxu0 0.0
    %2885 = vmatprep.subr.mxu0 0.0
    %2886 = vmatpush1.msra.mxu0 0.0
    %2887 = vmatprep.subr.mxu0 0.0
    %2888 = vmatpush1.msra.mxu0 0.0
    %2889 = vmatprep.subr.mxu0 0.0
    %2890 = vmatpush1.msra.mxu0 0.0
    %2891 = vmatprep.subr.mxu0 0.0
    %2892 = vmatpush1.msra.mxu0 0.0
    %2893 = vmatprep.mubr.f32.mxu0 0.0
    %2894 = vmatmul.mubr.f32.gmra.mrb[0].mxu0 %v2591
    %v2895 = vpop.f32.mrb[0].mxu0
    %v2896 = vadd.f32 0.0, %v2895
    %v2897 = vpop.f32.mrb[0].mxu0
    %v2898 = vadd.f32 0.0, %v2897
    %2899 = vdwg.mxu0
    %v2900 = vadd.f32 %v405, %v2825
    %v2901 = vadd.f32 %v407, %v2827
    %v2902 = vadd.f32 %v518, %v2896
    %v2903 = vadd.f32 %v520, %v2898
    %v2904 = vxor.u32 %v2900, 2147483648
    %v2905 = vmul.f32 %v2904, 1.442695
    %v2906 = vpow.pop %v2905
    %v2907 = vadd.f32 %v2906, 1.0
    %v2908 = vrcp.pop %v2907
    %v2909 = vmul.f32 1.0, %v2908
    %v2910 = vxor.u32 %v2901, 2147483648
    %v2911 = vmul.f32 %v2910, 1.442695
    %v2912 = vpow.pop %v2911
    %v2913 = vadd.f32 %v2912, 1.0
    %v2914 = vrcp.pop %v2913
    %v2915 = vmul.f32 1.0, %v2914
    %v2916 = vtanh.pop %v2902
    %v2917 = vxor.u32 %v2903, 2147483648
    %v2918 = vmul.f32 %v2917, 1.442695
    %v2919 = vpow.pop %v2918
    %v2920 = vadd.f32 %v2919, 1.0
    %v2921 = vrcp.pop %v2920
    %v2922 = vmul.f32 1.0, %v2921
    %v2923 = vmul.f32 %v2915, %v2589
    %v2924 = vmul.f32 %v2909, %v2916
    %v2925 = vadd.f32 %v2923, %v2924
    %v2926 = vtanh.pop %v2925
    %v2927 = vmul.f32 %v2922, %v2926
    %2928 = vmatprep.subr.mxu0 %v593
    %2929 = vmatpush1.msra.mxu0 %v592
    %2930 = vmatprep.subr.mxu0 %v597
    %2931 = vmatpush1.msra.mxu0 %v596
    %2932 = vmatprep.subr.mxu0 %v601
    %2933 = vmatpush1.msra.mxu0 %v600
    %2934 = vmatprep.subr.mxu0 %v605
    %2935 = vmatpush1.msra.mxu0 %v604
    %2936 = vmatprep.subr.mxu0 %v609
    %2937 = vmatpush1.msra.mxu0 %v608
    %2938 = vmatprep.subr.mxu0 %v613
    %2939 = vmatpush1.msra.mxu0 %v612
    %2940 = vmatprep.subr.mxu0 %v617
    %2941 = vmatpush1.msra.mxu0 %v616
    %2942 = vmatprep.subr.mxu0 %v621
    %2943 = vmatpush1.msra.mxu0 %v620
    %2944 = vmatprep.subr.mxu0 %v625
    %2945 = vmatpush1.msra.mxu0 %v624
    %2946 = vmatprep.subr.mxu0 %v629
    %2947 = vmatpush1.msra.mxu0 %v628
    %2948 = vmatprep.subr.mxu0 %v633
    %2949 = vmatpush1.msra.mxu0 %v632
    %2950 = vmatprep.subr.mxu0 %v637
    %2951 = vmatpush1.msra.mxu0 %v636
    %2952 = vmatprep.subr.mxu0 %v641
    %2953 = vmatpush1.msra.mxu0 %v640
    %2954 = vmatprep.subr.mxu0 %v645
    %2955 = vmatpush1.msra.mxu0 %v644
    %2956 = vmatprep.subr.mxu0 %v649
    %2957 = vmatpush1.msra.mxu0 %v648
    %2958 = vmatprep.subr.mxu0 %v653
    %2959 = vmatpush1.msra.mxu0 %v652
    %2960 = vmatprep.subr.mxu0 %v657
    %2961 = vmatpush1.msra.mxu0 %v656
    %2962 = vmatprep.subr.mxu0 %v661
    %2963 = vmatpush1.msra.mxu0 %v660
    %2964 = vmatprep.subr.mxu0 %v665
    %2965 = vmatpush1.msra.mxu0 %v664
    %2966 = vmatprep.subr.mxu0 %v669
    %2967 = vmatpush1.msra.mxu0 %v668
    %2968 = vmatprep.subr.mxu0 %v673
    %2969 = vmatpush1.msra.mxu0 %v672
    %2970 = vmatprep.subr.mxu0 %v677
    %2971 = vmatpush1.msra.mxu0 %v676
    %2972 = vmatprep.subr.mxu0 %v681
    %2973 = vmatpush1.msra.mxu0 %v680
    %2974 = vmatprep.subr.mxu0 %v685
    %2975 = vmatpush1.msra.mxu0 %v684
    %2976 = vmatprep.subr.mxu0 %v689
    %2977 = vmatpush1.msra.mxu0 %v688
    %2978 = vmatprep.subr.mxu0 %v693
    %2979 = vmatpush1.msra.mxu0 %v692
    %2980 = vmatprep.subr.mxu0 %v697
    %2981 = vmatpush1.msra.mxu0 %v696
    %2982 = vmatprep.subr.mxu0 %v701
    %2983 = vmatpush1.msra.mxu0 %v700
    %2984 = vmatprep.subr.mxu0 %v705
    %2985 = vmatpush1.msra.mxu0 %v704
    %2986 = vmatprep.subr.mxu0 %v709
    %2987 = vmatpush1.msra.mxu0 %v708
    %2988 = vmatprep.subr.mxu0 %v713
    %2989 = vmatpush1.msra.mxu0 %v712
    %2990 = vmatprep.subr.mxu0 %v717
    %2991 = vmatpush1.msra.mxu0 %v716
    %2992 = vmatprep.mubr.f32.mxu0 %v2757
    %2993 = vmatmul.mubr.f32.gmra.mrb[0].mxu0 %v2927
    %v2994 = vpop.f32.mrb[0].mxu0
    %v2995 = vadd.f32 %v895, %v2994
    %v2996 = vpop.f32.mrb[0].mxu0
    %v2997 = vadd.f32 %v899, %v2996
    %2998 = vdwg.mxu0
    %2999 = vmatprep.subr.mxu0 %v595
    %3000 = vmatpush1.msra.mxu0 %v594
    %3001 = vmatprep.subr.mxu0 %v599
    %3002 = vmatpush1.msra.mxu0 %v598
    %3003 = vmatprep.subr.mxu0 %v603
    %3004 = vmatpush1.msra.mxu0 %v602
    %3005 = vmatprep.subr.mxu0 %v607
    %3006 = vmatpush1.msra.mxu0 %v606
    %3007 = vmatprep.subr.mxu0 %v611
    %3008 = vmatpush1.msra.mxu0 %v610
    %3009 = vmatprep.subr.mxu0 %v615
    %3010 = vmatpush1.msra.mxu0 %v614
    %3011 = vmatprep.subr.mxu0 %v619
    %3012 = vmatpush1.msra.mxu0 %v618
    %3013 = vmatprep.subr.mxu0 %v623
    %3014 = vmatpush1.msra.mxu0 %v622
    %3015 = vmatprep.subr.mxu0 %v627
    %3016 = vmatpush1.msra.mxu0 %v626
    %3017 = vmatprep.subr.mxu0 %v631
    %3018 = vmatpush1.msra.mxu0 %v630
    %3019 = vmatprep.subr.mxu0 %v635
    %3020 = vmatpush1.msra.mxu0 %v634
    %3021 = vmatprep.subr.mxu0 %v639
    %3022 = vmatpush1.msra.mxu0 %v638
    %3023 = vmatprep.subr.mxu0 %v643
    %3024 = vmatpush1.msra.mxu0 %v642
    %3025 = vmatprep.subr.mxu0 %v647
    %3026 = vmatpush1.msra.mxu0 %v646
    %3027 = vmatprep.subr.mxu0 %v651
    %3028 = vmatpush1.msra.mxu0 %v650
    %3029 = vmatprep.subr.mxu0 %v655
    %3030 = vmatpush1.msra.mxu0 %v654
    %3031 = vmatprep.subr.mxu0 %v659
    %3032 = vmatpush1.msra.mxu0 %v658
    %3033 = vmatprep.subr.mxu0 %v663
    %3034 = vmatpush1.msra.mxu0 %v662
    %3035 = vmatprep.subr.mxu0 %v667
    %3036 = vmatpush1.msra.mxu0 %v666
    %3037 = vmatprep.subr.mxu0 %v671
    %3038 = vmatpush1.msra.mxu0 %v670
    %3039 = vmatprep.subr.mxu0 %v675
    %3040 = vmatpush1.msra.mxu0 %v674
    %3041 = vmatprep.subr.mxu0 %v679
    %3042 = vmatpush1.msra.mxu0 %v678
    %3043 = vmatprep.subr.mxu0 %v683
    %3044 = vmatpush1.msra.mxu0 %v682
    %3045 = vmatprep.subr.mxu0 %v687
    %3046 = vmatpush1.msra.mxu0 %v686
    %3047 = vmatprep.subr.mxu0 %v691
    %3048 = vmatpush1.msra.mxu0 %v690
    %3049 = vmatprep.subr.mxu0 %v695
    %3050 = vmatpush1.msra.mxu0 %v694
    %3051 = vmatprep.subr.mxu0 %v699
    %3052 = vmatpush1.msra.mxu0 %v698
    %3053 = vmatprep.subr.mxu0 %v703
    %3054 = vmatpush1.msra.mxu0 %v702
    %3055 = vmatprep.subr.mxu0 %v707
    %3056 = vmatpush1.msra.mxu0 %v706
    %3057 = vmatprep.subr.mxu0 %v711
    %3058 = vmatpush1.msra.mxu0 %v710
    %3059 = vmatprep.subr.mxu0 %v715
    %3060 = vmatpush1.msra.mxu0 %v714
    %3061 = vmatprep.subr.mxu0 %v719
    %3062 = vmatpush1.msra.mxu0 %v718
    %3063 = vmatprep.mubr.f32.mxu0 %v2757
    %3064 = vmatmul.mubr.f32.gmra.mrb[0].mxu0 %v2927
    %v3065 = vpop.f32.mrb[0].mxu0
    %v3066 = vadd.f32 %v903, %v3065
    %v3067 = vpop.f32.mrb[0].mxu0
    %v3068 = vadd.f32 %v907, %v3067
    %3069 = vdwg.mxu0
    %v3070 = vxor.u32 %v2995, 2147483648
    %v3071 = vmul.f32 %v3070, 1.442695
    %v3072 = vpow.pop %v3071
    %v3073 = vadd.f32 %v3072, 1.0
    %v3074 = vrcp.pop %v3073
    %v3075 = vmul.f32 1.0, %v3074
    %v3076 = vxor.u32 %v2997, 2147483648
    %v3077 = vmul.f32 %v3076, 1.442695
    %v3078 = vpow.pop %v3077
    %v3079 = vadd.f32 %v3078, 1.0
    %v3080 = vrcp.pop %v3079
    %v3081 = vmul.f32 1.0, %v3080
    %v3082 = vtanh.pop %v3066
    %v3083 = vxor.u32 %v3068, 2147483648
    %v3084 = vmul.f32 %v3083, 1.442695
    %v3085 = vpow.pop %v3084
    %v3086 = vadd.f32 %v3085, 1.0
    %v3087 = vrcp.pop %v3086
    %v3088 = vmul.f32 1.0, %v3087
    %v3089 = vmul.f32 %v3081, %v2755
    %v3090 = vmul.f32 %v3075, %v3082
    %v3091 = vadd.f32 %v3089, %v3090
    %v3092 = vtanh.pop %v3091
    %v3093 = vmul.f32 %v3088, %v3092
    %3094 = vmatprep.subr.mxu0 %v529
    %3095 = vmatpush1.msra.mxu0 %v528
    %3096 = vmatprep.subr.mxu0 %v533
    %3097 = vmatpush1.msra.mxu0 %v532
    %3098 = vmatprep.subr.mxu0 %v537
    %3099 = vmatpush1.msra.mxu0 %v536
    %3100 = vmatprep.subr.mxu0 %v541
    %3101 = vmatpush1.msra.mxu0 %v540
    %3102 = vmatprep.subr.mxu0 %v545
    %3103 = vmatpush1.msra.mxu0 %v544
    %3104 = vmatprep.subr.mxu0 %v549
    %3105 = vmatpush1.msra.mxu0 %v548
    %3106 = vmatprep.subr.mxu0 %v553
    %3107 = vmatpush1.msra.mxu0 %v552
    %3108 = vmatprep.subr.mxu0 %v557
    %3109 = vmatpush1.msra.mxu0 %v556
    %3110 = vmatprep.subr.mxu0 %v561
    %3111 = vmatpush1.msra.mxu0 %v560
    %3112 = vmatprep.subr.mxu0 %v565
    %3113 = vmatpush1.msra.mxu0 %v564
    %3114 = vmatprep.subr.mxu0 %v569
    %3115 = vmatpush1.msra.mxu0 %v568
    %3116 = vmatprep.subr.mxu0 %v573
    %3117 = vmatpush1.msra.mxu0 %v572
    %3118 = vmatprep.subr.mxu0 %v577
    %3119 = vmatpush1.msra.mxu0 %v576
    %3120 = vmatprep.subr.mxu0 %v581
    %3121 = vmatpush1.msra.mxu0 %v580
    %3122 = vmatprep.subr.mxu0 %v585
    %3123 = vmatpush1.msra.mxu0 %v584
    %3124 = vmatprep.subr.mxu0 %v589
    %3125 = vmatpush1.msra.mxu0 %v588
    %3126 = vmatprep.subr.mxu0 0.0
    %3127 = vmatpush1.msra.mxu0 0.0
    %3128 = vmatprep.subr.mxu0 0.0
    %3129 = vmatpush1.msra.mxu0 0.0
    %3130 = vmatprep.subr.mxu0 0.0
    %3131 = vmatpush1.msra.mxu0 0.0
    %3132 = vmatprep.subr.mxu0 0.0
    %3133 = vmatpush1.msra.mxu0 0.0
    %3134 = vmatprep.subr.mxu0 0.0
    %3135 = vmatpush1.msra.mxu0 0.0
    %3136 = vmatprep.subr.mxu0 0.0
    %3137 = vmatpush1.msra.mxu0 0.0
    %3138 = vmatprep.subr.mxu0 0.0
    %3139 = vmatpush1.msra.mxu0 0.0
    %3140 = vmatprep.subr.mxu0 0.0
    %3141 = vmatpush1.msra.mxu0 0.0
    %3142 = vmatprep.subr.mxu0 0.0
    %3143 = vmatpush1.msra.mxu0 0.0
    %3144 = vmatprep.subr.mxu0 0.0
    %3145 = vmatpush1.msra.mxu0 0.0
    %3146 = vmatprep.subr.mxu0 0.0
    %3147 = vmatpush1.msra.mxu0 0.0
    %3148 = vmatprep.subr.mxu0 0.0
    %3149 = vmatpush1.msra.mxu0 0.0
    %3150 = vmatprep.subr.mxu0 0.0
    %3151 = vmatpush1.msra.mxu0 0.0
    %3152 = vmatprep.subr.mxu0 0.0
    %3153 = vmatpush1.msra.mxu0 0.0
    %3154 = vmatprep.subr.mxu0 0.0
    %3155 = vmatpush1.msra.mxu0 0.0
    %3156 = vmatprep.subr.mxu0 0.0
    %3157 = vmatpush1.msra.mxu0 0.0
    %3158 = vmatprep.mubr.f32.mxu0 0.0
    %3159 = vmatmul.mubr.f32.gmra.mrb[0].mxu0 %v2927
    %v3160 = vpop.f32.mrb[0].mxu0
    %v3161 = vadd.f32 0.0, %v3160
    %v3162 = vpop.f32.mrb[0].mxu0
    %v3163 = vadd.f32 0.0, %v3162
    %3164 = vdwg.mxu0
    %3165 = vmatprep.subr.mxu0 %v531
    %3166 = vmatpush1.msra.mxu0 %v530
    %3167 = vmatprep.subr.mxu0 %v535
    %3168 = vmatpush1.msra.mxu0 %v534
    %3169 = vmatprep.subr.mxu0 %v539
    %3170 = vmatpush1.msra.mxu0 %v538
    %3171 = vmatprep.subr.mxu0 %v543
    %3172 = vmatpush1.msra.mxu0 %v542
    %3173 = vmatprep.subr.mxu0 %v547
    %3174 = vmatpush1.msra.mxu0 %v546
    %3175 = vmatprep.subr.mxu0 %v551
    %3176 = vmatpush1.msra.mxu0 %v550
    %3177 = vmatprep.subr.mxu0 %v555
    %3178 = vmatpush1.msra.mxu0 %v554
    %3179 = vmatprep.subr.mxu0 %v559
    %3180 = vmatpush1.msra.mxu0 %v558
    %3181 = vmatprep.subr.mxu0 %v563
    %3182 = vmatpush1.msra.mxu0 %v562
    %3183 = vmatprep.subr.mxu0 %v567
    %3184 = vmatpush1.msra.mxu0 %v566
    %3185 = vmatprep.subr.mxu0 %v571
    %3186 = vmatpush1.msra.mxu0 %v570
    %3187 = vmatprep.subr.mxu0 %v575
    %3188 = vmatpush1.msra.mxu0 %v574
    %3189 = vmatprep.subr.mxu0 %v579
    %3190 = vmatpush1.msra.mxu0 %v578
    %3191 = vmatprep.subr.mxu0 %v583
    %3192 = vmatpush1.msra.mxu0 %v582
    %3193 = vmatprep.subr.mxu0 %v587
    %3194 = vmatpush1.msra.mxu0 %v586
    %3195 = vmatprep.subr.mxu0 %v591
    %3196 = vmatpush1.msra.mxu0 %v590
    %3197 = vmatprep.subr.mxu0 0.0
    %3198 = vmatpush1.msra.mxu0 0.0
    %3199 = vmatprep.subr.mxu0 0.0
    %3200 = vmatpush1.msra.mxu0 0.0
    %3201 = vmatprep.subr.mxu0 0.0
    %3202 = vmatpush1.msra.mxu0 0.0
    %3203 = vmatprep.subr.mxu0 0.0
    %3204 = vmatpush1.msra.mxu0 0.0
    %3205 = vmatprep.subr.mxu0 0.0
    %3206 = vmatpush1.msra.mxu0 0.0
    %3207 = vmatprep.subr.mxu0 0.0
    %3208 = vmatpush1.msra.mxu0 0.0
    %3209 = vmatprep.subr.mxu0 0.0
    %3210 = vmatpush1.msra.mxu0 0.0
    %3211 = vmatprep.subr.mxu0 0.0
    %3212 = vmatpush1.msra.mxu0 0.0
    %3213 = vmatprep.subr.mxu0 0.0
    %3214 = vmatpush1.msra.mxu0 0.0
    %3215 = vmatprep.subr.mxu0 0.0
    %3216 = vmatpush1.msra.mxu0 0.0
    %3217 = vmatprep.subr.mxu0 0.0
    %3218 = vmatpush1.msra.mxu0 0.0
    %3219 = vmatprep.subr.mxu0 0.0
    %3220 = vmatpush1.msra.mxu0 0.0
    %3221 = vmatprep.subr.mxu0 0.0
    %3222 = vmatpush1.msra.mxu0 0.0
    %3223 = vmatprep.subr.mxu0 0.0
    %3224 = vmatpush1.msra.mxu0 0.0
    %3225 = vmatprep.subr.mxu0 0.0
    %3226 = vmatpush1.msra.mxu0 0.0
    %3227 = vmatprep.subr.mxu0 0.0
    %3228 = vmatpush1.msra.mxu0 0.0
    %3229 = vmatprep.mubr.f32.mxu0 0.0
    %3230 = vmatmul.mubr.f32.gmra.mrb[0].mxu0 %v2927
    %v3231 = vpop.f32.mrb[0].mxu0
    %v3232 = vadd.f32 0.0, %v3231
    %v3233 = vpop.f32.mrb[0].mxu0
    %v3234 = vadd.f32 0.0, %v3233
    %3235 = vdwg.mxu0
    %v3236 = vadd.f32 %v411, %v3161
    %v3237 = vadd.f32 %v413, %v3163
    %v3238 = vadd.f32 %v524, %v3232
    %v3239 = vadd.f32 %v526, %v3234
    %v3240 = vxor.u32 %v3236, 2147483648
    %v3241 = vmul.f32 %v3240, 1.442695
    %v3242 = vpow.pop %v3241
    %v3243 = vadd.f32 %v3242, 1.0
    %v3244 = vrcp.pop %v3243
    %v3245 = vmul.f32 1.0, %v3244
    %v3246 = vxor.u32 %v3237, 2147483648
    %v3247 = vmul.f32 %v3246, 1.442695
    %v3248 = vpow.pop %v3247
    %v3249 = vadd.f32 %v3248, 1.0
    %v3250 = vrcp.pop %v3249
    %v3251 = vmul.f32 1.0, %v3250
    %v3252 = vtanh.pop %v3238
    %v3253 = vxor.u32 %v3239, 2147483648
    %v3254 = vmul.f32 %v3253, 1.442695
    %v3255 = vpow.pop %v3254
    %v3256 = vadd.f32 %v3255, 1.0
    %v3257 = vrcp.pop %v3256
    %v3258 = vmul.f32 1.0, %v3257
    %v3259 = vmul.f32 %v3251, %v2925
    %v3260 = vmul.f32 %v3245, %v3252
    %v3261 = vadd.f32 %v3259, %v3260
    %v3262 = vtanh.pop %v3261
    %v3263 = vmul.f32 %v3258, %v3262
    %3264 = vmatprep.subr.mxu0 %v593
    %3265 = vmatpush1.msra.mxu0 %v592
    %3266 = vmatprep.subr.mxu0 %v597
    %3267 = vmatpush1.msra.mxu0 %v596
    %3268 = vmatprep.subr.mxu0 %v601
    %3269 = vmatpush1.msra.mxu0 %v600
    %3270 = vmatprep.subr.mxu0 %v605
    %3271 = vmatpush1.msra.mxu0 %v604
    %3272 = vmatprep.subr.mxu0 %v609
    %3273 = vmatpush1.msra.mxu0 %v608
    %3274 = vmatprep.subr.mxu0 %v613
    %3275 = vmatpush1.msra.mxu0 %v612
    %3276 = vmatprep.subr.mxu0 %v617
    %3277 = vmatpush1.msra.mxu0 %v616
    %3278 = vmatprep.subr.mxu0 %v621
    %3279 = vmatpush1.msra.mxu0 %v620
    %3280 = vmatprep.subr.mxu0 %v625
    %3281 = vmatpush1.msra.mxu0 %v624
    %3282 = vmatprep.subr.mxu0 %v629
    %3283 = vmatpush1.msra.mxu0 %v628
    %3284 = vmatprep.subr.mxu0 %v633
    %3285 = vmatpush1.msra.mxu0 %v632
    %3286 = vmatprep.subr.mxu0 %v637
    %3287 = vmatpush1.msra.mxu0 %v636
    %3288 = vmatprep.subr.mxu0 %v641
    %3289 = vmatpush1.msra.mxu0 %v640
    %3290 = vmatprep.subr.mxu0 %v645
    %3291 = vmatpush1.msra.mxu0 %v644
    %3292 = vmatprep.subr.mxu0 %v649
    %3293 = vmatpush1.msra.mxu0 %v648
    %3294 = vmatprep.subr.mxu0 %v653
    %3295 = vmatpush1.msra.mxu0 %v652
    %3296 = vmatprep.subr.mxu0 %v657
    %3297 = vmatpush1.msra.mxu0 %v656
    %3298 = vmatprep.subr.mxu0 %v661
    %3299 = vmatpush1.msra.mxu0 %v660
    %3300 = vmatprep.subr.mxu0 %v665
    %3301 = vmatpush1.msra.mxu0 %v664
    %3302 = vmatprep.subr.mxu0 %v669
    %3303 = vmatpush1.msra.mxu0 %v668
    %3304 = vmatprep.subr.mxu0 %v673
    %3305 = vmatpush1.msra.mxu0 %v672
    %3306 = vmatprep.subr.mxu0 %v677
    %3307 = vmatpush1.msra.mxu0 %v676
    %3308 = vmatprep.subr.mxu0 %v681
    %3309 = vmatpush1.msra.mxu0 %v680
    %3310 = vmatprep.subr.mxu0 %v685
    %3311 = vmatpush1.msra.mxu0 %v684
    %3312 = vmatprep.subr.mxu0 %v689
    %3313 = vmatpush1.msra.mxu0 %v688
    %3314 = vmatprep.subr.mxu0 %v693
    %3315 = vmatpush1.msra.mxu0 %v692
    %3316 = vmatprep.subr.mxu0 %v697
    %3317 = vmatpush1.msra.mxu0 %v696
    %3318 = vmatprep.subr.mxu0 %v701
    %3319 = vmatpush1.msra.mxu0 %v700
    %3320 = vmatprep.subr.mxu0 %v705
    %3321 = vmatpush1.msra.mxu0 %v704
    %3322 = vmatprep.subr.mxu0 %v709
    %3323 = vmatpush1.msra.mxu0 %v708
    %3324 = vmatprep.subr.mxu0 %v713
    %3325 = vmatpush1.msra.mxu0 %v712
    %3326 = vmatprep.subr.mxu0 %v717
    %3327 = vmatpush1.msra.mxu0 %v716
    %3328 = vmatprep.mubr.f32.mxu0 %v3093
    %3329 = vmatmul.mubr.f32.gmra.mrb[0].mxu0 %v3263
    %v3330 = vpop.f32.mrb[0].mxu0
    %v3331 = vadd.f32 %v895, %v3330
    %v3332 = vpop.f32.mrb[0].mxu0
    %v3333 = vadd.f32 %v899, %v3332
    %3334 = vdwg.mxu0
    %3335 = vmatprep.subr.mxu0 %v595
    %3336 = vmatpush1.msra.mxu0 %v594
    %3337 = vmatprep.subr.mxu0 %v599
    %3338 = vmatpush1.msra.mxu0 %v598
    %3339 = vmatprep.subr.mxu0 %v603
    %3340 = vmatpush1.msra.mxu0 %v602
    %3341 = vmatprep.subr.mxu0 %v607
    %3342 = vmatpush1.msra.mxu0 %v606
    %3343 = vmatprep.subr.mxu0 %v611
    %3344 = vmatpush1.msra.mxu0 %v610
    %3345 = vmatprep.subr.mxu0 %v615
    %3346 = vmatpush1.msra.mxu0 %v614
    %3347 = vmatprep.subr.mxu0 %v619
    %3348 = vmatpush1.msra.mxu0 %v618
    %3349 = vmatprep.subr.mxu0 %v623
    %3350 = vmatpush1.msra.mxu0 %v622
    %3351 = vmatprep.subr.mxu0 %v627
    %3352 = vmatpush1.msra.mxu0 %v626
    %3353 = vmatprep.subr.mxu0 %v631
    %3354 = vmatpush1.msra.mxu0 %v630
    %3355 = vmatprep.subr.mxu0 %v635
    %3356 = vmatpush1.msra.mxu0 %v634
    %3357 = vmatprep.subr.mxu0 %v639
    %3358 = vmatpush1.msra.mxu0 %v638
    %3359 = vmatprep.subr.mxu0 %v643
    %3360 = vmatpush1.msra.mxu0 %v642
    %3361 = vmatprep.subr.mxu0 %v647
    %3362 = vmatpush1.msra.mxu0 %v646
    %3363 = vmatprep.subr.mxu0 %v651
    %3364 = vmatpush1.msra.mxu0 %v650
    %3365 = vmatprep.subr.mxu0 %v655
    %3366 = vmatpush1.msra.mxu0 %v654
    %3367 = vmatprep.subr.mxu0 %v659
    %3368 = vmatpush1.msra.mxu0 %v658
    %3369 = vmatprep.subr.mxu0 %v663
    %3370 = vmatpush1.msra.mxu0 %v662
    %3371 = vmatprep.subr.mxu0 %v667
    %3372 = vmatpush1.msra.mxu0 %v666
    %3373 = vmatprep.subr.mxu0 %v671
    %3374 = vmatpush1.msra.mxu0 %v670
    %3375 = vmatprep.subr.mxu0 %v675
    %3376 = vmatpush1.msra.mxu0 %v674
    %3377 = vmatprep.subr.mxu0 %v679
    %3378 = vmatpush1.msra.mxu0 %v678
    %3379 = vmatprep.subr.mxu0 %v683
    %3380 = vmatpush1.msra.mxu0 %v682
    %3381 = vmatprep.subr.mxu0 %v687
    %3382 = vmatpush1.msra.mxu0 %v686
    %3383 = vmatprep.subr.mxu0 %v691
    %3384 = vmatpush1.msra.mxu0 %v690
    %3385 = vmatprep.subr.mxu0 %v695
    %3386 = vmatpush1.msra.mxu0 %v694
    %3387 = vmatprep.subr.mxu0 %v699
    %3388 = vmatpush1.msra.mxu0 %v698
    %3389 = vmatprep.subr.mxu0 %v703
    %3390 = vmatpush1.msra.mxu0 %v702
    %3391 = vmatprep.subr.mxu0 %v707
    %3392 = vmatpush1.msra.mxu0 %v706
    %3393 = vmatprep.subr.mxu0 %v711
    %3394 = vmatpush1.msra.mxu0 %v710
    %3395 = vmatprep.subr.mxu0 %v715
    %3396 = vmatpush1.msra.mxu0 %v714
    %3397 = vmatprep.subr.mxu0 %v719
    %3398 = vmatpush1.msra.mxu0 %v718
    %3399 = vmatprep.mubr.f32.mxu0 %v3093
    %3400 = vmatmul.mubr.f32.gmra.mrb[0].mxu0 %v3263
    %v3401 = vpop.f32.mrb[0].mxu0
    %v3402 = vadd.f32 %v903, %v3401
    %v3403 = vpop.f32.mrb[0].mxu0
    %v3404 = vadd.f32 %v907, %v3403
    %3405 = vdwg.mxu0
    %v3406 = vxor.u32 %v3331, 2147483648
    %v3407 = vmul.f32 %v3406, 1.442695
    %v3408 = vpow.pop %v3407
    %v3409 = vadd.f32 %v3408, 1.0
    %v3410 = vrcp.pop %v3409
    %v3411 = vmul.f32 1.0, %v3410
    %v3412 = vxor.u32 %v3333, 2147483648
    %v3413 = vmul.f32 %v3412, 1.442695
    %v3414 = vpow.pop %v3413
    %v3415 = vadd.f32 %v3414, 1.0
    %v3416 = vrcp.pop %v3415
    %v3417 = vmul.f32 1.0, %v3416
    %v3418 = vtanh.pop %v3402
    %v3419 = vxor.u32 %v3404, 2147483648
    %v3420 = vmul.f32 %v3419, 1.442695
    %v3421 = vpow.pop %v3420
    %v3422 = vadd.f32 %v3421, 1.0
    %v3423 = vrcp.pop %v3422
    %v3424 = vmul.f32 1.0, %v3423
    %v3425 = vmul.f32 %v3417, %v3091
    %v3426 = vmul.f32 %v3411, %v3418
    %v3427 = vadd.f32 %v3425, %v3426
    %v3428 = vtanh.pop %v3427
    %v3429 = vmul.f32 %v3424, %v3428
    %v3430 = vld [vmem:[%s7] sm:$0xff]
    %v3431 = vld [vmem:[%s7 + $0x8] sm:$0xff]
    %v3432 = vld [vmem:[%s7 + $0x10] sm:$0xff]
    %v3433 = vld [vmem:[%s7 + $0x18] sm:$0xff]
    %v3434 = vld [vmem:[%s7 + $0x20] sm:$0xff]
    %v3435 = vld [vmem:[%s7 + $0x28] sm:$0xff]
    %v3436 = vld [vmem:[%s7 + $0x30] sm:$0xff]
    %v3437 = vld [vmem:[%s7 + $0x38] sm:$0xff]
    %v3438 = vld [vmem:[%s7 + $0x40] sm:$0xff]
    %v3439 = vld [vmem:[%s7 + $0x48] sm:$0xff]
    %v3440 = vld [vmem:[%s7 + $0x50] sm:$0xff]
    %v3441 = vld [vmem:[%s7 + $0x58] sm:$0xff]
    %v3442 = vld [vmem:[%s7 + $0x60] sm:$0xff]
    %v3443 = vld [vmem:[%s7 + $0x68] sm:$0xff]
    %v3444 = vld [vmem:[%s7 + $0x70] sm:$0xff]
    %v3445 = vld [vmem:[%s7 + $0x78] sm:$0xff]
    %v3446 = vld [vmem:[%s8] sm:$0x1]
    %v3448 = vlaneseq
    %v3449 = vshrl.u32 %v3448, 7
    %v3450 = vsub.s32 0, %v3449
    %v3451 = vrot.slane %v3446, %v3450
    %3453 = vmatprep.subr.mxu0 0.0
    %3454 = vmatpush1.msra.mxu0 %v3430
    %3455 = vmatprep.subr.mxu0 0.0
    %3456 = vmatpush1.msra.mxu0 %v3431
    %3457 = vmatprep.subr.mxu0 0.0
    %3458 = vmatpush1.msra.mxu0 %v3432
    %3459 = vmatprep.subr.mxu0 0.0
    %3460 = vmatpush1.msra.mxu0 %v3433
    %3461 = vmatprep.subr.mxu0 0.0
    %3462 = vmatpush1.msra.mxu0 %v3434
    %3463 = vmatprep.subr.mxu0 0.0
    %3464 = vmatpush1.msra.mxu0 %v3435
    %3465 = vmatprep.subr.mxu0 0.0
    %3466 = vmatpush1.msra.mxu0 %v3436
    %3467 = vmatprep.subr.mxu0 0.0
    %3468 = vmatpush1.msra.mxu0 %v3437
    %3469 = vmatprep.subr.mxu0 0.0
    %3470 = vmatpush1.msra.mxu0 %v3438
    %3471 = vmatprep.subr.mxu0 0.0
    %3472 = vmatpush1.msra.mxu0 %v3439
    %3473 = vmatprep.subr.mxu0 0.0
    %3474 = vmatpush1.msra.mxu0 %v3440
    %3475 = vmatprep.subr.mxu0 0.0
    %3476 = vmatpush1.msra.mxu0 %v3441
    %3477 = vmatprep.subr.mxu0 0.0
    %3478 = vmatpush1.msra.mxu0 %v3442
    %3479 = vmatprep.subr.mxu0 0.0
    %3480 = vmatpush1.msra.mxu0 %v3443
    %3481 = vmatprep.subr.mxu0 0.0
    %3482 = vmatpush1.msra.mxu0 %v3444
    %3483 = vmatprep.subr.mxu0 0.0
    %3484 = vmatpush1.msra.mxu0 %v3445
    %3485 = vmatprep.subr.mxu0 0.0
    %3486 = vmatpush1.msra.mxu0 0.0
    %3487 = vmatprep.subr.mxu0 0.0
    %3488 = vmatpush1.msra.mxu0 0.0
    %3489 = vmatprep.subr.mxu0 0.0
    %3490 = vmatpush1.msra.mxu0 0.0
    %3491 = vmatprep.subr.mxu0 0.0
    %3492 = vmatpush1.msra.mxu0 0.0
    %3493 = vmatprep.subr.mxu0 0.0
    %3494 = vmatpush1.msra.mxu0 0.0
    %3495 = vmatprep.subr.mxu0 0.0
    %3496 = vmatpush1.msra.mxu0 0.0
    %3497 = vmatprep.subr.mxu0 0.0
    %3498 = vmatpush1.msra.mxu0 0.0
    %3499 = vmatprep.subr.mxu0 0.0
    %3500 = vmatpush1.msra.mxu0 0.0
    %3501 = vmatprep.subr.mxu0 0.0
    %3502 = vmatpush1.msra.mxu0 0.0
    %3503 = vmatprep.subr.mxu0 0.0
    %3504 = vmatpush1.msra.mxu0 0.0
    %3505 = vmatprep.subr.mxu0 0.0
    %3506 = vmatpush1.msra.mxu0 0.0
    %3507 = vmatprep.subr.mxu0 0.0
    %3508 = vmatpush1.msra.mxu0 0.0
    %3509 = vmatprep.subr.mxu0 0.0
    %3510 = vmatpush1.msra.mxu0 0.0
    %3511 = vmatprep.subr.mxu0 0.0
    %3512 = vmatpush1.msra.mxu0 0.0
    %3513 = vmatprep.subr.mxu0 0.0
    %3514 = vmatpush1.msra.mxu0 0.0
    %3515 = vmatprep.subr.mxu0 0.0
    %3516 = vmatpush1.msra.mxu0 0.0
    %3517 = vmatprep.mubr.f32.mxu0 0.0
    %3518 = vmatmul.mubr.f32.gmra.mrb[0].mxu0 %v1077
    %v3519 = vpop.f32.mrb[0].mxu0
    %v3520 = vadd.f32 %v3451, %v3519
    %v3521 = vpop.f32.mrb[0].mxu0
    %3522 = vmatprep.mubr.f32.mxu0 0.0
    %3523 = vmatmul.mubr.f32.gmra.mrb[0].mxu0 %v1413
    %v3524 = vpop.f32.mrb[0].mxu0
    %v3525 = vadd.f32 %v3451, %v3524
    %v3526 = vpop.f32.mrb[0].mxu0
    %3527 = vmatprep.mubr.f32.mxu0 0.0
    %3528 = vmatmul.mubr.f32.gmra.mrb[0].mxu0 %v1749
    %v3529 = vpop.f32.mrb[0].mxu0
    %v3530 = vadd.f32 %v3451, %v3529
    %v3531 = vpop.f32.mrb[0].mxu0
    %3532 = vmatprep.mubr.f32.mxu0 0.0
    %3533 = vmatmul.mubr.f32.gmra.mrb[0].mxu0 %v2085
    %v3534 = vpop.f32.mrb[0].mxu0
    %v3535 = vadd.f32 %v3451, %v3534
    %v3536 = vpop.f32.mrb[0].mxu0
    %3537 = vmatprep.mubr.f32.mxu0 0.0
    %3538 = vmatmul.mubr.f32.gmra.mrb[0].mxu0 %v2421
    %v3539 = vpop.f32.mrb[0].mxu0
    %v3540 = vadd.f32 %v3451, %v3539
    %v3541 = vpop.f32.mrb[0].mxu0
    %3542 = vmatprep.mubr.f32.mxu0 0.0
    %3543 = vmatmul.mubr.f32.gmra.mrb[0].mxu0 %v2757
    %v3544 = vpop.f32.mrb[0].mxu0
    %v3545 = vadd.f32 %v3451, %v3544
    %v3546 = vpop.f32.mrb[0].mxu0
    %3547 = vmatprep.mubr.f32.mxu0 0.0
    %3548 = vmatmul.mubr.f32.gmra.mrb[0].mxu0 %v3093
    %v3549 = vpop.f32.mrb[0].mxu0
    %v3550 = vadd.f32 %v3451, %v3549
    %v3551 = vpop.f32.mrb[0].mxu0
    %3552 = vmatprep.mubr.f32.mxu0 0.0
    %3553 = vmatmul.mubr.f32.gmra.mrb[0].mxu0 %v3429
    %v3554 = vpop.f32.mrb[0].mxu0
    %v3555 = vadd.f32 %v3451, %v3554
    %v3556 = vpop.f32.mrb[0].mxu0
    %3557 = vdwg.mxu0
    %3558 = vst [vmem:[%s9] sm:$0xff] %v3520
    %3559 = vst [vmem:[%s9 + $0x8] sm:$0xff] %v3525
    %3560 = vst [vmem:[%s9 + $0x10] sm:$0xff] %v3530
    %3561 = vst [vmem:[%s9 + $0x18] sm:$0xff] %v3535
    %3562 = vst [vmem:[%s9 + $0x20] sm:$0xff] %v3540
    %3563 = vst [vmem:[%s9 + $0x28] sm:$0xff] %v3545
    %3564 = vst [vmem:[%s9 + $0x30] sm:$0xff] %v3550
    %3565 = vst [vmem:[%s9 + $0x38] sm:$0xff] %v3555
    // Predicated region
    $region46: #{model_forward.1} parent=1 // pred_check
      _
    $region47: #{model_forward.1} parent=1 // pred_check_branch
      %3567 = sbr.rel (0) target = $region49
    $region48: #{model_forward.1} parent=1 // pred_region
      _
    $region49: #{model_forward.1} parent=1 // pred_fallthru
      _
    // Predicated region
    $region50: #{model_forward.1} parent=1 // pred_check
      _
    $region51: #{model_forward.1} parent=1 // pred_check_branch
      %3569 = sbr.rel (0) target = $region53
    $region52: #{model_forward.1} parent=1 // pred_region
      _
    $region53: #{model_forward.1} parent=1 // pred_fallthru
      _
    %3570 = vsyncpa [#allocation3], 1
    %3571 = vsyncpa [#allocation5], 1

</llo_original>
